<compile_context>
chip_gen: v5e
topology: v5e:2x2
jax: 0.10.0
libtpu: 0.0.40
codegen_flags: <defaults>
</compile_context>

<pallas_src>
import functools
import math

import jax
import jax.numpy as jnp
from jax import lax
from jax.experimental import pallas as pl
from jax.experimental.pallas import tpu as pltpu

# ----------------------------- model hyperparams -----------------------------
NUM_CLASSES = 4
VOCAB_SIZE = 64
EMBED_SIZE = 32
NHEADS = 4
HEAD_DIM = EMBED_SIZE // NHEADS
NUM_ENCODER_LAYERS = 2
HIDDEN_SIZE = 64
MAX_LEN = 2000
LN_EPS = 1e-5

BATCH = 2
SEQ = 8

_LAYER_PARAM_COUNT = 12   # per-encoder-layer weight tensors
_HEAD_PARAM_COUNT = 6     # decoder (2 linears) + classifier


# ------------------------------- fused kernel --------------------------------
def _layer_norm(y, gamma, beta):
    # PyTorch LayerNorm semantics (biased variance), f32 math.
    mean = jnp.mean(y, axis=-1, keepdims=True)
    var = jnp.mean((y - mean) ** 2, axis=-1, keepdims=True)
    return (y - mean) * lax.rsqrt(var + LN_EPS) * gamma + beta


def _fused_forward_kernel(*refs):
    """Single-invocation forward: everything resident in VMEM."""
    B, S, E, H, D = BATCH, SEQ, EMBED_SIZE, NHEADS, HEAD_DIM
    scale = 1.0 / math.sqrt(D)

    x_ref, bias_ref = refs[0], refs[1]
    idx = 2
    layer_refs = []
    for _ in range(NUM_ENCODER_LAYERS):
        layer_refs.append(refs[idx:idx + _LAYER_PARAM_COUNT])
        idx += _LAYER_PARAM_COUNT
    d1_w, d1_b, d2_w, d2_b, c_w, c_b = refs[idx:idx + _HEAD_PARAM_COUNT]
    o_ref = refs[idx + _HEAD_PARAM_COUNT]
    attn_scratch = refs[idx + _HEAD_PARAM_COUNT + 1]

    x = x_ref[...]                      # (B*S, E) f32
    bias = bias_ref[...]                # (B, S)  additive key-padding bias

    for (in_w, in_b, out_w, out_b, ln1_g, ln1_b,
         ffn_w1, ffn_b1, ffn_w2, ffn_b2, ln2_g, ln2_b) in layer_refs:
        # ---------------- multi-head self-attention (post-norm) --------------
        qkv = jnp.dot(x, in_w[...], preferred_element_type=jnp.float32) + in_b[...]
        for b in range(B):
            r0 = b * S
            bias_b = bias[b:b + 1, :]                       # (1, S)
            for h in range(H):
                c0 = h * D
                q_bh = qkv[r0:r0 + S, c0:c0 + D]            # (S, D)
                k_bh = qkv[r0:r0 + S, E + c0:E + c0 + D]    # (S, D)
                v_bh = qkv[r0:r0 + S, 2 * E + c0:2 * E + c0 + D]
                # q @ k^T without an explicit transpose
                s = lax.dot_general(q_bh, k_bh, (((1,), (1,)), ((), ())),
                                    preferred_element_type=jnp.float32)
                s = s * scale + bias_b
                s = s - jnp.max(s, axis=-1, keepdims=True)
                p = jnp.exp(s)
                p = p * pl.reciprocal(jnp.sum(p, axis=-1, keepdims=True),
                                      approx=True)
                o_bh = jnp.dot(p, v_bh, preferred_element_type=jnp.float32)
                attn_scratch[r0:r0 + S, c0:c0 + D] = o_bh
        attn = attn_scratch[...]                            # (B*S, E)
        attn = jnp.dot(attn, out_w[...],
                       preferred_element_type=jnp.float32) + out_b[...]
        x = _layer_norm(x + attn, ln1_g[...], ln1_b[...])
        # ----------------------------- feed-forward ---------------------------
        hid = jnp.dot(x, ffn_w1[...],
                      preferred_element_type=jnp.float32) + ffn_b1[...]
        hid = jnp.maximum(hid, 0.0)
        ffn = jnp.dot(hid, ffn_w2[...],
                      preferred_element_type=jnp.float32) + ffn_b2[...]
        x = _layer_norm(x + ffn, ln2_g[...], ln2_b[...])

    # -------------- decoder head: Linear -> ReLU -> Linear(vocab) ------------
    hd = jnp.maximum(
        jnp.dot(x, d1_w[...], preferred_element_type=jnp.float32) + d1_b[...], 0.0)
    tok = jnp.dot(hd, d2_w[...],
                  preferred_element_type=jnp.float32) + d2_b[...]      # (B*S, V)

    # ------------- classification on the first token of each sequence --------
    logits_all = jnp.dot(tok, c_w[...],
                         preferred_element_type=jnp.float32) + c_b[...]  # (B*S, C)
    for b in range(B):
        o_ref[b:b + 1, :] = logits_all[b * S:b * S + 1, :].astype(o_ref.dtype)


# ------------------------------- param / PE setup -----------------------------
def make_pos_encoding(max_len, d_model):
    position = jnp.arange(max_len, dtype=jnp.float32)[:, None]
    div_term = jnp.exp(
        jnp.arange(0, d_model, 2, dtype=jnp.float32) * (-math.log(10000.0) / d_model))
    ang = position * div_term
    pe = jnp.zeros((max_len, d_model), jnp.float32)
    pe = pe.at[:, 0::2].set(jnp.sin(ang))
    pe = pe.at[:, 1::2].set(jnp.cos(ang))
    return pe


def init_params(key):
    # Weights stored pre-transposed in (in_features, out_features) layout so the
    # kernel never transposes at run time.  Biases stored as (1, N) for 2D VMEM.
    def nrm(k, shape, scale=0.05):
        return (scale * jax.random.normal(k, shape)).astype(jnp.float32)

    keys = iter(jax.random.split(key, 64))
    params = {
        "embed": nrm(next(keys), (VOCAB_SIZE, EMBED_SIZE), 0.1),
        "pe": make_pos_encoding(MAX_LEN, EMBED_SIZE),
        "layers": [],
        "d1_w": nrm(next(keys), (EMBED_SIZE, EMBED_SIZE)),
        "d1_b": jnp.zeros((1, EMBED_SIZE), jnp.float32),
        "d2_w": nrm(next(keys), (EMBED_SIZE, VOCAB_SIZE)),
        "d2_b": jnp.zeros((1, VOCAB_SIZE), jnp.float32),
        "c_w": nrm(next(keys), (VOCAB_SIZE, NUM_CLASSES)),
        "c_b": jnp.zeros((1, NUM_CLASSES), jnp.float32),
    }
    for _ in range(NUM_ENCODER_LAYERS):
        params["layers"].append({
            "in_w": nrm(next(keys), (EMBED_SIZE, 3 * EMBED_SIZE)),
            "in_b": jnp.zeros((1, 3 * EMBED_SIZE), jnp.float32),
            "out_w": nrm(next(keys), (EMBED_SIZE, EMBED_SIZE)),
            "out_b": jnp.zeros((1, EMBED_SIZE), jnp.float32),
            "ln1_g": jnp.ones((1, EMBED_SIZE), jnp.float32),
            "ln1_b": jnp.zeros((1, EMBED_SIZE), jnp.float32),
            "ffn_w1": nrm(next(keys), (EMBED_SIZE, HIDDEN_SIZE)),
            "ffn_b1": jnp.zeros((1, HIDDEN_SIZE), jnp.float32),
            "ffn_w2": nrm(next(keys), (HIDDEN_SIZE, EMBED_SIZE)),
            "ffn_b2": jnp.zeros((1, EMBED_SIZE), jnp.float32),
            "ln2_g": jnp.ones((1, EMBED_SIZE), jnp.float32),
            "ln2_b": jnp.zeros((1, EMBED_SIZE), jnp.float32),
        })
    return params


_LAYER_KEYS = ("in_w", "in_b", "out_w", "out_b", "ln1_g", "ln1_b",
               "ffn_w1", "ffn_b1", "ffn_w2", "ffn_b2", "ln2_g", "ln2_b")


# --------------------------------- forward -----------------------------------
def model_forward(params, src, src_key_padding_mask):
    """Inference forward (dropout = identity).  src: (B,S) int32, mask: (B,S) bool."""
    B, S = src.shape
    E = EMBED_SIZE

    # Embedding gather + sqrt scale + positional encoding: gather is glue, done
    # in plain JAX; everything else runs in the single fused kernel.
    x = params["embed"][src] * math.sqrt(E) + params["pe"][None, :S, :]
    x = x.reshape(B * S, E).astype(jnp.float32)

    # key_padding_mask: True -> ignore that key (additive -1e9 bias).
    mask_bias = jnp.where(src_key_padding_mask, -1e9, 0.0).astype(jnp.float32)

    flat_inputs = [x, mask_bias]
    for lp in params["layers"]:
        flat_inputs.extend(lp[k] for k in _LAYER_KEYS)
    flat_inputs.extend([params["d1_w"], params["d1_b"],
                        params["d2_w"], params["d2_b"],
                        params["c_w"], params["c_b"]])

    vmem_spec = pl.BlockSpec(memory_space=pltpu.MemorySpace.VMEM)
    return pl.pallas_call(
        _fused_forward_kernel,
        in_specs=[vmem_spec] * len(flat_inputs),
        out_specs=vmem_spec,
        out_shape=jax.ShapeDtypeStruct((B, NUM_CLASSES), jnp.float32),
        scratch_shapes=[pltpu.VMEM((B * S, E), jnp.float32)],
    )(*flat_inputs)


# ----------------------------------- main -------------------------------------
if __name__ == "__main__":
    key = jax.random.PRNGKey(0)
    k_params, k_tok = jax.random.split(key)

    params = init_params(k_params)

    src = jax.random.randint(k_tok, (BATCH, SEQ), 0, VOCAB_SIZE, dtype=jnp.int32)
    # True = padded (ignored) key position; keep token 0 unpadded everywhere.
    src_key_padding_mask = jnp.zeros((BATCH, SEQ), dtype=jnp.bool_)
    src_key_padding_mask = src_key_padding_mask.at[1, SEQ - 2:].set(True)

    # TODO(synk): dropout layers (p=0.15) are identity here (inference mode).
    fwd = jax.jit(functools.partial(model_forward, params))
    out = fwd(src, src_key_padding_mask)
    jax.block_until_ready(out)
    assert out.shape == (BATCH, NUM_CLASSES)
    assert bool(jnp.all(jnp.isfinite(out)))
    print("KERNEL_OK")
</pallas_src>

<mosaic_0001>
module attributes {stable_mosaic.version = 11 : i64} {
  func.func @_fused_forward_kernel(%arg0: memref<16x32xf32, #tpu.memory_space<vmem>>, %arg1: memref<2x8xf32, #tpu.memory_space<vmem>>, %arg2: memref<32x96xf32, #tpu.memory_space<vmem>>, %arg3: memref<1x96xf32, #tpu.memory_space<vmem>>, %arg4: memref<32x32xf32, #tpu.memory_space<vmem>>, %arg5: memref<1x32xf32, #tpu.memory_space<vmem>>, %arg6: memref<1x32xf32, #tpu.memory_space<vmem>>, %arg7: memref<1x32xf32, #tpu.memory_space<vmem>>, %arg8: memref<32x64xf32, #tpu.memory_space<vmem>>, %arg9: memref<1x64xf32, #tpu.memory_space<vmem>>, %arg10: memref<64x32xf32, #tpu.memory_space<vmem>>, %arg11: memref<1x32xf32, #tpu.memory_space<vmem>>, %arg12: memref<1x32xf32, #tpu.memory_space<vmem>>, %arg13: memref<1x32xf32, #tpu.memory_space<vmem>>, %arg14: memref<32x96xf32, #tpu.memory_space<vmem>>, %arg15: memref<1x96xf32, #tpu.memory_space<vmem>>, %arg16: memref<32x32xf32, #tpu.memory_space<vmem>>, %arg17: memref<1x32xf32, #tpu.memory_space<vmem>>, %arg18: memref<1x32xf32, #tpu.memory_space<vmem>>, %arg19: memref<1x32xf32, #tpu.memory_space<vmem>>, %arg20: memref<32x64xf32, #tpu.memory_space<vmem>>, %arg21: memref<1x64xf32, #tpu.memory_space<vmem>>, %arg22: memref<64x32xf32, #tpu.memory_space<vmem>>, %arg23: memref<1x32xf32, #tpu.memory_space<vmem>>, %arg24: memref<1x32xf32, #tpu.memory_space<vmem>>, %arg25: memref<1x32xf32, #tpu.memory_space<vmem>>, %arg26: memref<32x32xf32, #tpu.memory_space<vmem>>, %arg27: memref<1x32xf32, #tpu.memory_space<vmem>>, %arg28: memref<32x64xf32, #tpu.memory_space<vmem>>, %arg29: memref<1x64xf32, #tpu.memory_space<vmem>>, %arg30: memref<64x4xf32, #tpu.memory_space<vmem>>, %arg31: memref<1x4xf32, #tpu.memory_space<vmem>>, %arg32: memref<2x4xf32, #tpu.memory_space<vmem>>, %arg33: memref<16x32xf32, #tpu.memory_space<vmem>>) attributes {dimension_semantics = [], scalar_prefetch = 0 : i64, scratch_operands = 1 : i64, tpu.core_type = #tpu.core_type<tc>} {
    %c0 = arith.constant 0 : index
    %c0_0 = arith.constant 0 : index
    %0 = vector.load %arg0[%c0, %c0_0] : memref<16x32xf32, #tpu.memory_space<vmem>>, vector<16x32xf32>
    %c0_1 = arith.constant 0 : index
    %c0_2 = arith.constant 0 : index
    %1 = vector.load %arg1[%c0_1, %c0_2] : memref<2x8xf32, #tpu.memory_space<vmem>>, vector<2x8xf32>
    %c0_3 = arith.constant 0 : index
    %c0_4 = arith.constant 0 : index
    %2 = vector.load %arg2[%c0_3, %c0_4] : memref<32x96xf32, #tpu.memory_space<vmem>>, vector<32x96xf32>
    %cst = arith.constant dense<0.000000e+00> : vector<16x96xf32>
    %3 = tpu.matmul %0, %2, %cst {dimension_numbers = #tpu.dot_dimension_numbers<[1], [0], [0], [1], [0, 0, 1, 1], [], []>} : vector<16x32xf32>, vector<32x96xf32>, vector<16x96xf32> -> vector<16x96xf32>
    %c0_5 = arith.constant 0 : index
    %c0_6 = arith.constant 0 : index
    %4 = vector.load %arg3[%c0_5, %c0_6] : memref<1x96xf32, #tpu.memory_space<vmem>>, vector<1x96xf32>
    %5 = vector.broadcast %4 : vector<1x96xf32> to vector<16x96xf32>
    %6 = arith.addf %3, %5 : vector<16x96xf32>
    %7 = vector.extract_strided_slice %1 {offsets = [0, 0], sizes = [1, 8], strides = [1, 1]} : vector<2x8xf32> to vector<1x8xf32>
    %8 = vector.extract_strided_slice %6 {offsets = [0, 0], sizes = [8, 8], strides = [1, 1]} : vector<16x96xf32> to vector<8x8xf32>
    %9 = vector.extract_strided_slice %6 {offsets = [0, 32], sizes = [8, 8], strides = [1, 1]} : vector<16x96xf32> to vector<8x8xf32>
    %10 = vector.extract_strided_slice %6 {offsets = [0, 64], sizes = [8, 8], strides = [1, 1]} : vector<16x96xf32> to vector<8x8xf32>
    %cst_7 = arith.constant dense<0.000000e+00> : vector<8x8xf32>
    %11 = tpu.matmul %8, %9, %cst_7 {dimension_numbers = #tpu.dot_dimension_numbers<[1], [1], [0], [0], [0, 0, 1, 0], [], []>} : vector<8x8xf32>, vector<8x8xf32>, vector<8x8xf32> -> vector<8x8xf32>
    %cst_8 = arith.constant 0.353553385 : f32
    %12 = vector.broadcast %cst_8 : f32 to vector<8x8xf32>
    %13 = arith.mulf %11, %12 : vector<8x8xf32>
    %14 = vector.broadcast %7 : vector<1x8xf32> to vector<8x8xf32>
    %15 = arith.addf %13, %14 : vector<8x8xf32>
    %cst_9 = arith.constant dense<0xFF800000> : vector<8xf32>
    %16 = vector.multi_reduction <maximumf>, %15, %cst_9 [1] : vector<8x8xf32> to vector<8xf32>
    %17 = vector.shape_cast %16 : vector<8xf32> to vector<8x1xf32>
    %18 = vector.broadcast %17 : vector<8x1xf32> to vector<8x8xf32>
    %19 = arith.subf %15, %18 : vector<8x8xf32>
    %20 = math.exp %19 : vector<8x8xf32>
    %cst_10 = arith.constant dense<0.000000e+00> : vector<8xf32>
    %21 = vector.multi_reduction <add>, %20, %cst_10 [1] : vector<8x8xf32> to vector<8xf32>
    %22 = vector.shape_cast %21 : vector<8xf32> to vector<8x1xf32>
    %23 = tpu.reciprocal %22 {approx = true} : vector<8x1xf32> -> vector<8x1xf32>
    %24 = vector.broadcast %23 : vector<8x1xf32> to vector<8x8xf32>
    %25 = arith.mulf %20, %24 : vector<8x8xf32>
    %cst_11 = arith.constant dense<0.000000e+00> : vector<8x8xf32>
    %26 = tpu.matmul %25, %10, %cst_11 {dimension_numbers = #tpu.dot_dimension_numbers<[1], [0], [0], [1], [0, 0, 1, 1], [], []>} : vector<8x8xf32>, vector<8x8xf32>, vector<8x8xf32> -> vector<8x8xf32>
    %c0_12 = arith.constant 0 : index
    %c0_13 = arith.constant 0 : index
    %27 = vector.load %arg33[%c0_12, %c0_13] : memref<16x32xf32, #tpu.memory_space<vmem>>, vector<8x8xf32>
    tpu.vector_store %arg33[%c0_12, %c0_13], %26 {strides = array<i32>} : memref<16x32xf32, #tpu.memory_space<vmem>>, vector<8x8xf32>,
    %28 = vector.extract_strided_slice %6 {offsets = [0, 8], sizes = [8, 8], strides = [1, 1]} : vector<16x96xf32> to vector<8x8xf32>
    %29 = vector.extract_strided_slice %6 {offsets = [0, 40], sizes = [8, 8], strides = [1, 1]} : vector<16x96xf32> to vector<8x8xf32>
    %30 = vector.extract_strided_slice %6 {offsets = [0, 72], sizes = [8, 8], strides = [1, 1]} : vector<16x96xf32> to vector<8x8xf32>
    %cst_14 = arith.constant dense<0.000000e+00> : vector<8x8xf32>
    %31 = tpu.matmul %28, %29, %cst_14 {dimension_numbers = #tpu.dot_dimension_numbers<[1], [1], [0], [0], [0, 0, 1, 0], [], []>} : vector<8x8xf32>, vector<8x8xf32>, vector<8x8xf32> -> vector<8x8xf32>
    %cst_15 = arith.constant 0.353553385 : f32
    %32 = vector.broadcast %cst_15 : f32 to vector<8x8xf32>
    %33 = arith.mulf %31, %32 : vector<8x8xf32>
    %34 = vector.broadcast %7 : vector<1x8xf32> to vector<8x8xf32>
    %35 = arith.addf %33, %34 : vector<8x8xf32>
    %cst_16 = arith.constant dense<0xFF800000> : vector<8xf32>
    %36 = vector.multi_reduction <maximumf>, %35, %cst_16 [1] : vector<8x8xf32> to vector<8xf32>
    %37 = vector.shape_cast %36 : vector<8xf32> to vector<8x1xf32>
    %38 = vector.broadcast %37 : vector<8x1xf32> to vector<8x8xf32>
    %39 = arith.subf %35, %38 : vector<8x8xf32>
    %40 = math.exp %39 : vector<8x8xf32>
    %cst_17 = arith.constant dense<0.000000e+00> : vector<8xf32>
    %41 = vector.multi_reduction <add>, %40, %cst_17 [1] : vector<8x8xf32> to vector<8xf32>
    %42 = vector.shape_cast %41 : vector<8xf32> to vector<8x1xf32>
    %43 = tpu.reciprocal %42 {approx = true} : vector<8x1xf32> -> vector<8x1xf32>
    %44 = vector.broadcast %43 : vector<8x1xf32> to vector<8x8xf32>
    %45 = arith.mulf %40, %44 : vector<8x8xf32>
    %cst_18 = arith.constant dense<0.000000e+00> : vector<8x8xf32>
    %46 = tpu.matmul %45, %30, %cst_18 {dimension_numbers = #tpu.dot_dimension_numbers<[1], [0], [0], [1], [0, 0, 1, 1], [], []>} : vector<8x8xf32>, vector<8x8xf32>, vector<8x8xf32> -> vector<8x8xf32>
    %c0_19 = arith.constant 0 : index
    %c8 = arith.constant 8 : index
    %47 = vector.load %arg33[%c0_19, %c8] : memref<16x32xf32, #tpu.memory_space<vmem>>, vector<8x8xf32>
    tpu.vector_store %arg33[%c0_19, %c8], %46 {strides = array<i32>} : memref<16x32xf32, #tpu.memory_space<vmem>>, vector<8x8xf32>,
    %48 = vector.extract_strided_slice %6 {offsets = [0, 16], sizes = [8, 8], strides = [1, 1]} : vector<16x96xf32> to vector<8x8xf32>
    %49 = vector.extract_strided_slice %6 {offsets = [0, 48], sizes = [8, 8], strides = [1, 1]} : vector<16x96xf32> to vector<8x8xf32>
    %50 = vector.extract_strided_slice %6 {offsets = [0, 80], sizes = [8, 8], strides = [1, 1]} : vector<16x96xf32> to vector<8x8xf32>
    %cst_20 = arith.constant dense<0.000000e+00> : vector<8x8xf32>
    %51 = tpu.matmul %48, %49, %cst_20 {dimension_numbers = #tpu.dot_dimension_numbers<[1], [1], [0], [0], [0, 0, 1, 0], [], []>} : vector<8x8xf32>, vector<8x8xf32>, vector<8x8xf32> -> vector<8x8xf32>
    %cst_21 = arith.constant 0.353553385 : f32
    %52 = vector.broadcast %cst_21 : f32 to vector<8x8xf32>
    %53 = arith.mulf %51, %52 : vector<8x8xf32>
    %54 = vector.broadcast %7 : vector<1x8xf32> to vector<8x8xf32>
    %55 = arith.addf %53, %54 : vector<8x8xf32>
    %cst_22 = arith.constant dense<0xFF800000> : vector<8xf32>
    %56 = vector.multi_reduction <maximumf>, %55, %cst_22 [1] : vector<8x8xf32> to vector<8xf32>
    %57 = vector.shape_cast %56 : vector<8xf32> to vector<8x1xf32>
    %58 = vector.broadcast %57 : vector<8x1xf32> to vector<8x8xf32>
    %59 = arith.subf %55, %58 : vector<8x8xf32>
    %60 = math.exp %59 : vector<8x8xf32>
    %cst_23 = arith.constant dense<0.000000e+00> : vector<8xf32>
    %61 = vector.multi_reduction <add>, %60, %cst_23 [1] : vector<8x8xf32> to vector<8xf32>
    %62 = vector.shape_cast %61 : vector<8xf32> to vector<8x1xf32>
    %63 = tpu.reciprocal %62 {approx = true} : vector<8x1xf32> -> vector<8x1xf32>
    %64 = vector.broadcast %63 : vector<8x1xf32> to vector<8x8xf32>
    %65 = arith.mulf %60, %64 : vector<8x8xf32>
    %cst_24 = arith.constant dense<0.000000e+00> : vector<8x8xf32>
    %66 = tpu.matmul %65, %50, %cst_24 {dimension_numbers = #tpu.dot_dimension_numbers<[1], [0], [0], [1], [0, 0, 1, 1], [], []>} : vector<8x8xf32>, vector<8x8xf32>, vector<8x8xf32> -> vector<8x8xf32>
    %c0_25 = arith.constant 0 : index
    %c16 = arith.constant 16 : index
    %67 = vector.load %arg33[%c0_25, %c16] : memref<16x32xf32, #tpu.memory_space<vmem>>, vector<8x8xf32>
    tpu.vector_store %arg33[%c0_25, %c16], %66 {strides = array<i32>} : memref<16x32xf32, #tpu.memory_space<vmem>>, vector<8x8xf32>,
    %68 = vector.extract_strided_slice %6 {offsets = [0, 24], sizes = [8, 8], strides = [1, 1]} : vector<16x96xf32> to vector<8x8xf32>
    %69 = vector.extract_strided_slice %6 {offsets = [0, 56], sizes = [8, 8], strides = [1, 1]} : vector<16x96xf32> to vector<8x8xf32>
    %70 = vector.extract_strided_slice %6 {offsets = [0, 88], sizes = [8, 8], strides = [1, 1]} : vector<16x96xf32> to vector<8x8xf32>
    %cst_26 = arith.constant dense<0.000000e+00> : vector<8x8xf32>
    %71 = tpu.matmul %68, %69, %cst_26 {dimension_numbers = #tpu.dot_dimension_numbers<[1], [1], [0], [0], [0, 0, 1, 0], [], []>} : vector<8x8xf32>, vector<8x8xf32>, vector<8x8xf32> -> vector<8x8xf32>
    %cst_27 = arith.constant 0.353553385 : f32
    %72 = vector.broadcast %cst_27 : f32 to vector<8x8xf32>
    %73 = arith.mulf %71, %72 : vector<8x8xf32>
    %74 = vector.broadcast %7 : vector<1x8xf32> to vector<8x8xf32>
    %75 = arith.addf %73, %74 : vector<8x8xf32>
    %cst_28 = arith.constant dense<0xFF800000> : vector<8xf32>
    %76 = vector.multi_reduction <maximumf>, %75, %cst_28 [1] : vector<8x8xf32> to vector<8xf32>
    %77 = vector.shape_cast %76 : vector<8xf32> to vector<8x1xf32>
    %78 = vector.broadcast %77 : vector<8x1xf32> to vector<8x8xf32>
    %79 = arith.subf %75, %78 : vector<8x8xf32>
    %80 = math.exp %79 : vector<8x8xf32>
    %cst_29 = arith.constant dense<0.000000e+00> : vector<8xf32>
    %81 = vector.multi_reduction <add>, %80, %cst_29 [1] : vector<8x8xf32> to vector<8xf32>
    %82 = vector.shape_cast %81 : vector<8xf32> to vector<8x1xf32>
    %83 = tpu.reciprocal %82 {approx = true} : vector<8x1xf32> -> vector<8x1xf32>
    %84 = vector.broadcast %83 : vector<8x1xf32> to vector<8x8xf32>
    %85 = arith.mulf %80, %84 : vector<8x8xf32>
    %cst_30 = arith.constant dense<0.000000e+00> : vector<8x8xf32>
    %86 = tpu.matmul %85, %70, %cst_30 {dimension_numbers = #tpu.dot_dimension_numbers<[1], [0], [0], [1], [0, 0, 1, 1], [], []>} : vector<8x8xf32>, vector<8x8xf32>, vector<8x8xf32> -> vector<8x8xf32>
    %c0_31 = arith.constant 0 : index
    %c24 = arith.constant 24 : index
    %87 = vector.load %arg33[%c0_31, %c24] : memref<16x32xf32, #tpu.memory_space<vmem>>, vector<8x8xf32>
    tpu.vector_store %arg33[%c0_31, %c24], %86 {strides = array<i32>} : memref<16x32xf32, #tpu.memory_space<vmem>>, vector<8x8xf32>,
    %88 = vector.extract_strided_slice %1 {offsets = [1, 0], sizes = [1, 8], strides = [1, 1]} : vector<2x8xf32> to vector<1x8xf32>
    %89 = vector.extract_strided_slice %6 {offsets = [8, 0], sizes = [8, 8], strides = [1, 1]} : vector<16x96xf32> to vector<8x8xf32>
    %90 = vector.extract_strided_slice %6 {offsets = [8, 32], sizes = [8, 8], strides = [1, 1]} : vector<16x96xf32> to vector<8x8xf32>
    %91 = vector.extract_strided_slice %6 {offsets = [8, 64], sizes = [8, 8], strides = [1, 1]} : vector<16x96xf32> to vector<8x8xf32>
    %cst_32 = arith.constant dense<0.000000e+00> : vector<8x8xf32>
    %92 = tpu.matmul %89, %90, %cst_32 {dimension_numbers = #tpu.dot_dimension_numbers<[1], [1], [0], [0], [0, 0, 1, 0], [], []>} : vector<8x8xf32>, vector<8x8xf32>, vector<8x8xf32> -> vector<8x8xf32>
    %cst_33 = arith.constant 0.353553385 : f32
    %93 = vector.broadcast %cst_33 : f32 to vector<8x8xf32>
    %94 = arith.mulf %92, %93 : vector<8x8xf32>
    %95 = vector.broadcast %88 : vector<1x8xf32> to vector<8x8xf32>
    %96 = arith.addf %94, %95 : vector<8x8xf32>
    %cst_34 = arith.constant dense<0xFF800000> : vector<8xf32>
    %97 = vector.multi_reduction <maximumf>, %96, %cst_34 [1] : vector<8x8xf32> to vector<8xf32>
    %98 = vector.shape_cast %97 : vector<8xf32> to vector<8x1xf32>
    %99 = vector.broadcast %98 : vector<8x1xf32> to vector<8x8xf32>
    %100 = arith.subf %96, %99 : vector<8x8xf32>
    %101 = math.exp %100 : vector<8x8xf32>
    %cst_35 = arith.constant dense<0.000000e+00> : vector<8xf32>
    %102 = vector.multi_reduction <add>, %101, %cst_35 [1] : vector<8x8xf32> to vector<8xf32>
    %103 = vector.shape_cast %102 : vector<8xf32> to vector<8x1xf32>
    %104 = tpu.reciprocal %103 {approx = true} : vector<8x1xf32> -> vector<8x1xf32>
    %105 = vector.broadcast %104 : vector<8x1xf32> to vector<8x8xf32>
    %106 = arith.mulf %101, %105 : vector<8x8xf32>
    %cst_36 = arith.constant dense<0.000000e+00> : vector<8x8xf32>
    %107 = tpu.matmul %106, %91, %cst_36 {dimension_numbers = #tpu.dot_dimension_numbers<[1], [0], [0], [1], [0, 0, 1, 1], [], []>} : vector<8x8xf32>, vector<8x8xf32>, vector<8x8xf32> -> vector<8x8xf32>
    %c8_37 = arith.constant 8 : index
    %c0_38 = arith.constant 0 : index
    %108 = vector.load %arg33[%c8_37, %c0_38] : memref<16x32xf32, #tpu.memory_space<vmem>>, vector<8x8xf32>
    tpu.vector_store %arg33[%c8_37, %c0_38], %107 {strides = array<i32>} : memref<16x32xf32, #tpu.memory_space<vmem>>, vector<8x8xf32>,
    %109 = vector.extract_strided_slice %6 {offsets = [8, 8], sizes = [8, 8], strides = [1, 1]} : vector<16x96xf32> to vector<8x8xf32>
    %110 = vector.extract_strided_slice %6 {offsets = [8, 40], sizes = [8, 8], strides = [1, 1]} : vector<16x96xf32> to vector<8x8xf32>
    %111 = vector.extract_strided_slice %6 {offsets = [8, 72], sizes = [8, 8], strides = [1, 1]} : vector<16x96xf32> to vector<8x8xf32>
    %cst_39 = arith.constant dense<0.000000e+00> : vector<8x8xf32>
    %112 = tpu.matmul %109, %110, %cst_39 {dimension_numbers = #tpu.dot_dimension_numbers<[1], [1], [0], [0], [0, 0, 1, 0], [], []>} : vector<8x8xf32>, vector<8x8xf32>, vector<8x8xf32> -> vector<8x8xf32>
    %cst_40 = arith.constant 0.353553385 : f32
    %113 = vector.broadcast %cst_40 : f32 to vector<8x8xf32>
    %114 = arith.mulf %112, %113 : vector<8x8xf32>
    %115 = vector.broadcast %88 : vector<1x8xf32> to vector<8x8xf32>
    %116 = arith.addf %114, %115 : vector<8x8xf32>
    %cst_41 = arith.constant dense<0xFF800000> : vector<8xf32>
    %117 = vector.multi_reduction <maximumf>, %116, %cst_41 [1] : vector<8x8xf32> to vector<8xf32>
    %118 = vector.shape_cast %117 : vector<8xf32> to vector<8x1xf32>
    %119 = vector.broadcast %118 : vector<8x1xf32> to vector<8x8xf32>
    %120 = arith.subf %116, %119 : vector<8x8xf32>
    %121 = math.exp %120 : vector<8x8xf32>
    %cst_42 = arith.constant dense<0.000000e+00> : vector<8xf32>
    %122 = vector.multi_reduction <add>, %121, %cst_42 [1] : vector<8x8xf32> to vector<8xf32>
    %123 = vector.shape_cast %122 : vector<8xf32> to vector<8x1xf32>
    %124 = tpu.reciprocal %123 {approx = true} : vector<8x1xf32> -> vector<8x1xf32>
    %125 = vector.broadcast %124 : vector<8x1xf32> to vector<8x8xf32>
    %126 = arith.mulf %121, %125 : vector<8x8xf32>
    %cst_43 = arith.constant dense<0.000000e+00> : vector<8x8xf32>
    %127 = tpu.matmul %126, %111, %cst_43 {dimension_numbers = #tpu.dot_dimension_numbers<[1], [0], [0], [1], [0, 0, 1, 1], [], []>} : vector<8x8xf32>, vector<8x8xf32>, vector<8x8xf32> -> vector<8x8xf32>
    %c8_44 = arith.constant 8 : index
    %c8_45 = arith.constant 8 : index
    %128 = vector.load %arg33[%c8_44, %c8_45] : memref<16x32xf32, #tpu.memory_space<vmem>>, vector<8x8xf32>
    tpu.vector_store %arg33[%c8_44, %c8_45], %127 {strides = array<i32>} : memref<16x32xf32, #tpu.memory_space<vmem>>, vector<8x8xf32>,
    %129 = vector.extract_strided_slice %6 {offsets = [8, 16], sizes = [8, 8], strides = [1, 1]} : vector<16x96xf32> to vector<8x8xf32>
    %130 = vector.extract_strided_slice %6 {offsets = [8, 48], sizes = [8, 8], strides = [1, 1]} : vector<16x96xf32> to vector<8x8xf32>
    %131 = vector.extract_strided_slice %6 {offsets = [8, 80], sizes = [8, 8], strides = [1, 1]} : vector<16x96xf32> to vector<8x8xf32>
    %cst_46 = arith.constant dense<0.000000e+00> : vector<8x8xf32>
    %132 = tpu.matmul %129, %130, %cst_46 {dimension_numbers = #tpu.dot_dimension_numbers<[1], [1], [0], [0], [0, 0, 1, 0], [], []>} : vector<8x8xf32>, vector<8x8xf32>, vector<8x8xf32> -> vector<8x8xf32>
    %cst_47 = arith.constant 0.353553385 : f32
    %133 = vector.broadcast %cst_47 : f32 to vector<8x8xf32>
    %134 = arith.mulf %132, %133 : vector<8x8xf32>
    %135 = vector.broadcast %88 : vector<1x8xf32> to vector<8x8xf32>
    %136 = arith.addf %134, %135 : vector<8x8xf32>
    %cst_48 = arith.constant dense<0xFF800000> : vector<8xf32>
    %137 = vector.multi_reduction <maximumf>, %136, %cst_48 [1] : vector<8x8xf32> to vector<8xf32>
    %138 = vector.shape_cast %137 : vector<8xf32> to vector<8x1xf32>
    %139 = vector.broadcast %138 : vector<8x1xf32> to vector<8x8xf32>
    %140 = arith.subf %136, %139 : vector<8x8xf32>
    %141 = math.exp %140 : vector<8x8xf32>
    %cst_49 = arith.constant dense<0.000000e+00> : vector<8xf32>
    %142 = vector.multi_reduction <add>, %141, %cst_49 [1] : vector<8x8xf32> to vector<8xf32>
    %143 = vector.shape_cast %142 : vector<8xf32> to vector<8x1xf32>
    %144 = tpu.reciprocal %143 {approx = true} : vector<8x1xf32> -> vector<8x1xf32>
    %145 = vector.broadcast %144 : vector<8x1xf32> to vector<8x8xf32>
    %146 = arith.mulf %141, %145 : vector<8x8xf32>
    %cst_50 = arith.constant dense<0.000000e+00> : vector<8x8xf32>
    %147 = tpu.matmul %146, %131, %cst_50 {dimension_numbers = #tpu.dot_dimension_numbers<[1], [0], [0], [1], [0, 0, 1, 1], [], []>} : vector<8x8xf32>, vector<8x8xf32>, vector<8x8xf32> -> vector<8x8xf32>
    %c8_51 = arith.constant 8 : index
    %c16_52 = arith.constant 16 : index
    %148 = vector.load %arg33[%c8_51, %c16_52] : memref<16x32xf32, #tpu.memory_space<vmem>>, vector<8x8xf32>
    tpu.vector_store %arg33[%c8_51, %c16_52], %147 {strides = array<i32>} : memref<16x32xf32, #tpu.memory_space<vmem>>, vector<8x8xf32>,
    %149 = vector.extract_strided_slice %6 {offsets = [8, 24], sizes = [8, 8], strides = [1, 1]} : vector<16x96xf32> to vector<8x8xf32>
    %150 = vector.extract_strided_slice %6 {offsets = [8, 56], sizes = [8, 8], strides = [1, 1]} : vector<16x96xf32> to vector<8x8xf32>
    %151 = vector.extract_strided_slice %6 {offsets = [8, 88], sizes = [8, 8], strides = [1, 1]} : vector<16x96xf32> to vector<8x8xf32>
    %cst_53 = arith.constant dense<0.000000e+00> : vector<8x8xf32>
    %152 = tpu.matmul %149, %150, %cst_53 {dimension_numbers = #tpu.dot_dimension_numbers<[1], [1], [0], [0], [0, 0, 1, 0], [], []>} : vector<8x8xf32>, vector<8x8xf32>, vector<8x8xf32> -> vector<8x8xf32>
    %cst_54 = arith.constant 0.353553385 : f32
    %153 = vector.broadcast %cst_54 : f32 to vector<8x8xf32>
    %154 = arith.mulf %152, %153 : vector<8x8xf32>
    %155 = vector.broadcast %88 : vector<1x8xf32> to vector<8x8xf32>
    %156 = arith.addf %154, %155 : vector<8x8xf32>
    %cst_55 = arith.constant dense<0xFF800000> : vector<8xf32>
    %157 = vector.multi_reduction <maximumf>, %156, %cst_55 [1] : vector<8x8xf32> to vector<8xf32>
    %158 = vector.shape_cast %157 : vector<8xf32> to vector<8x1xf32>
    %159 = vector.broadcast %158 : vector<8x1xf32> to vector<8x8xf32>
    %160 = arith.subf %156, %159 : vector<8x8xf32>
    %161 = math.exp %160 : vector<8x8xf32>
    %cst_56 = arith.constant dense<0.000000e+00> : vector<8xf32>
    %162 = vector.multi_reduction <add>, %161, %cst_56 [1] : vector<8x8xf32> to vector<8xf32>
    %163 = vector.shape_cast %162 : vector<8xf32> to vector<8x1xf32>
    %164 = tpu.reciprocal %163 {approx = true} : vector<8x1xf32> -> vector<8x1xf32>
    %165 = vector.broadcast %164 : vector<8x1xf32> to vector<8x8xf32>
    %166 = arith.mulf %161, %165 : vector<8x8xf32>
    %cst_57 = arith.constant dense<0.000000e+00> : vector<8x8xf32>
    %167 = tpu.matmul %166, %151, %cst_57 {dimension_numbers = #tpu.dot_dimension_numbers<[1], [0], [0], [1], [0, 0, 1, 1], [], []>} : vector<8x8xf32>, vector<8x8xf32>, vector<8x8xf32> -> vector<8x8xf32>
    %c8_58 = arith.constant 8 : index
    %c24_59 = arith.constant 24 : index
    %168 = vector.load %arg33[%c8_58, %c24_59] : memref<16x32xf32, #tpu.memory_space<vmem>>, vector<8x8xf32>
    tpu.vector_store %arg33[%c8_58, %c24_59], %167 {strides = array<i32>} : memref<16x32xf32, #tpu.memory_space<vmem>>, vector<8x8xf32>,
    %c0_60 = arith.constant 0 : index
    %c0_61 = arith.constant 0 : index
    %169 = vector.load %arg33[%c0_60, %c0_61] : memref<16x32xf32, #tpu.memory_space<vmem>>, vector<16x32xf32>
    %c0_62 = arith.constant 0 : index
    %c0_63 = arith.constant 0 : index
    %170 = vector.load %arg4[%c0_62, %c0_63] : memref<32x32xf32, #tpu.memory_space<vmem>>, vector<32x32xf32>
    %cst_64 = arith.constant dense<0.000000e+00> : vector<16x32xf32>
    %171 = tpu.matmul %169, %170, %cst_64 {dimension_numbers = #tpu.dot_dimension_numbers<[1], [0], [0], [1], [0, 0, 1, 1], [], []>} : vector<16x32xf32>, vector<32x32xf32>, vector<16x32xf32> -> vector<16x32xf32>
    %c0_65 = arith.constant 0 : index
    %c0_66 = arith.constant 0 : index
    %172 = vector.load %arg5[%c0_65, %c0_66] : memref<1x32xf32, #tpu.memory_space<vmem>>, vector<1x32xf32>
    %173 = vector.broadcast %172 : vector<1x32xf32> to vector<16x32xf32>
    %174 = arith.addf %171, %173 : vector<16x32xf32>
    %175 = arith.addf %0, %174 : vector<16x32xf32>
    %c0_67 = arith.constant 0 : index
    %c0_68 = arith.constant 0 : index
    %176 = vector.load %arg6[%c0_67, %c0_68] : memref<1x32xf32, #tpu.memory_space<vmem>>, vector<1x32xf32>
    %c0_69 = arith.constant 0 : index
    %c0_70 = arith.constant 0 : index
    %177 = vector.load %arg7[%c0_69, %c0_70] : memref<1x32xf32, #tpu.memory_space<vmem>>, vector<1x32xf32>
    %cst_71 = arith.constant dense<0.000000e+00> : vector<16xf32>
    %178 = vector.multi_reduction <add>, %175, %cst_71 [1] : vector<16x32xf32> to vector<16xf32>
    %179 = vector.shape_cast %178 : vector<16xf32> to vector<16x1xf32>
    %cst_72 = arith.constant 3.200000e+01 : f32
    %180 = vector.broadcast %cst_72 : f32 to vector<16x1xf32>
    %181 = arith.divf %179, %180 : vector<16x1xf32>
    %182 = vector.broadcast %181 : vector<16x1xf32> to vector<16x32xf32>
    %183 = arith.subf %175, %182 : vector<16x32xf32>
    %184 = arith.mulf %183, %183 : vector<16x32xf32>
    %cst_73 = arith.constant dense<0.000000e+00> : vector<16xf32>
    %185 = vector.multi_reduction <add>, %184, %cst_73 [1] : vector<16x32xf32> to vector<16xf32>
    %186 = vector.shape_cast %185 : vector<16xf32> to vector<16x1xf32>
    %cst_74 = arith.constant 3.200000e+01 : f32
    %187 = vector.broadcast %cst_74 : f32 to vector<16x1xf32>
    %188 = arith.divf %186, %187 : vector<16x1xf32>
    %189 = vector.broadcast %181 : vector<16x1xf32> to vector<16x32xf32>
    %190 = arith.subf %175, %189 : vector<16x32xf32>
    %cst_75 = arith.constant 9.99999974E-6 : f32
    %191 = vector.broadcast %cst_75 : f32 to vector<16x1xf32>
    %192 = arith.addf %188, %191 : vector<16x1xf32>
    %193 = math.rsqrt %192 : vector<16x1xf32>
    %194 = vector.broadcast %193 : vector<16x1xf32> to vector<16x32xf32>
    %195 = arith.mulf %190, %194 : vector<16x32xf32>
    %196 = vector.broadcast %176 : vector<1x32xf32> to vector<16x32xf32>
    %197 = arith.mulf %195, %196 : vector<16x32xf32>
    %198 = vector.broadcast %177 : vector<1x32xf32> to vector<16x32xf32>
    %199 = arith.addf %197, %198 : vector<16x32xf32>
    %c0_76 = arith.constant 0 : index
    %c0_77 = arith.constant 0 : index
    %200 = vector.load %arg8[%c0_76, %c0_77] : memref<32x64xf32, #tpu.memory_space<vmem>>, vector<32x64xf32>
    %cst_78 = arith.constant dense<0.000000e+00> : vector<16x64xf32>
    %201 = tpu.matmul %199, %200, %cst_78 {dimension_numbers = #tpu.dot_dimension_numbers<[1], [0], [0], [1], [0, 0, 1, 1], [], []>} : vector<16x32xf32>, vector<32x64xf32>, vector<16x64xf32> -> vector<16x64xf32>
    %c0_79 = arith.constant 0 : index
    %c0_80 = arith.constant 0 : index
    %202 = vector.load %arg9[%c0_79, %c0_80] : memref<1x64xf32, #tpu.memory_space<vmem>>, vector<1x64xf32>
    %203 = vector.broadcast %202 : vector<1x64xf32> to vector<16x64xf32>
    %204 = arith.addf %201, %203 : vector<16x64xf32>
    %cst_81 = arith.constant 0.000000e+00 : f32
    %205 = vector.broadcast %cst_81 : f32 to vector<16x64xf32>
    %206 = arith.maximumf %204, %205 : vector<16x64xf32>
    %c0_82 = arith.constant 0 : index
    %c0_83 = arith.constant 0 : index
    %207 = vector.load %arg10[%c0_82, %c0_83] : memref<64x32xf32, #tpu.memory_space<vmem>>, vector<64x32xf32>
    %cst_84 = arith.constant dense<0.000000e+00> : vector<16x32xf32>
    %208 = tpu.matmul %206, %207, %cst_84 {dimension_numbers = #tpu.dot_dimension_numbers<[1], [0], [0], [1], [0, 0, 1, 1], [], []>} : vector<16x64xf32>, vector<64x32xf32>, vector<16x32xf32> -> vector<16x32xf32>
    %c0_85 = arith.constant 0 : index
    %c0_86 = arith.constant 0 : index
    %209 = vector.load %arg11[%c0_85, %c0_86] : memref<1x32xf32, #tpu.memory_space<vmem>>, vector<1x32xf32>
    %210 = vector.broadcast %209 : vector<1x32xf32> to vector<16x32xf32>
    %211 = arith.addf %208, %210 : vector<16x32xf32>
    %212 = arith.addf %199, %211 : vector<16x32xf32>
    %c0_87 = arith.constant 0 : index
    %c0_88 = arith.constant 0 : index
    %213 = vector.load %arg12[%c0_87, %c0_88] : memref<1x32xf32, #tpu.memory_space<vmem>>, vector<1x32xf32>
    %c0_89 = arith.constant 0 : index
    %c0_90 = arith.constant 0 : index
    %214 = vector.load %arg13[%c0_89, %c0_90] : memref<1x32xf32, #tpu.memory_space<vmem>>, vector<1x32xf32>
    %cst_91 = arith.constant dense<0.000000e+00> : vector<16xf32>
    %215 = vector.multi_reduction <add>, %212, %cst_91 [1] : vector<16x32xf32> to vector<16xf32>
    %216 = vector.shape_cast %215 : vector<16xf32> to vector<16x1xf32>
    %cst_92 = arith.constant 3.200000e+01 : f32
    %217 = vector.broadcast %cst_92 : f32 to vector<16x1xf32>
    %218 = arith.divf %216, %217 : vector<16x1xf32>
    %219 = vector.broadcast %218 : vector<16x1xf32> to vector<16x32xf32>
    %220 = arith.subf %212, %219 : vector<16x32xf32>
    %221 = arith.mulf %220, %220 : vector<16x32xf32>
    %cst_93 = arith.constant dense<0.000000e+00> : vector<16xf32>
    %222 = vector.multi_reduction <add>, %221, %cst_93 [1] : vector<16x32xf32> to vector<16xf32>
    %223 = vector.shape_cast %222 : vector<16xf32> to vector<16x1xf32>
    %cst_94 = arith.constant 3.200000e+01 : f32
    %224 = vector.broadcast %cst_94 : f32 to vector<16x1xf32>
    %225 = arith.divf %223, %224 : vector<16x1xf32>
    %226 = vector.broadcast %218 : vector<16x1xf32> to vector<16x32xf32>
    %227 = arith.subf %212, %226 : vector<16x32xf32>
    %cst_95 = arith.constant 9.99999974E-6 : f32
    %228 = vector.broadcast %cst_95 : f32 to vector<16x1xf32>
    %229 = arith.addf %225, %228 : vector<16x1xf32>
    %230 = math.rsqrt %229 : vector<16x1xf32>
    %231 = vector.broadcast %230 : vector<16x1xf32> to vector<16x32xf32>
    %232 = arith.mulf %227, %231 : vector<16x32xf32>
    %233 = vector.broadcast %213 : vector<1x32xf32> to vector<16x32xf32>
    %234 = arith.mulf %232, %233 : vector<16x32xf32>
    %235 = vector.broadcast %214 : vector<1x32xf32> to vector<16x32xf32>
    %236 = arith.addf %234, %235 : vector<16x32xf32>
    %c0_96 = arith.constant 0 : index
    %c0_97 = arith.constant 0 : index
    %237 = vector.load %arg14[%c0_96, %c0_97] : memref<32x96xf32, #tpu.memory_space<vmem>>, vector<32x96xf32>
    %cst_98 = arith.constant dense<0.000000e+00> : vector<16x96xf32>
    %238 = tpu.matmul %236, %237, %cst_98 {dimension_numbers = #tpu.dot_dimension_numbers<[1], [0], [0], [1], [0, 0, 1, 1], [], []>} : vector<16x32xf32>, vector<32x96xf32>, vector<16x96xf32> -> vector<16x96xf32>
    %c0_99 = arith.constant 0 : index
    %c0_100 = arith.constant 0 : index
    %239 = vector.load %arg15[%c0_99, %c0_100] : memref<1x96xf32, #tpu.memory_space<vmem>>, vector<1x96xf32>
    %240 = vector.broadcast %239 : vector<1x96xf32> to vector<16x96xf32>
    %241 = arith.addf %238, %240 : vector<16x96xf32>
    %242 = vector.extract_strided_slice %1 {offsets = [0, 0], sizes = [1, 8], strides = [1, 1]} : vector<2x8xf32> to vector<1x8xf32>
    %243 = vector.extract_strided_slice %241 {offsets = [0, 0], sizes = [8, 8], strides = [1, 1]} : vector<16x96xf32> to vector<8x8xf32>
    %244 = vector.extract_strided_slice %241 {offsets = [0, 32], sizes = [8, 8], strides = [1, 1]} : vector<16x96xf32> to vector<8x8xf32>
    %245 = vector.extract_strided_slice %241 {offsets = [0, 64], sizes = [8, 8], strides = [1, 1]} : vector<16x96xf32> to vector<8x8xf32>
    %cst_101 = arith.constant dense<0.000000e+00> : vector<8x8xf32>
    %246 = tpu.matmul %243, %244, %cst_101 {dimension_numbers = #tpu.dot_dimension_numbers<[1], [1], [0], [0], [0, 0, 1, 0], [], []>} : vector<8x8xf32>, vector<8x8xf32>, vector<8x8xf32> -> vector<8x8xf32>
    %cst_102 = arith.constant 0.353553385 : f32
    %247 = vector.broadcast %cst_102 : f32 to vector<8x8xf32>
    %248 = arith.mulf %246, %247 : vector<8x8xf32>
    %249 = vector.broadcast %242 : vector<1x8xf32> to vector<8x8xf32>
    %250 = arith.addf %248, %249 : vector<8x8xf32>
    %cst_103 = arith.constant dense<0xFF800000> : vector<8xf32>
    %251 = vector.multi_reduction <maximumf>, %250, %cst_103 [1] : vector<8x8xf32> to vector<8xf32>
    %252 = vector.shape_cast %251 : vector<8xf32> to vector<8x1xf32>
    %253 = vector.broadcast %252 : vector<8x1xf32> to vector<8x8xf32>
    %254 = arith.subf %250, %253 : vector<8x8xf32>
    %255 = math.exp %254 : vector<8x8xf32>
    %cst_104 = arith.constant dense<0.000000e+00> : vector<8xf32>
    %256 = vector.multi_reduction <add>, %255, %cst_104 [1] : vector<8x8xf32> to vector<8xf32>
    %257 = vector.shape_cast %256 : vector<8xf32> to vector<8x1xf32>
    %258 = tpu.reciprocal %257 {approx = true} : vector<8x1xf32> -> vector<8x1xf32>
    %259 = vector.broadcast %258 : vector<8x1xf32> to vector<8x8xf32>
    %260 = arith.mulf %255, %259 : vector<8x8xf32>
    %cst_105 = arith.constant dense<0.000000e+00> : vector<8x8xf32>
    %261 = tpu.matmul %260, %245, %cst_105 {dimension_numbers = #tpu.dot_dimension_numbers<[1], [0], [0], [1], [0, 0, 1, 1], [], []>} : vector<8x8xf32>, vector<8x8xf32>, vector<8x8xf32> -> vector<8x8xf32>
    %c0_106 = arith.constant 0 : index
    %c0_107 = arith.constant 0 : index
    %262 = vector.load %arg33[%c0_106, %c0_107] : memref<16x32xf32, #tpu.memory_space<vmem>>, vector<8x8xf32>
    tpu.vector_store %arg33[%c0_106, %c0_107], %261 {strides = array<i32>} : memref<16x32xf32, #tpu.memory_space<vmem>>, vector<8x8xf32>,
    %263 = vector.extract_strided_slice %241 {offsets = [0, 8], sizes = [8, 8], strides = [1, 1]} : vector<16x96xf32> to vector<8x8xf32>
    %264 = vector.extract_strided_slice %241 {offsets = [0, 40], sizes = [8, 8], strides = [1, 1]} : vector<16x96xf32> to vector<8x8xf32>
    %265 = vector.extract_strided_slice %241 {offsets = [0, 72], sizes = [8, 8], strides = [1, 1]} : vector<16x96xf32> to vector<8x8xf32>
    %cst_108 = arith.constant dense<0.000000e+00> : vector<8x8xf32>
    %266 = tpu.matmul %263, %264, %cst_108 {dimension_numbers = #tpu.dot_dimension_numbers<[1], [1], [0], [0], [0, 0, 1, 0], [], []>} : vector<8x8xf32>, vector<8x8xf32>, vector<8x8xf32> -> vector<8x8xf32>
    %cst_109 = arith.constant 0.353553385 : f32
    %267 = vector.broadcast %cst_109 : f32 to vector<8x8xf32>
    %268 = arith.mulf %266, %267 : vector<8x8xf32>
    %269 = vector.broadcast %242 : vector<1x8xf32> to vector<8x8xf32>
    %270 = arith.addf %268, %269 : vector<8x8xf32>
    %cst_110 = arith.constant dense<0xFF800000> : vector<8xf32>
    %271 = vector.multi_reduction <maximumf>, %270, %cst_110 [1] : vector<8x8xf32> to vector<8xf32>
    %272 = vector.shape_cast %271 : vector<8xf32> to vector<8x1xf32>
    %273 = vector.broadcast %272 : vector<8x1xf32> to vector<8x8xf32>
    %274 = arith.subf %270, %273 : vector<8x8xf32>
    %275 = math.exp %274 : vector<8x8xf32>
    %cst_111 = arith.constant dense<0.000000e+00> : vector<8xf32>
    %276 = vector.multi_reduction <add>, %275, %cst_111 [1] : vector<8x8xf32> to vector<8xf32>
    %277 = vector.shape_cast %276 : vector<8xf32> to vector<8x1xf32>
    %278 = tpu.reciprocal %277 {approx = true} : vector<8x1xf32> -> vector<8x1xf32>
    %279 = vector.broadcast %278 : vector<8x1xf32> to vector<8x8xf32>
    %280 = arith.mulf %275, %279 : vector<8x8xf32>
    %cst_112 = arith.constant dense<0.000000e+00> : vector<8x8xf32>
    %281 = tpu.matmul %280, %265, %cst_112 {dimension_numbers = #tpu.dot_dimension_numbers<[1], [0], [0], [1], [0, 0, 1, 1], [], []>} : vector<8x8xf32>, vector<8x8xf32>, vector<8x8xf32> -> vector<8x8xf32>
    %c0_113 = arith.constant 0 : index
    %c8_114 = arith.constant 8 : index
    %282 = vector.load %arg33[%c0_113, %c8_114] : memref<16x32xf32, #tpu.memory_space<vmem>>, vector<8x8xf32>
    tpu.vector_store %arg33[%c0_113, %c8_114], %281 {strides = array<i32>} : memref<16x32xf32, #tpu.memory_space<vmem>>, vector<8x8xf32>,
    %283 = vector.extract_strided_slice %241 {offsets = [0, 16], sizes = [8, 8], strides = [1, 1]} : vector<16x96xf32> to vector<8x8xf32>
    %284 = vector.extract_strided_slice %241 {offsets = [0, 48], sizes = [8, 8], strides = [1, 1]} : vector<16x96xf32> to vector<8x8xf32>
    %285 = vector.extract_strided_slice %241 {offsets = [0, 80], sizes = [8, 8], strides = [1, 1]} : vector<16x96xf32> to vector<8x8xf32>
    %cst_115 = arith.constant dense<0.000000e+00> : vector<8x8xf32>
    %286 = tpu.matmul %283, %284, %cst_115 {dimension_numbers = #tpu.dot_dimension_numbers<[1], [1], [0], [0], [0, 0, 1, 0], [], []>} : vector<8x8xf32>, vector<8x8xf32>, vector<8x8xf32> -> vector<8x8xf32>
    %cst_116 = arith.constant 0.353553385 : f32
    %287 = vector.broadcast %cst_116 : f32 to vector<8x8xf32>
    %288 = arith.mulf %286, %287 : vector<8x8xf32>
    %289 = vector.broadcast %242 : vector<1x8xf32> to vector<8x8xf32>
    %290 = arith.addf %288, %289 : vector<8x8xf32>
    %cst_117 = arith.constant dense<0xFF800000> : vector<8xf32>
    %291 = vector.multi_reduction <maximumf>, %290, %cst_117 [1] : vector<8x8xf32> to vector<8xf32>
    %292 = vector.shape_cast %291 : vector<8xf32> to vector<8x1xf32>
    %293 = vector.broadcast %292 : vector<8x1xf32> to vector<8x8xf32>
    %294 = arith.subf %290, %293 : vector<8x8xf32>
    %295 = math.exp %294 : vector<8x8xf32>
    %cst_118 = arith.constant dense<0.000000e+00> : vector<8xf32>
    %296 = vector.multi_reduction <add>, %295, %cst_118 [1] : vector<8x8xf32> to vector<8xf32>
    %297 = vector.shape_cast %296 : vector<8xf32> to vector<8x1xf32>
    %298 = tpu.reciprocal %297 {approx = true} : vector<8x1xf32> -> vector<8x1xf32>
    %299 = vector.broadcast %298 : vector<8x1xf32> to vector<8x8xf32>
    %300 = arith.mulf %295, %299 : vector<8x8xf32>
    %cst_119 = arith.constant dense<0.000000e+00> : vector<8x8xf32>
    %301 = tpu.matmul %300, %285, %cst_119 {dimension_numbers = #tpu.dot_dimension_numbers<[1], [0], [0], [1], [0, 0, 1, 1], [], []>} : vector<8x8xf32>, vector<8x8xf32>, vector<8x8xf32> -> vector<8x8xf32>
    %c0_120 = arith.constant 0 : index
    %c16_121 = arith.constant 16 : index
    %302 = vector.load %arg33[%c0_120, %c16_121] : memref<16x32xf32, #tpu.memory_space<vmem>>, vector<8x8xf32>
    tpu.vector_store %arg33[%c0_120, %c16_121], %301 {strides = array<i32>} : memref<16x32xf32, #tpu.memory_space<vmem>>, vector<8x8xf32>,
    %303 = vector.extract_strided_slice %241 {offsets = [0, 24], sizes = [8, 8], strides = [1, 1]} : vector<16x96xf32> to vector<8x8xf32>
    %304 = vector.extract_strided_slice %241 {offsets = [0, 56], sizes = [8, 8], strides = [1, 1]} : vector<16x96xf32> to vector<8x8xf32>
    %305 = vector.extract_strided_slice %241 {offsets = [0, 88], sizes = [8, 8], strides = [1, 1]} : vector<16x96xf32> to vector<8x8xf32>
    %cst_122 = arith.constant dense<0.000000e+00> : vector<8x8xf32>
    %306 = tpu.matmul %303, %304, %cst_122 {dimension_numbers = #tpu.dot_dimension_numbers<[1], [1], [0], [0], [0, 0, 1, 0], [], []>} : vector<8x8xf32>, vector<8x8xf32>, vector<8x8xf32> -> vector<8x8xf32>
    %cst_123 = arith.constant 0.353553385 : f32
    %307 = vector.broadcast %cst_123 : f32 to vector<8x8xf32>
    %308 = arith.mulf %306, %307 : vector<8x8xf32>
    %309 = vector.broadcast %242 : vector<1x8xf32> to vector<8x8xf32>
    %310 = arith.addf %308, %309 : vector<8x8xf32>
    %cst_124 = arith.constant dense<0xFF800000> : vector<8xf32>
    %311 = vector.multi_reduction <maximumf>, %310, %cst_124 [1] : vector<8x8xf32> to vector<8xf32>
    %312 = vector.shape_cast %311 : vector<8xf32> to vector<8x1xf32>
    %313 = vector.broadcast %312 : vector<8x1xf32> to vector<8x8xf32>
    %314 = arith.subf %310, %313 : vector<8x8xf32>
    %315 = math.exp %314 : vector<8x8xf32>
    %cst_125 = arith.constant dense<0.000000e+00> : vector<8xf32>
    %316 = vector.multi_reduction <add>, %315, %cst_125 [1] : vector<8x8xf32> to vector<8xf32>
    %317 = vector.shape_cast %316 : vector<8xf32> to vector<8x1xf32>
    %318 = tpu.reciprocal %317 {approx = true} : vector<8x1xf32> -> vector<8x1xf32>
    %319 = vector.broadcast %318 : vector<8x1xf32> to vector<8x8xf32>
    %320 = arith.mulf %315, %319 : vector<8x8xf32>
    %cst_126 = arith.constant dense<0.000000e+00> : vector<8x8xf32>
    %321 = tpu.matmul %320, %305, %cst_126 {dimension_numbers = #tpu.dot_dimension_numbers<[1], [0], [0], [1], [0, 0, 1, 1], [], []>} : vector<8x8xf32>, vector<8x8xf32>, vector<8x8xf32> -> vector<8x8xf32>
    %c0_127 = arith.constant 0 : index
    %c24_128 = arith.constant 24 : index
    %322 = vector.load %arg33[%c0_127, %c24_128] : memref<16x32xf32, #tpu.memory_space<vmem>>, vector<8x8xf32>
    tpu.vector_store %arg33[%c0_127, %c24_128], %321 {strides = array<i32>} : memref<16x32xf32, #tpu.memory_space<vmem>>, vector<8x8xf32>,
    %323 = vector.extract_strided_slice %1 {offsets = [1, 0], sizes = [1, 8], strides = [1, 1]} : vector<2x8xf32> to vector<1x8xf32>
    %324 = vector.extract_strided_slice %241 {offsets = [8, 0], sizes = [8, 8], strides = [1, 1]} : vector<16x96xf32> to vector<8x8xf32>
    %325 = vector.extract_strided_slice %241 {offsets = [8, 32], sizes = [8, 8], strides = [1, 1]} : vector<16x96xf32> to vector<8x8xf32>
    %326 = vector.extract_strided_slice %241 {offsets = [8, 64], sizes = [8, 8], strides = [1, 1]} : vector<16x96xf32> to vector<8x8xf32>
    %cst_129 = arith.constant dense<0.000000e+00> : vector<8x8xf32>
    %327 = tpu.matmul %324, %325, %cst_129 {dimension_numbers = #tpu.dot_dimension_numbers<[1], [1], [0], [0], [0, 0, 1, 0], [], []>} : vector<8x8xf32>, vector<8x8xf32>, vector<8x8xf32> -> vector<8x8xf32>
    %cst_130 = arith.constant 0.353553385 : f32
    %328 = vector.broadcast %cst_130 : f32 to vector<8x8xf32>
    %329 = arith.mulf %327, %328 : vector<8x8xf32>
    %330 = vector.broadcast %323 : vector<1x8xf32> to vector<8x8xf32>
    %331 = arith.addf %329, %330 : vector<8x8xf32>
    %cst_131 = arith.constant dense<0xFF800000> : vector<8xf32>
    %332 = vector.multi_reduction <maximumf>, %331, %cst_131 [1] : vector<8x8xf32> to vector<8xf32>
    %333 = vector.shape_cast %332 : vector<8xf32> to vector<8x1xf32>
    %334 = vector.broadcast %333 : vector<8x1xf32> to vector<8x8xf32>
    %335 = arith.subf %331, %334 : vector<8x8xf32>
    %336 = math.exp %335 : vector<8x8xf32>
    %cst_132 = arith.constant dense<0.000000e+00> : vector<8xf32>
    %337 = vector.multi_reduction <add>, %336, %cst_132 [1] : vector<8x8xf32> to vector<8xf32>
    %338 = vector.shape_cast %337 : vector<8xf32> to vector<8x1xf32>
    %339 = tpu.reciprocal %338 {approx = true} : vector<8x1xf32> -> vector<8x1xf32>
    %340 = vector.broadcast %339 : vector<8x1xf32> to vector<8x8xf32>
    %341 = arith.mulf %336, %340 : vector<8x8xf32>
    %cst_133 = arith.constant dense<0.000000e+00> : vector<8x8xf32>
    %342 = tpu.matmul %341, %326, %cst_133 {dimension_numbers = #tpu.dot_dimension_numbers<[1], [0], [0], [1], [0, 0, 1, 1], [], []>} : vector<8x8xf32>, vector<8x8xf32>, vector<8x8xf32> -> vector<8x8xf32>
    %c8_134 = arith.constant 8 : index
    %c0_135 = arith.constant 0 : index
    %343 = vector.load %arg33[%c8_134, %c0_135] : memref<16x32xf32, #tpu.memory_space<vmem>>, vector<8x8xf32>
    tpu.vector_store %arg33[%c8_134, %c0_135], %342 {strides = array<i32>} : memref<16x32xf32, #tpu.memory_space<vmem>>, vector<8x8xf32>,
    %344 = vector.extract_strided_slice %241 {offsets = [8, 8], sizes = [8, 8], strides = [1, 1]} : vector<16x96xf32> to vector<8x8xf32>
    %345 = vector.extract_strided_slice %241 {offsets = [8, 40], sizes = [8, 8], strides = [1, 1]} : vector<16x96xf32> to vector<8x8xf32>
    %346 = vector.extract_strided_slice %241 {offsets = [8, 72], sizes = [8, 8], strides = [1, 1]} : vector<16x96xf32> to vector<8x8xf32>
    %cst_136 = arith.constant dense<0.000000e+00> : vector<8x8xf32>
    %347 = tpu.matmul %344, %345, %cst_136 {dimension_numbers = #tpu.dot_dimension_numbers<[1], [1], [0], [0], [0, 0, 1, 0], [], []>} : vector<8x8xf32>, vector<8x8xf32>, vector<8x8xf32> -> vector<8x8xf32>
    %cst_137 = arith.constant 0.353553385 : f32
    %348 = vector.broadcast %cst_137 : f32 to vector<8x8xf32>
    %349 = arith.mulf %347, %348 : vector<8x8xf32>
    %350 = vector.broadcast %323 : vector<1x8xf32> to vector<8x8xf32>
    %351 = arith.addf %349, %350 : vector<8x8xf32>
    %cst_138 = arith.constant dense<0xFF800000> : vector<8xf32>
    %352 = vector.multi_reduction <maximumf>, %351, %cst_138 [1] : vector<8x8xf32> to vector<8xf32>
    %353 = vector.shape_cast %352 : vector<8xf32> to vector<8x1xf32>
    %354 = vector.broadcast %353 : vector<8x1xf32> to vector<8x8xf32>
    %355 = arith.subf %351, %354 : vector<8x8xf32>
    %356 = math.exp %355 : vector<8x8xf32>
    %cst_139 = arith.constant dense<0.000000e+00> : vector<8xf32>
    %357 = vector.multi_reduction <add>, %356, %cst_139 [1] : vector<8x8xf32> to vector<8xf32>
    %358 = vector.shape_cast %357 : vector<8xf32> to vector<8x1xf32>
    %359 = tpu.reciprocal %358 {approx = true} : vector<8x1xf32> -> vector<8x1xf32>
    %360 = vector.broadcast %359 : vector<8x1xf32> to vector<8x8xf32>
    %361 = arith.mulf %356, %360 : vector<8x8xf32>
    %cst_140 = arith.constant dense<0.000000e+00> : vector<8x8xf32>
    %362 = tpu.matmul %361, %346, %cst_140 {dimension_numbers = #tpu.dot_dimension_numbers<[1], [0], [0], [1], [0, 0, 1, 1], [], []>} : vector<8x8xf32>, vector<8x8xf32>, vector<8x8xf32> -> vector<8x8xf32>
    %c8_141 = arith.constant 8 : index
    %c8_142 = arith.constant 8 : index
    %363 = vector.load %arg33[%c8_141, %c8_142] : memref<16x32xf32, #tpu.memory_space<vmem>>, vector<8x8xf32>
    tpu.vector_store %arg33[%c8_141, %c8_142], %362 {strides = array<i32>} : memref<16x32xf32, #tpu.memory_space<vmem>>, vector<8x8xf32>,
    %364 = vector.extract_strided_slice %241 {offsets = [8, 16], sizes = [8, 8], strides = [1, 1]} : vector<16x96xf32> to vector<8x8xf32>
    %365 = vector.extract_strided_slice %241 {offsets = [8, 48], sizes = [8, 8], strides = [1, 1]} : vector<16x96xf32> to vector<8x8xf32>
    %366 = vector.extract_strided_slice %241 {offsets = [8, 80], sizes = [8, 8], strides = [1, 1]} : vector<16x96xf32> to vector<8x8xf32>
    %cst_143 = arith.constant dense<0.000000e+00> : vector<8x8xf32>
    %367 = tpu.matmul %364, %365, %cst_143 {dimension_numbers = #tpu.dot_dimension_numbers<[1], [1], [0], [0], [0, 0, 1, 0], [], []>} : vector<8x8xf32>, vector<8x8xf32>, vector<8x8xf32> -> vector<8x8xf32>
    %cst_144 = arith.constant 0.353553385 : f32
    %368 = vector.broadcast %cst_144 : f32 to vector<8x8xf32>
    %369 = arith.mulf %367, %368 : vector<8x8xf32>
    %370 = vector.broadcast %323 : vector<1x8xf32> to vector<8x8xf32>
    %371 = arith.addf %369, %370 : vector<8x8xf32>
    %cst_145 = arith.constant dense<0xFF800000> : vector<8xf32>
    %372 = vector.multi_reduction <maximumf>, %371, %cst_145 [1] : vector<8x8xf32> to vector<8xf32>
    %373 = vector.shape_cast %372 : vector<8xf32> to vector<8x1xf32>
    %374 = vector.broadcast %373 : vector<8x1xf32> to vector<8x8xf32>
    %375 = arith.subf %371, %374 : vector<8x8xf32>
    %376 = math.exp %375 : vector<8x8xf32>
    %cst_146 = arith.constant dense<0.000000e+00> : vector<8xf32>
    %377 = vector.multi_reduction <add>, %376, %cst_146 [1] : vector<8x8xf32> to vector<8xf32>
    %378 = vector.shape_cast %377 : vector<8xf32> to vector<8x1xf32>
    %379 = tpu.reciprocal %378 {approx = true} : vector<8x1xf32> -> vector<8x1xf32>
    %380 = vector.broadcast %379 : vector<8x1xf32> to vector<8x8xf32>
    %381 = arith.mulf %376, %380 : vector<8x8xf32>
    %cst_147 = arith.constant dense<0.000000e+00> : vector<8x8xf32>
    %382 = tpu.matmul %381, %366, %cst_147 {dimension_numbers = #tpu.dot_dimension_numbers<[1], [0], [0], [1], [0, 0, 1, 1], [], []>} : vector<8x8xf32>, vector<8x8xf32>, vector<8x8xf32> -> vector<8x8xf32>
    %c8_148 = arith.constant 8 : index
    %c16_149 = arith.constant 16 : index
    %383 = vector.load %arg33[%c8_148, %c16_149] : memref<16x32xf32, #tpu.memory_space<vmem>>, vector<8x8xf32>
    tpu.vector_store %arg33[%c8_148, %c16_149], %382 {strides = array<i32>} : memref<16x32xf32, #tpu.memory_space<vmem>>, vector<8x8xf32>,
    %384 = vector.extract_strided_slice %241 {offsets = [8, 24], sizes = [8, 8], strides = [1, 1]} : vector<16x96xf32> to vector<8x8xf32>
    %385 = vector.extract_strided_slice %241 {offsets = [8, 56], sizes = [8, 8], strides = [1, 1]} : vector<16x96xf32> to vector<8x8xf32>
    %386 = vector.extract_strided_slice %241 {offsets = [8, 88], sizes = [8, 8], strides = [1, 1]} : vector<16x96xf32> to vector<8x8xf32>
    %cst_150 = arith.constant dense<0.000000e+00> : vector<8x8xf32>
    %387 = tpu.matmul %384, %385, %cst_150 {dimension_numbers = #tpu.dot_dimension_numbers<[1], [1], [0], [0], [0, 0, 1, 0], [], []>} : vector<8x8xf32>, vector<8x8xf32>, vector<8x8xf32> -> vector<8x8xf32>
    %cst_151 = arith.constant 0.353553385 : f32
    %388 = vector.broadcast %cst_151 : f32 to vector<8x8xf32>
    %389 = arith.mulf %387, %388 : vector<8x8xf32>
    %390 = vector.broadcast %323 : vector<1x8xf32> to vector<8x8xf32>
    %391 = arith.addf %389, %390 : vector<8x8xf32>
    %cst_152 = arith.constant dense<0xFF800000> : vector<8xf32>
    %392 = vector.multi_reduction <maximumf>, %391, %cst_152 [1] : vector<8x8xf32> to vector<8xf32>
    %393 = vector.shape_cast %392 : vector<8xf32> to vector<8x1xf32>
    %394 = vector.broadcast %393 : vector<8x1xf32> to vector<8x8xf32>
    %395 = arith.subf %391, %394 : vector<8x8xf32>
    %396 = math.exp %395 : vector<8x8xf32>
    %cst_153 = arith.constant dense<0.000000e+00> : vector<8xf32>
    %397 = vector.multi_reduction <add>, %396, %cst_153 [1] : vector<8x8xf32> to vector<8xf32>
    %398 = vector.shape_cast %397 : vector<8xf32> to vector<8x1xf32>
    %399 = tpu.reciprocal %398 {approx = true} : vector<8x1xf32> -> vector<8x1xf32>
    %400 = vector.broadcast %399 : vector<8x1xf32> to vector<8x8xf32>
    %401 = arith.mulf %396, %400 : vector<8x8xf32>
    %cst_154 = arith.constant dense<0.000000e+00> : vector<8x8xf32>
    %402 = tpu.matmul %401, %386, %cst_154 {dimension_numbers = #tpu.dot_dimension_numbers<[1], [0], [0], [1], [0, 0, 1, 1], [], []>} : vector<8x8xf32>, vector<8x8xf32>, vector<8x8xf32> -> vector<8x8xf32>
    %c8_155 = arith.constant 8 : index
    %c24_156 = arith.constant 24 : index
    %403 = vector.load %arg33[%c8_155, %c24_156] : memref<16x32xf32, #tpu.memory_space<vmem>>, vector<8x8xf32>
    tpu.vector_store %arg33[%c8_155, %c24_156], %402 {strides = array<i32>} : memref<16x32xf32, #tpu.memory_space<vmem>>, vector<8x8xf32>,
    %c0_157 = arith.constant 0 : index
    %c0_158 = arith.constant 0 : index
    %404 = vector.load %arg33[%c0_157, %c0_158] : memref<16x32xf32, #tpu.memory_space<vmem>>, vector<16x32xf32>
    %c0_159 = arith.constant 0 : index
    %c0_160 = arith.constant 0 : index
    %405 = vector.load %arg16[%c0_159, %c0_160] : memref<32x32xf32, #tpu.memory_space<vmem>>, vector<32x32xf32>
    %cst_161 = arith.constant dense<0.000000e+00> : vector<16x32xf32>
    %406 = tpu.matmul %404, %405, %cst_161 {dimension_numbers = #tpu.dot_dimension_numbers<[1], [0], [0], [1], [0, 0, 1, 1], [], []>} : vector<16x32xf32>, vector<32x32xf32>, vector<16x32xf32> -> vector<16x32xf32>
    %c0_162 = arith.constant 0 : index
    %c0_163 = arith.constant 0 : index
    %407 = vector.load %arg17[%c0_162, %c0_163] : memref<1x32xf32, #tpu.memory_space<vmem>>, vector<1x32xf32>
    %408 = vector.broadcast %407 : vector<1x32xf32> to vector<16x32xf32>
    %409 = arith.addf %406, %408 : vector<16x32xf32>
    %410 = arith.addf %236, %409 : vector<16x32xf32>
    %c0_164 = arith.constant 0 : index
    %c0_165 = arith.constant 0 : index
    %411 = vector.load %arg18[%c0_164, %c0_165] : memref<1x32xf32, #tpu.memory_space<vmem>>, vector<1x32xf32>
    %c0_166 = arith.constant 0 : index
    %c0_167 = arith.constant 0 : index
    %412 = vector.load %arg19[%c0_166, %c0_167] : memref<1x32xf32, #tpu.memory_space<vmem>>, vector<1x32xf32>
    %cst_168 = arith.constant dense<0.000000e+00> : vector<16xf32>
    %413 = vector.multi_reduction <add>, %410, %cst_168 [1] : vector<16x32xf32> to vector<16xf32>
    %414 = vector.shape_cast %413 : vector<16xf32> to vector<16x1xf32>
    %cst_169 = arith.constant 3.200000e+01 : f32
    %415 = vector.broadcast %cst_169 : f32 to vector<16x1xf32>
    %416 = arith.divf %414, %415 : vector<16x1xf32>
    %417 = vector.broadcast %416 : vector<16x1xf32> to vector<16x32xf32>
    %418 = arith.subf %410, %417 : vector<16x32xf32>
    %419 = arith.mulf %418, %418 : vector<16x32xf32>
    %cst_170 = arith.constant dense<0.000000e+00> : vector<16xf32>
    %420 = vector.multi_reduction <add>, %419, %cst_170 [1] : vector<16x32xf32> to vector<16xf32>
    %421 = vector.shape_cast %420 : vector<16xf32> to vector<16x1xf32>
    %cst_171 = arith.constant 3.200000e+01 : f32
    %422 = vector.broadcast %cst_171 : f32 to vector<16x1xf32>
    %423 = arith.divf %421, %422 : vector<16x1xf32>
    %424 = vector.broadcast %416 : vector<16x1xf32> to vector<16x32xf32>
    %425 = arith.subf %410, %424 : vector<16x32xf32>
    %cst_172 = arith.constant 9.99999974E-6 : f32
    %426 = vector.broadcast %cst_172 : f32 to vector<16x1xf32>
    %427 = arith.addf %423, %426 : vector<16x1xf32>
    %428 = math.rsqrt %427 : vector<16x1xf32>
    %429 = vector.broadcast %428 : vector<16x1xf32> to vector<16x32xf32>
    %430 = arith.mulf %425, %429 : vector<16x32xf32>
    %431 = vector.broadcast %411 : vector<1x32xf32> to vector<16x32xf32>
    %432 = arith.mulf %430, %431 : vector<16x32xf32>
    %433 = vector.broadcast %412 : vector<1x32xf32> to vector<16x32xf32>
    %434 = arith.addf %432, %433 : vector<16x32xf32>
    %c0_173 = arith.constant 0 : index
    %c0_174 = arith.constant 0 : index
    %435 = vector.load %arg20[%c0_173, %c0_174] : memref<32x64xf32, #tpu.memory_space<vmem>>, vector<32x64xf32>
    %cst_175 = arith.constant dense<0.000000e+00> : vector<16x64xf32>
    %436 = tpu.matmul %434, %435, %cst_175 {dimension_numbers = #tpu.dot_dimension_numbers<[1], [0], [0], [1], [0, 0, 1, 1], [], []>} : vector<16x32xf32>, vector<32x64xf32>, vector<16x64xf32> -> vector<16x64xf32>
    %c0_176 = arith.constant 0 : index
    %c0_177 = arith.constant 0 : index
    %437 = vector.load %arg21[%c0_176, %c0_177] : memref<1x64xf32, #tpu.memory_space<vmem>>, vector<1x64xf32>
    %438 = vector.broadcast %437 : vector<1x64xf32> to vector<16x64xf32>
    %439 = arith.addf %436, %438 : vector<16x64xf32>
    %cst_178 = arith.constant 0.000000e+00 : f32
    %440 = vector.broadcast %cst_178 : f32 to vector<16x64xf32>
    %441 = arith.maximumf %439, %440 : vector<16x64xf32>
    %c0_179 = arith.constant 0 : index
    %c0_180 = arith.constant 0 : index
    %442 = vector.load %arg22[%c0_179, %c0_180] : memref<64x32xf32, #tpu.memory_space<vmem>>, vector<64x32xf32>
    %cst_181 = arith.constant dense<0.000000e+00> : vector<16x32xf32>
    %443 = tpu.matmul %441, %442, %cst_181 {dimension_numbers = #tpu.dot_dimension_numbers<[1], [0], [0], [1], [0, 0, 1, 1], [], []>} : vector<16x64xf32>, vector<64x32xf32>, vector<16x32xf32> -> vector<16x32xf32>
    %c0_182 = arith.constant 0 : index
    %c0_183 = arith.constant 0 : index
    %444 = vector.load %arg23[%c0_182, %c0_183] : memref<1x32xf32, #tpu.memory_space<vmem>>, vector<1x32xf32>
    %445 = vector.broadcast %444 : vector<1x32xf32> to vector<16x32xf32>
    %446 = arith.addf %443, %445 : vector<16x32xf32>
    %447 = arith.addf %434, %446 : vector<16x32xf32>
    %c0_184 = arith.constant 0 : index
    %c0_185 = arith.constant 0 : index
    %448 = vector.load %arg24[%c0_184, %c0_185] : memref<1x32xf32, #tpu.memory_space<vmem>>, vector<1x32xf32>
    %c0_186 = arith.constant 0 : index
    %c0_187 = arith.constant 0 : index
    %449 = vector.load %arg25[%c0_186, %c0_187] : memref<1x32xf32, #tpu.memory_space<vmem>>, vector<1x32xf32>
    %cst_188 = arith.constant dense<0.000000e+00> : vector<16xf32>
    %450 = vector.multi_reduction <add>, %447, %cst_188 [1] : vector<16x32xf32> to vector<16xf32>
    %451 = vector.shape_cast %450 : vector<16xf32> to vector<16x1xf32>
    %cst_189 = arith.constant 3.200000e+01 : f32
    %452 = vector.broadcast %cst_189 : f32 to vector<16x1xf32>
    %453 = arith.divf %451, %452 : vector<16x1xf32>
    %454 = vector.broadcast %453 : vector<16x1xf32> to vector<16x32xf32>
    %455 = arith.subf %447, %454 : vector<16x32xf32>
    %456 = arith.mulf %455, %455 : vector<16x32xf32>
    %cst_190 = arith.constant dense<0.000000e+00> : vector<16xf32>
    %457 = vector.multi_reduction <add>, %456, %cst_190 [1] : vector<16x32xf32> to vector<16xf32>
    %458 = vector.shape_cast %457 : vector<16xf32> to vector<16x1xf32>
    %cst_191 = arith.constant 3.200000e+01 : f32
    %459 = vector.broadcast %cst_191 : f32 to vector<16x1xf32>
    %460 = arith.divf %458, %459 : vector<16x1xf32>
    %461 = vector.broadcast %453 : vector<16x1xf32> to vector<16x32xf32>
    %462 = arith.subf %447, %461 : vector<16x32xf32>
    %cst_192 = arith.constant 9.99999974E-6 : f32
    %463 = vector.broadcast %cst_192 : f32 to vector<16x1xf32>
    %464 = arith.addf %460, %463 : vector<16x1xf32>
    %465 = math.rsqrt %464 : vector<16x1xf32>
    %466 = vector.broadcast %465 : vector<16x1xf32> to vector<16x32xf32>
    %467 = arith.mulf %462, %466 : vector<16x32xf32>
    %468 = vector.broadcast %448 : vector<1x32xf32> to vector<16x32xf32>
    %469 = arith.mulf %467, %468 : vector<16x32xf32>
    %470 = vector.broadcast %449 : vector<1x32xf32> to vector<16x32xf32>
    %471 = arith.addf %469, %470 : vector<16x32xf32>
    %c0_193 = arith.constant 0 : index
    %c0_194 = arith.constant 0 : index
    %472 = vector.load %arg26[%c0_193, %c0_194] : memref<32x32xf32, #tpu.memory_space<vmem>>, vector<32x32xf32>
    %cst_195 = arith.constant dense<0.000000e+00> : vector<16x32xf32>
    %473 = tpu.matmul %471, %472, %cst_195 {dimension_numbers = #tpu.dot_dimension_numbers<[1], [0], [0], [1], [0, 0, 1, 1], [], []>} : vector<16x32xf32>, vector<32x32xf32>, vector<16x32xf32> -> vector<16x32xf32>
    %c0_196 = arith.constant 0 : index
    %c0_197 = arith.constant 0 : index
    %474 = vector.load %arg27[%c0_196, %c0_197] : memref<1x32xf32, #tpu.memory_space<vmem>>, vector<1x32xf32>
    %475 = vector.broadcast %474 : vector<1x32xf32> to vector<16x32xf32>
    %476 = arith.addf %473, %475 : vector<16x32xf32>
    %cst_198 = arith.constant 0.000000e+00 : f32
    %477 = vector.broadcast %cst_198 : f32 to vector<16x32xf32>
    %478 = arith.maximumf %476, %477 : vector<16x32xf32>
    %c0_199 = arith.constant 0 : index
    %c0_200 = arith.constant 0 : index
    %479 = vector.load %arg28[%c0_199, %c0_200] : memref<32x64xf32, #tpu.memory_space<vmem>>, vector<32x64xf32>
    %cst_201 = arith.constant dense<0.000000e+00> : vector<16x64xf32>
    %480 = tpu.matmul %478, %479, %cst_201 {dimension_numbers = #tpu.dot_dimension_numbers<[1], [0], [0], [1], [0, 0, 1, 1], [], []>} : vector<16x32xf32>, vector<32x64xf32>, vector<16x64xf32> -> vector<16x64xf32>
    %c0_202 = arith.constant 0 : index
    %c0_203 = arith.constant 0 : index
    %481 = vector.load %arg29[%c0_202, %c0_203] : memref<1x64xf32, #tpu.memory_space<vmem>>, vector<1x64xf32>
    %482 = vector.broadcast %481 : vector<1x64xf32> to vector<16x64xf32>
    %483 = arith.addf %480, %482 : vector<16x64xf32>
    %c0_204 = arith.constant 0 : index
    %c0_205 = arith.constant 0 : index
    %484 = vector.load %arg30[%c0_204, %c0_205] : memref<64x4xf32, #tpu.memory_space<vmem>>, vector<64x4xf32>
    %cst_206 = arith.constant dense<0.000000e+00> : vector<16x4xf32>
    %485 = tpu.matmul %483, %484, %cst_206 {dimension_numbers = #tpu.dot_dimension_numbers<[1], [0], [0], [1], [0, 0, 1, 1], [], []>} : vector<16x64xf32>, vector<64x4xf32>, vector<16x4xf32> -> vector<16x4xf32>
    %c0_207 = arith.constant 0 : index
    %c0_208 = arith.constant 0 : index
    %486 = vector.load %arg31[%c0_207, %c0_208] : memref<1x4xf32, #tpu.memory_space<vmem>>, vector<1x4xf32>
    %487 = vector.broadcast %486 : vector<1x4xf32> to vector<16x4xf32>
    %488 = arith.addf %485, %487 : vector<16x4xf32>
    %489 = vector.extract_strided_slice %488 {offsets = [0, 0], sizes = [1, 4], strides = [1, 1]} : vector<16x4xf32> to vector<1x4xf32>
    %c0_209 = arith.constant 0 : index
    %c0_210 = arith.constant 0 : index
    %490 = vector.load %arg32[%c0_209, %c0_210] : memref<2x4xf32, #tpu.memory_space<vmem>>, vector<1x4xf32>
    tpu.vector_store %arg32[%c0_209, %c0_210], %489 {strides = array<i32>} : memref<2x4xf32, #tpu.memory_space<vmem>>, vector<1x4xf32>,
    %491 = vector.extract_strided_slice %488 {offsets = [8, 0], sizes = [1, 4], strides = [1, 1]} : vector<16x4xf32> to vector<1x4xf32>
    %c1 = arith.constant 1 : index
    %c0_211 = arith.constant 0 : index
    %492 = vector.load %arg32[%c1, %c0_211] : memref<2x4xf32, #tpu.memory_space<vmem>>, vector<1x4xf32>
    tpu.vector_store %arg32[%c1, %c0_211], %491 {strides = array<i32>} : memref<2x4xf32, #tpu.memory_space<vmem>>, vector<1x4xf32>,
    return
  }
}

</mosaic_0001>

<llo_original>
// kernel: model_forward.1
$region0: #{model_forward.1}
  #allocation0 [shape = 'u32[]', space=smem, size = 0x4, offset = 0x4, fixed_abs, tag = 'smem constant byte address 0x4 - core index']
  #allocation1 [shape = 'u32[72,128]{1,0:T(1,128)}', space=vmem, size = 0x9000, scoped, tag = 'internal scratch']
  #allocation2 [shape = 'f32[16,32]{1,0:T(8,128)}', space=vmem, size = 0x2000, scoped, tag = 'scratch operand']
  %s0 = inlined_call_operand.smem [shape: u32[33], index: -1, kind: input, shape index: {}]
  %s1 = sld [smem:[%s0]]
  %s2 = scalar_lea.smem %s0, 1
  %s3 = sld [smem:[%s2]]
  %s4 = scalar_lea.smem %s0, 2
  %s5 = sld [smem:[%s4]]
  %s6 = scalar_lea.smem %s0, 3
  %s7 = sld [smem:[%s6]]
  %s8 = scalar_lea.smem %s0, 4
  %s9 = sld [smem:[%s8]]
  %s10 = scalar_lea.smem %s0, 5
  %s11 = sld [smem:[%s10]]
  %s12 = scalar_lea.smem %s0, 6
  %s13 = sld [smem:[%s12]]
  %s14 = scalar_lea.smem %s0, 7
  %s15 = sld [smem:[%s14]]
  %s16 = scalar_lea.smem %s0, 8
  %s17 = sld [smem:[%s16]]
  %s18 = scalar_lea.smem %s0, 9
  %s19 = sld [smem:[%s18]]
  %s20 = scalar_lea.smem %s0, 10
  %s21 = sld [smem:[%s20]]
  %s22 = scalar_lea.smem %s0, 11
  %s23 = sld [smem:[%s22]]
  %s24 = scalar_lea.smem %s0, 12
  %s25 = sld [smem:[%s24]]
  %s26 = scalar_lea.smem %s0, 13
  %s27 = sld [smem:[%s26]]
  %s28 = scalar_lea.smem %s0, 14
  %s29 = sld [smem:[%s28]]
  %s30 = scalar_lea.smem %s0, 15
  %s31 = sld [smem:[%s30]]
  %s32 = scalar_lea.smem %s0, 16
  %s33 = sld [smem:[%s32]]
  %s34 = scalar_lea.smem %s0, 17
  %s35 = sld [smem:[%s34]]
  %s36 = scalar_lea.smem %s0, 18
  %s37 = sld [smem:[%s36]]
  %s38 = scalar_lea.smem %s0, 19
  %s39 = sld [smem:[%s38]]
  %s40 = scalar_lea.smem %s0, 20
  %s41 = sld [smem:[%s40]]
  %s42 = scalar_lea.smem %s0, 21
  %s43 = sld [smem:[%s42]]
  %s44 = scalar_lea.smem %s0, 22
  %s45 = sld [smem:[%s44]]
  %s46 = scalar_lea.smem %s0, 23
  %s47 = sld [smem:[%s46]]
  %s48 = scalar_lea.smem %s0, 24
  %s49 = sld [smem:[%s48]]
  %s50 = scalar_lea.smem %s0, 25
  %s51 = sld [smem:[%s50]]
  %s52 = scalar_lea.smem %s0, 26
  %s53 = sld [smem:[%s52]]
  %s54 = scalar_lea.smem %s0, 27
  %s55 = sld [smem:[%s54]]
  %s56 = scalar_lea.smem %s0, 28
  %s57 = sld [smem:[%s56]]
  %s58 = scalar_lea.smem %s0, 29
  %s59 = sld [smem:[%s58]]
  %s60 = scalar_lea.smem %s0, 30
  %s61 = sld [smem:[%s60]]
  %s62 = scalar_lea.smem %s0, 31
  %s63 = sld [smem:[%s62]]
  %s64 = scalar_lea.smem %s0, 32
  %s65 = sld [smem:[%s64]]
  %s66 = sld [smem:[#allocation0]]
  $region170: #{model_forward.1} parent=0
    _
  %s68 = ssub.s32 1, %s66
  %s69 = scalar_select 0, %s68, %s66
  $region1: #{model_forward.1} parent=0
    #allocation3 [shape = 'u8[16384]{0}', space=vmem, size = 0x4000, scoped, tag = 'input window, operand 2, single buffered']
    #allocation4 [shape = 's32[1]{0}', space=sflag, size = 0x4, scoped, tag = 'scoped memory for model_forward.1']
    #allocation5 [shape = 's32[1]{0}', space=sflag, size = 0x4, scoped, tag = 'scoped memory for model_forward.1']
    #allocation6 [shape = 'u8[16384]{0}', space=vmem, size = 0x4000, scoped, tag = 'input window, operand 4, single buffered']
    #allocation7 [shape = 's32[1]{0}', space=sflag, size = 0x4, scoped, tag = 'scoped memory for model_forward.1']
    #allocation8 [shape = 'u8[16384]{0}', space=vmem, size = 0x4000, scoped, tag = 'input window, operand 8, single buffered']
    #allocation9 [shape = 'u8[16384]{0}', space=vmem, size = 0x4000, scoped, tag = 'input window, operand 14, single buffered']
    #allocation10 [shape = 's32[1]{0}', space=sflag, size = 0x4, scoped, tag = 'scoped memory for model_forward.1']
    #allocation11 [shape = 'u8[16384]{0}', space=vmem, size = 0x4000, scoped, tag = 'input window, operand 16, single buffered']
    #allocation12 [shape = 'u8[16384]{0}', space=vmem, size = 0x4000, scoped, tag = 'input window, operand 20, single buffered']
    #allocation13 [shape = 's32[1]{0}', space=sflag, size = 0x4, scoped, tag = 'scoped memory for model_forward.1']
    #allocation14 [shape = 'u8[16384]{0}', space=vmem, size = 0x4000, scoped, tag = 'input window, operand 26, single buffered']
    #allocation15 [shape = 'u8[16384]{0}', space=vmem, size = 0x4000, scoped, tag = 'input window, operand 28, single buffered']
    #allocation16 [shape = 's32[1]{0}', space=sflag, size = 0x4, scoped, tag = 'scoped memory for model_forward.1']
    #allocation17 [shape = 'u8[1024]{0}', space=vmem, size = 0x400, scoped, tag = 'output window, operand 0, single buffered']
    %70 = vsyncpa [#allocation4], 0
    %71 = vsyncpa [#allocation7], 0
    %72 = vsyncpa [#allocation10], 0
    %73 = vsyncpa [#allocation13], 0
    %74 = vsyncpa [#allocation16], 0
    %75 = vsyncpa [#allocation5], 0
    // Predicated region
    $region2: #{model_forward.1} parent=1 // pred_check
      _
    $region3: #{model_forward.1} parent=1 // pred_check_branch
      %77 = sbr.rel (0) target = $region5
    $region4: #{model_forward.1} parent=1 // pred_region
      _
    $region5: #{model_forward.1} parent=1 // pred_fallthru
      _
    // Predicated region
    $region6: #{model_forward.1} parent=1 // pred_check
      _
    $region7: #{model_forward.1} parent=1 // pred_check_branch
      %79 = sbr.rel (0) target = $region9
    $region8: #{model_forward.1} parent=1 // pred_region
      _
    $region9: #{model_forward.1} parent=1 // pred_fallthru
      _
    // Predicated region
    $region10: #{model_forward.1} parent=1 // pred_check
      _
    $region11: #{model_forward.1} parent=1 // pred_check_branch
      %81 = sbr.rel (0) target = $region13
    $region12: #{model_forward.1} parent=1 // pred_region
      %83 = vsyncadd [#allocation4], 0
      %s84 = sshll.u32 %s5, 4
      %s85 = int_to_ptr.hbm [resolvable:$true] %s84
      %s86 = sshll.u32 [#allocation3], 4
      %s87 = int_to_ptr.vmem [resolvable:$true] %s86
      %92 = dma.hbm_to_vmem [thread:$0]  %s85, 512, %s87, [#allocation4], 128, 128, 8
    $region13: #{model_forward.1} parent=1 // pred_fallthru
      _
    // Predicated region
    $region14: #{model_forward.1} parent=1 // pred_check
      _
    $region15: #{model_forward.1} parent=1 // pred_check_branch
      %94 = sbr.rel (0) target = $region17
    $region16: #{model_forward.1} parent=1 // pred_region
      _
    $region17: #{model_forward.1} parent=1 // pred_fallthru
      _
    // Predicated region
    $region18: #{model_forward.1} parent=1 // pred_check
      _
    $region19: #{model_forward.1} parent=1 // pred_check_branch
      %96 = sbr.rel (0) target = $region21
    $region20: #{model_forward.1} parent=1 // pred_region
      %98 = vsyncadd [#allocation7], 0
      %s99 = sshll.u32 %s9, 4
      %s100 = int_to_ptr.hbm [resolvable:$true] %s99
      %s101 = sshll.u32 [#allocation6], 4
      %s102 = int_to_ptr.vmem [resolvable:$true] %s101
      %107 = dma.hbm_to_vmem [thread:$0]  %s100, 512, %s102, [#allocation7], 128, 128, 8
    $region21: #{model_forward.1} parent=1 // pred_fallthru
      _
    // Predicated region
    $region22: #{model_forward.1} parent=1 // pred_check
      _
    $region23: #{model_forward.1} parent=1 // pred_check_branch
      %109 = sbr.rel (0) target = $region25
    $region24: #{model_forward.1} parent=1 // pred_region
      _
    $region25: #{model_forward.1} parent=1 // pred_fallthru
      _
    // Predicated region
    $region26: #{model_forward.1} parent=1 // pred_check
      _
    $region27: #{model_forward.1} parent=1 // pred_check_branch
      %111 = sbr.rel (0) target = $region29
    $region28: #{model_forward.1} parent=1 // pred_region
      _
    $region29: #{model_forward.1} parent=1 // pred_fallthru
      _
    // Predicated region
    $region30: #{model_forward.1} parent=1 // pred_check
      _
    $region31: #{model_forward.1} parent=1 // pred_check_branch
      %113 = sbr.rel (0) target = $region33
    $region32: #{model_forward.1} parent=1 // pred_region
      _
    $region33: #{model_forward.1} parent=1 // pred_fallthru
      _
    // Predicated region
    $region34: #{model_forward.1} parent=1 // pred_check
      _
    $region35: #{model_forward.1} parent=1 // pred_check_branch
      %115 = sbr.rel (0) target = $region37
    $region36: #{model_forward.1} parent=1 // pred_region
      %117 = vsyncadd [#allocation7], 0
      %s118 = sshll.u32 %s17, 4
      %s119 = int_to_ptr.hbm [resolvable:$true] %s118
      %s120 = sshll.u32 [#allocation8], 4
      %s121 = int_to_ptr.vmem [resolvable:$true] %s120
      %126 = dma.hbm_to_vmem [thread:$0]  %s119, 512, %s121, [#allocation7], 128, 128, 8
    $region37: #{model_forward.1} parent=1 // pred_fallthru
      _
    // Predicated region
    $region38: #{model_forward.1} parent=1 // pred_check
      _
    $region39: #{model_forward.1} parent=1 // pred_check_branch
      %128 = sbr.rel (0) target = $region41
    $region40: #{model_forward.1} parent=1 // pred_region
      _
    $region41: #{model_forward.1} parent=1 // pred_fallthru
      _
    // Predicated region
    $region42: #{model_forward.1} parent=1 // pred_check
      _
    $region43: #{model_forward.1} parent=1 // pred_check_branch
      %130 = sbr.rel (0) target = $region45
    $region44: #{model_forward.1} parent=1 // pred_region
      _
    $region45: #{model_forward.1} parent=1 // pred_fallthru
      _
    // Predicated region
    $region46: #{model_forward.1} parent=1 // pred_check
      _
    $region47: #{model_forward.1} parent=1 // pred_check_branch
      %132 = sbr.rel (0) target = $region49
    $region48: #{model_forward.1} parent=1 // pred_region
      _
    $region49: #{model_forward.1} parent=1 // pred_fallthru
      _
    // Predicated region
    $region50: #{model_forward.1} parent=1 // pred_check
      _
    $region51: #{model_forward.1} parent=1 // pred_check_branch
      %134 = sbr.rel (0) target = $region53
    $region52: #{model_forward.1} parent=1 // pred_region
      _
    $region53: #{model_forward.1} parent=1 // pred_fallthru
      _
    // Predicated region
    $region54: #{model_forward.1} parent=1 // pred_check
      _
    $region55: #{model_forward.1} parent=1 // pred_check_branch
      %136 = sbr.rel (0) target = $region57
    $region56: #{model_forward.1} parent=1 // pred_region
      _
    $region57: #{model_forward.1} parent=1 // pred_fallthru
      _
    // Predicated region
    $region58: #{model_forward.1} parent=1 // pred_check
      _
    $region59: #{model_forward.1} parent=1 // pred_check_branch
      %138 = sbr.rel (0) target = $region61
    $region60: #{model_forward.1} parent=1 // pred_region
      %140 = vsyncadd [#allocation10], 0
      %s141 = sshll.u32 %s29, 4
      %s142 = int_to_ptr.hbm [resolvable:$true] %s141
      %s143 = sshll.u32 [#allocation9], 4
      %s144 = int_to_ptr.vmem [resolvable:$true] %s143
      %149 = dma.hbm_to_vmem [thread:$0]  %s142, 512, %s144, [#allocation10], 128, 128, 8
    $region61: #{model_forward.1} parent=1 // pred_fallthru
      _
    // Predicated region
    $region62: #{model_forward.1} parent=1 // pred_check
      _
    $region63: #{model_forward.1} parent=1 // pred_check_branch
      %151 = sbr.rel (0) target = $region65
    $region64: #{model_forward.1} parent=1 // pred_region
      _
    $region65: #{model_forward.1} parent=1 // pred_fallthru
      _
    // Predicated region
    $region66: #{model_forward.1} parent=1 // pred_check
      _
    $region67: #{model_forward.1} parent=1 // pred_check_branch
      %153 = sbr.rel (0) target = $region69
    $region68: #{model_forward.1} parent=1 // pred_region
      %155 = vsyncadd [#allocation10], 0
      %s156 = sshll.u32 %s33, 4
      %s157 = int_to_ptr.hbm [resolvable:$true] %s156
      %s158 = sshll.u32 [#allocation11], 4
      %s159 = int_to_ptr.vmem [resolvable:$true] %s158
      %164 = dma.hbm_to_vmem [thread:$0]  %s157, 512, %s159, [#allocation10], 128, 128, 8
    $region69: #{model_forward.1} parent=1 // pred_fallthru
      _
    // Predicated region
    $region70: #{model_forward.1} parent=1 // pred_check
      _
    $region71: #{model_forward.1} parent=1 // pred_check_branch
      %166 = sbr.rel (0) target = $region73
    $region72: #{model_forward.1} parent=1 // pred_region
      _
    $region73: #{model_forward.1} parent=1 // pred_fallthru
      _
    // Predicated region
    $region74: #{model_forward.1} parent=1 // pred_check
      _
    $region75: #{model_forward.1} parent=1 // pred_check_branch
      %168 = sbr.rel (0) target = $region77
    $region76: #{model_forward.1} parent=1 // pred_region
      _
    $region77: #{model_forward.1} parent=1 // pred_fallthru
      _
    // Predicated region
    $region78: #{model_forward.1} parent=1 // pred_check
      _
    $region79: #{model_forward.1} parent=1 // pred_check_branch
      %170 = sbr.rel (0) target = $region81
    $region80: #{model_forward.1} parent=1 // pred_region
      _
    $region81: #{model_forward.1} parent=1 // pred_fallthru
      _
    // Predicated region
    $region82: #{model_forward.1} parent=1 // pred_check
      _
    $region83: #{model_forward.1} parent=1 // pred_check_branch
      %172 = sbr.rel (0) target = $region85
    $region84: #{model_forward.1} parent=1 // pred_region
      %174 = vsyncadd [#allocation13], 0
      %s175 = sshll.u32 %s41, 4
      %s176 = int_to_ptr.hbm [resolvable:$true] %s175
      %s177 = sshll.u32 [#allocation12], 4
      %s178 = int_to_ptr.vmem [resolvable:$true] %s177
      %183 = dma.hbm_to_vmem [thread:$0]  %s176, 512, %s178, [#allocation13], 128, 128, 8
    $region85: #{model_forward.1} parent=1 // pred_fallthru
      _
    // Predicated region
    $region86: #{model_forward.1} parent=1 // pred_check
      _
    $region87: #{model_forward.1} parent=1 // pred_check_branch
      %185 = sbr.rel (0) target = $region89
    $region88: #{model_forward.1} parent=1 // pred_region
      _
    $region89: #{model_forward.1} parent=1 // pred_fallthru
      _
    // Predicated region
    $region90: #{model_forward.1} parent=1 // pred_check
      _
    $region91: #{model_forward.1} parent=1 // pred_check_branch
      %187 = sbr.rel (0) target = $region93
    $region92: #{model_forward.1} parent=1 // pred_region
      _
    $region93: #{model_forward.1} parent=1 // pred_fallthru
      _
    // Predicated region
    $region94: #{model_forward.1} parent=1 // pred_check
      _
    $region95: #{model_forward.1} parent=1 // pred_check_branch
      %189 = sbr.rel (0) target = $region97
    $region96: #{model_forward.1} parent=1 // pred_region
      _
    $region97: #{model_forward.1} parent=1 // pred_fallthru
      _
    // Predicated region
    $region98: #{model_forward.1} parent=1 // pred_check
      _
    $region99: #{model_forward.1} parent=1 // pred_check_branch
      %191 = sbr.rel (0) target = $region101
    $region100: #{model_forward.1} parent=1 // pred_region
      _
    $region101: #{model_forward.1} parent=1 // pred_fallthru
      _
    // Predicated region
    $region102: #{model_forward.1} parent=1 // pred_check
      _
    $region103: #{model_forward.1} parent=1 // pred_check_branch
      %193 = sbr.rel (0) target = $region105
    $region104: #{model_forward.1} parent=1 // pred_region
      _
    $region105: #{model_forward.1} parent=1 // pred_fallthru
      _
    // Predicated region
    $region106: #{model_forward.1} parent=1 // pred_check
      _
    $region107: #{model_forward.1} parent=1 // pred_check_branch
      %195 = sbr.rel (0) target = $region109
    $region108: #{model_forward.1} parent=1 // pred_region
      %197 = vsyncadd [#allocation13], 0
      %s198 = sshll.u32 %s53, 4
      %s199 = int_to_ptr.hbm [resolvable:$true] %s198
      %s200 = sshll.u32 [#allocation14], 4
      %s201 = int_to_ptr.vmem [resolvable:$true] %s200
      %206 = dma.hbm_to_vmem [thread:$0]  %s199, 512, %s201, [#allocation13], 128, 128, 8
    $region109: #{model_forward.1} parent=1 // pred_fallthru
      _
    // Predicated region
    $region110: #{model_forward.1} parent=1 // pred_check
      _
    $region111: #{model_forward.1} parent=1 // pred_check_branch
      %208 = sbr.rel (0) target = $region113
    $region112: #{model_forward.1} parent=1 // pred_region
      _
    $region113: #{model_forward.1} parent=1 // pred_fallthru
      _
    // Predicated region
    $region114: #{model_forward.1} parent=1 // pred_check
      _
    $region115: #{model_forward.1} parent=1 // pred_check_branch
      %210 = sbr.rel (0) target = $region117
    $region116: #{model_forward.1} parent=1 // pred_region
      %212 = vsyncadd [#allocation16], 0
      %s213 = sshll.u32 %s57, 4
      %s214 = int_to_ptr.hbm [resolvable:$true] %s213
      %s215 = sshll.u32 [#allocation15], 4
      %s216 = int_to_ptr.vmem [resolvable:$true] %s215
      %221 = dma.hbm_to_vmem [thread:$0]  %s214, 512, %s216, [#allocation16], 128, 128, 8
    $region117: #{model_forward.1} parent=1 // pred_fallthru
      _
    // Predicated region
    $region118: #{model_forward.1} parent=1 // pred_check
      _
    $region119: #{model_forward.1} parent=1 // pred_check_branch
      %223 = sbr.rel (0) target = $region121
    $region120: #{model_forward.1} parent=1 // pred_region
      _
    $region121: #{model_forward.1} parent=1 // pred_fallthru
      _
    // Predicated region
    $region122: #{model_forward.1} parent=1 // pred_check
      _
    $region123: #{model_forward.1} parent=1 // pred_check_branch
      %225 = sbr.rel (0) target = $region125
    $region124: #{model_forward.1} parent=1 // pred_region
      _
    $region125: #{model_forward.1} parent=1 // pred_fallthru
      _
    // Predicated region
    $region126: #{model_forward.1} parent=1 // pred_check
      _
    $region127: #{model_forward.1} parent=1 // pred_check_branch
      %227 = sbr.rel (0) target = $region129
    $region128: #{model_forward.1} parent=1 // pred_region
      _
    $region129: #{model_forward.1} parent=1 // pred_fallthru
      _
    // Predicated region
    $region130: #{model_forward.1} parent=1 // pred_check
      _
    $region131: #{model_forward.1} parent=1 // pred_check_branch
      %229 = sbr.rel (0) target = $region133
    $region132: #{model_forward.1} parent=1 // pred_region
      %231 = dma.done [#allocation4], 512
    $region133: #{model_forward.1} parent=1 // pred_fallthru
      _
    // Predicated region
    $region134: #{model_forward.1} parent=1 // pred_check
      _
    $region135: #{model_forward.1} parent=1 // pred_check_branch
      %233 = sbr.rel (0) target = $region137
    $region136: #{model_forward.1} parent=1 // pred_region
      %235 = dma.done [#allocation7], 512
    $region137: #{model_forward.1} parent=1 // pred_fallthru
      _
    // Predicated region
    $region138: #{model_forward.1} parent=1 // pred_check
      _
    $region139: #{model_forward.1} parent=1 // pred_check_branch
      %237 = sbr.rel (0) target = $region141
    $region140: #{model_forward.1} parent=1 // pred_region
      %239 = dma.done [#allocation7], 512
    $region141: #{model_forward.1} parent=1 // pred_fallthru
      _
    // Predicated region
    $region142: #{model_forward.1} parent=1 // pred_check
      _
    $region143: #{model_forward.1} parent=1 // pred_check_branch
      %241 = sbr.rel (0) target = $region145
    $region144: #{model_forward.1} parent=1 // pred_region
      %243 = dma.done [#allocation10], 512
    $region145: #{model_forward.1} parent=1 // pred_fallthru
      _
    // Predicated region
    $region146: #{model_forward.1} parent=1 // pred_check
      _
    $region147: #{model_forward.1} parent=1 // pred_check_branch
      %245 = sbr.rel (0) target = $region149
    $region148: #{model_forward.1} parent=1 // pred_region
      %247 = dma.done [#allocation10], 512
    $region149: #{model_forward.1} parent=1 // pred_fallthru
      _
    // Predicated region
    $region150: #{model_forward.1} parent=1 // pred_check
      _
    $region151: #{model_forward.1} parent=1 // pred_check_branch
      %249 = sbr.rel (0) target = $region153
    $region152: #{model_forward.1} parent=1 // pred_region
      %251 = dma.done [#allocation13], 512
    $region153: #{model_forward.1} parent=1 // pred_fallthru
      _
    // Predicated region
    $region154: #{model_forward.1} parent=1 // pred_check
      _
    $region155: #{model_forward.1} parent=1 // pred_check_branch
      %253 = sbr.rel (0) target = $region157
    $region156: #{model_forward.1} parent=1 // pred_region
      %255 = dma.done [#allocation13], 512
    $region157: #{model_forward.1} parent=1 // pred_fallthru
      _
    // Predicated region
    $region158: #{model_forward.1} parent=1 // pred_check
      _
    $region159: #{model_forward.1} parent=1 // pred_check_branch
      %257 = sbr.rel (0) target = $region161
    $region160: #{model_forward.1} parent=1 // pred_region
      %259 = dma.done [#allocation16], 512
    $region161: #{model_forward.1} parent=1 // pred_fallthru
      _
    %v260 = vld [vmem:[%s1] sm:$0xff]
    %v261 = vld [vmem:[%s1 + $0x8] sm:$0xff]
    %v262 = vld [vmem:[%s3] sm:$0x3]
    %v263 = vld [vmem:[#allocation3] sm:$0xff]
    %v264 = vld [vmem:[#allocation3 + $0x8] sm:$0xff]
    %v265 = vld [vmem:[#allocation3 + $0x10] sm:$0xff]
    %v266 = vld [vmem:[#allocation3 + $0x18] sm:$0xff]
    %v267 = vld [vmem:[%s7] sm:$0x1]
    %v269 = vperm.slane %v267, 0
    %vm271 = vcmask 261120
    %v273 = vsel %vm271, %v260, 0
    %v276 = vsel %vm271, %v261, 0
    %278 = vmatpush.msra.mxu0 0.0
    %279 = vmatpush.msra.mxu0 0.0
    %280 = vmatpush.msra.mxu0 0.0
    %281 = vmatpush.msra.mxu0 0.0
    %282 = vmatpush.msra.mxu0 0.0
    %283 = vmatpush.msra.mxu0 0.0
    %284 = vmatpush.msra.mxu0 0.0
    %285 = vmatpush.msra.mxu0 0.0
    %286 = vmatpush.msra.mxu0 0.0
    %287 = vmatpush.msra.mxu0 0.0
    %288 = vmatpush.msra.mxu0 0.0
    %289 = vmatpush.msra.mxu0 0.0
    %290 = vmatpush.msra.mxu0 %v266
    %291 = vmatpush.msra.mxu0 %v265
    %292 = vmatpush.msra.mxu0 %v264
    %293 = vmatpush.msra.mxu0 %v263
    %294 = vmatmul.f32.gmra.mxu0 %v273
    %v295 = vpop.f32.mrf.mxu0
    %v296 = vadd.f32 %v269, %v295
    %297 = vmatmul.f32.gmra.mxu0 %v276
    %v298 = vpop.f32.mrf.mxu0
    %v299 = vadd.f32 %v269, %v298
    %300 = vdwg.mxu0
    %302 = vrot.lane.b32.xlu0 %v296, 96
    %v303 = vpop.permute.xlu0 %302
    %vm304 = vcmask 64512
    %v305 = vsel %vm304, %v296, 0
    %v307 = vsel %vm304, %v303, 0
    %309 = vmatpush.xpose.msra.mxu0 0.0
    %310 = vmatpush.xpose.msra.mxu0 0.0
    %311 = vmatpush.xpose.msra.mxu0 0.0
    %312 = vmatpush.xpose.msra.mxu0 0.0
    %313 = vmatpush.xpose.msra.mxu0 0.0
    %314 = vmatpush.xpose.msra.mxu0 0.0
    %315 = vmatpush.xpose.msra.mxu0 0.0
    %316 = vmatpush.xpose.msra.mxu0 0.0
    %317 = vmatpush.xpose.msra.mxu0 0.0
    %318 = vmatpush.xpose.msra.mxu0 0.0
    %319 = vmatpush.xpose.msra.mxu0 0.0
    %320 = vmatpush.xpose.msra.mxu0 0.0
    %321 = vmatpush.xpose.msra.mxu0 0.0
    %322 = vmatpush.xpose.msra.mxu0 0.0
    %323 = vmatpush.xpose.msra.mxu0 0.0
    %324 = vmatpush.xpose.msra.mxu0 %v307
    %325 = vmatmul.f32.gmra.mxu0 %v305
    %v326 = vpop.f32.mrf.mxu0
    %v327 = vadd.f32 0.0, %v326
    %328 = vdwg.mxu0
    %v329 = vmul.f32 %v327, 0.35355338
    %v330 = vperm.slane %v262, 0
    %v331 = vadd.f32 %v329, %v330
    %v332 = vsel %vm304, %v331, -inf
    %333 = vmax.xlane.f32.xlu0 %v332
    %v334 = vpop.xlane.xlu0 %333
    %v335 = vsub.f32 %v331, %v334
    %v336 = vmul.f32 %v335, 1.442695
    %v337 = vpow.pop %v336
    %v338 = vsel %vm304, %v337, 0.0
    %339 = vadd.xlane.f32.xlu0 %v338
    %v340 = vpop.xlane.xlu0 %339
    %v341 = vrcp.pop %v340
    %v342 = vmul.f32 %v337, %v341
    %343 = vrot.lane.b32.xlu0 %v296, 64
    %v344 = vpop.permute.xlu0 %343
    %v347 = vsel %vm304, %v342, 0
    %349 = vmatpush.msra.mxu0 0.0
    %350 = vmatpush.msra.mxu0 0.0
    %351 = vmatpush.msra.mxu0 0.0
    %352 = vmatpush.msra.mxu0 0.0
    %353 = vmatpush.msra.mxu0 0.0
    %354 = vmatpush.msra.mxu0 0.0
    %355 = vmatpush.msra.mxu0 0.0
    %356 = vmatpush.msra.mxu0 0.0
    %357 = vmatpush.msra.mxu0 0.0
    %358 = vmatpush.msra.mxu0 0.0
    %359 = vmatpush.msra.mxu0 0.0
    %360 = vmatpush.msra.mxu0 0.0
    %361 = vmatpush.msra.mxu0 0.0
    %362 = vmatpush.msra.mxu0 0.0
    %363 = vmatpush.msra.mxu0 0.0
    %364 = vmatpush.msra.mxu0 %v344
    %365 = vmatmul.f32.gmra.mxu0 %v347
    %v366 = vpop.f32.mrf.mxu0
    %v367 = vadd.f32 0.0, %v366
    %368 = vdwg.mxu0
    %369 = vst.msk [vmem:[#allocation2] sm:$0xff] %vm304, %v367
    %370 = vrot.lane.b32.xlu0 %v296, 120
    %v371 = vpop.permute.xlu0 %370
    %372 = vrot.lane.b32.xlu0 %v296, 88
    %v373 = vpop.permute.xlu0 %372
    %v374 = vsel %vm304, %v371, 0
    %v376 = vsel %vm304, %v373, 0
    %378 = vmatpush.xpose.msra.mxu0 0.0
    %379 = vmatpush.xpose.msra.mxu0 0.0
    %380 = vmatpush.xpose.msra.mxu0 0.0
    %381 = vmatpush.xpose.msra.mxu0 0.0
    %382 = vmatpush.xpose.msra.mxu0 0.0
    %383 = vmatpush.xpose.msra.mxu0 0.0
    %384 = vmatpush.xpose.msra.mxu0 0.0
    %385 = vmatpush.xpose.msra.mxu0 0.0
    %386 = vmatpush.xpose.msra.mxu0 0.0
    %387 = vmatpush.xpose.msra.mxu0 0.0
    %388 = vmatpush.xpose.msra.mxu0 0.0
    %389 = vmatpush.xpose.msra.mxu0 0.0
    %390 = vmatpush.xpose.msra.mxu0 0.0
    %391 = vmatpush.xpose.msra.mxu0 0.0
    %392 = vmatpush.xpose.msra.mxu0 0.0
    %393 = vmatpush.xpose.msra.mxu0 %v376
    %394 = vmatmul.f32.gmra.mxu0 %v374
    %v395 = vpop.f32.mrf.mxu0
    %v396 = vadd.f32 0.0, %v395
    %397 = vdwg.mxu0
    %v398 = vmul.f32 %v396, 0.35355338
    %v399 = vadd.f32 %v398, %v330
    %v400 = vsel %vm304, %v399, -inf
    %401 = vmax.xlane.f32.xlu0 %v400
    %v402 = vpop.xlane.xlu0 %401
    %v403 = vsub.f32 %v399, %v402
    %v404 = vmul.f32 %v403, 1.442695
    %v405 = vpow.pop %v404
    %v406 = vsel %vm304, %v405, 0.0
    %407 = vadd.xlane.f32.xlu0 %v406
    %v408 = vpop.xlane.xlu0 %407
    %v409 = vrcp.pop %v408
    %v410 = vmul.f32 %v405, %v409
    %411 = vrot.lane.b32.xlu0 %v296, 56
    %v412 = vpop.permute.xlu0 %411
    %v415 = vsel %vm304, %v410, 0
    %417 = vmatpush.msra.mxu0 0.0
    %418 = vmatpush.msra.mxu0 0.0
    %419 = vmatpush.msra.mxu0 0.0
    %420 = vmatpush.msra.mxu0 0.0
    %421 = vmatpush.msra.mxu0 0.0
    %422 = vmatpush.msra.mxu0 0.0
    %423 = vmatpush.msra.mxu0 0.0
    %424 = vmatpush.msra.mxu0 0.0
    %425 = vmatpush.msra.mxu0 0.0
    %426 = vmatpush.msra.mxu0 0.0
    %427 = vmatpush.msra.mxu0 0.0
    %428 = vmatpush.msra.mxu0 0.0
    %429 = vmatpush.msra.mxu0 0.0
    %430 = vmatpush.msra.mxu0 0.0
    %431 = vmatpush.msra.mxu0 0.0
    %432 = vmatpush.msra.mxu0 %v412
    %433 = vmatmul.f32.gmra.mxu0 %v415
    %v434 = vpop.f32.mrf.mxu0
    %v435 = vadd.f32 0.0, %v434
    %436 = vdwg.mxu0
    %438 = vrot.lane.b32.xlu0 %v435, 8
    %v439 = vpop.permute.xlu0 %438
    %vm441 = vcmask 130112
    %442 = vst.msk [vmem:[#allocation2] sm:$0xff] %vm441, %v439
    %443 = vrot.lane.b32.xlu0 %v296, 112
    %v444 = vpop.permute.xlu0 %443
    %445 = vrot.lane.b32.xlu0 %v296, 80
    %v446 = vpop.permute.xlu0 %445
    %v447 = vsel %vm304, %v444, 0
    %v449 = vsel %vm304, %v446, 0
    %451 = vmatpush.xpose.msra.mxu0 0.0
    %452 = vmatpush.xpose.msra.mxu0 0.0
    %453 = vmatpush.xpose.msra.mxu0 0.0
    %454 = vmatpush.xpose.msra.mxu0 0.0
    %455 = vmatpush.xpose.msra.mxu0 0.0
    %456 = vmatpush.xpose.msra.mxu0 0.0
    %457 = vmatpush.xpose.msra.mxu0 0.0
    %458 = vmatpush.xpose.msra.mxu0 0.0
    %459 = vmatpush.xpose.msra.mxu0 0.0
    %460 = vmatpush.xpose.msra.mxu0 0.0
    %461 = vmatpush.xpose.msra.mxu0 0.0
    %462 = vmatpush.xpose.msra.mxu0 0.0
    %463 = vmatpush.xpose.msra.mxu0 0.0
    %464 = vmatpush.xpose.msra.mxu0 0.0
    %465 = vmatpush.xpose.msra.mxu0 0.0
    %466 = vmatpush.xpose.msra.mxu0 %v449
    %467 = vmatmul.f32.gmra.mxu0 %v447
    %v468 = vpop.f32.mrf.mxu0
    %v469 = vadd.f32 0.0, %v468
    %470 = vdwg.mxu0
    %v471 = vmul.f32 %v469, 0.35355338
    %v472 = vadd.f32 %v471, %v330
    %v473 = vsel %vm304, %v472, -inf
    %474 = vmax.xlane.f32.xlu0 %v473
    %v475 = vpop.xlane.xlu0 %474
    %v476 = vsub.f32 %v472, %v475
    %v477 = vmul.f32 %v476, 1.442695
    %v478 = vpow.pop %v477
    %v479 = vsel %vm304, %v478, 0.0
    %480 = vadd.xlane.f32.xlu0 %v479
    %v481 = vpop.xlane.xlu0 %480
    %v482 = vrcp.pop %v481
    %v483 = vmul.f32 %v478, %v482
    %484 = vrot.lane.b32.xlu0 %v296, 48
    %v485 = vpop.permute.xlu0 %484
    %v488 = vsel %vm304, %v483, 0
    %490 = vmatpush.msra.mxu0 0.0
    %491 = vmatpush.msra.mxu0 0.0
    %492 = vmatpush.msra.mxu0 0.0
    %493 = vmatpush.msra.mxu0 0.0
    %494 = vmatpush.msra.mxu0 0.0
    %495 = vmatpush.msra.mxu0 0.0
    %496 = vmatpush.msra.mxu0 0.0
    %497 = vmatpush.msra.mxu0 0.0
    %498 = vmatpush.msra.mxu0 0.0
    %499 = vmatpush.msra.mxu0 0.0
    %500 = vmatpush.msra.mxu0 0.0
    %501 = vmatpush.msra.mxu0 0.0
    %502 = vmatpush.msra.mxu0 0.0
    %503 = vmatpush.msra.mxu0 0.0
    %504 = vmatpush.msra.mxu0 0.0
    %505 = vmatpush.msra.mxu0 %v485
    %506 = vmatmul.f32.gmra.mxu0 %v488
    %v507 = vpop.f32.mrf.mxu0
    %v508 = vadd.f32 0.0, %v507
    %509 = vdwg.mxu0
    %511 = vrot.lane.b32.xlu0 %v508, 16
    %v512 = vpop.permute.xlu0 %511
    %vm514 = vcmask 195712
    %515 = vst.msk [vmem:[#allocation2] sm:$0xff] %vm514, %v512
    %516 = vrot.lane.b32.xlu0 %v296, 104
    %v517 = vpop.permute.xlu0 %516
    %518 = vrot.lane.b32.xlu0 %v296, 72
    %v519 = vpop.permute.xlu0 %518
    %v520 = vsel %vm304, %v517, 0
    %v522 = vsel %vm304, %v519, 0
    %524 = vmatpush.xpose.msra.mxu0 0.0
    %525 = vmatpush.xpose.msra.mxu0 0.0
    %526 = vmatpush.xpose.msra.mxu0 0.0
    %527 = vmatpush.xpose.msra.mxu0 0.0
    %528 = vmatpush.xpose.msra.mxu0 0.0
    %529 = vmatpush.xpose.msra.mxu0 0.0
    %530 = vmatpush.xpose.msra.mxu0 0.0
    %531 = vmatpush.xpose.msra.mxu0 0.0
    %532 = vmatpush.xpose.msra.mxu0 0.0
    %533 = vmatpush.xpose.msra.mxu0 0.0
    %534 = vmatpush.xpose.msra.mxu0 0.0
    %535 = vmatpush.xpose.msra.mxu0 0.0
    %536 = vmatpush.xpose.msra.mxu0 0.0
    %537 = vmatpush.xpose.msra.mxu0 0.0
    %538 = vmatpush.xpose.msra.mxu0 0.0
    %539 = vmatpush.xpose.msra.mxu0 %v522
    %540 = vmatmul.f32.gmra.mxu0 %v520
    %v541 = vpop.f32.mrf.mxu0
    %v542 = vadd.f32 0.0, %v541
    %543 = vdwg.mxu0
    %v544 = vmul.f32 %v542, 0.35355338
    %v545 = vadd.f32 %v544, %v330
    %v546 = vsel %vm304, %v545, -inf
    %547 = vmax.xlane.f32.xlu0 %v546
    %v548 = vpop.xlane.xlu0 %547
    %v549 = vsub.f32 %v545, %v548
    %v550 = vmul.f32 %v549, 1.442695
    %v551 = vpow.pop %v550
    %v552 = vsel %vm304, %v551, 0.0
    %553 = vadd.xlane.f32.xlu0 %v552
    %v554 = vpop.xlane.xlu0 %553
    %v555 = vrcp.pop %v554
    %v556 = vmul.f32 %v551, %v555
    %557 = vrot.lane.b32.xlu0 %v296, 40
    %v558 = vpop.permute.xlu0 %557
    %v561 = vsel %vm304, %v556, 0
    %563 = vmatpush.msra.mxu0 0.0
    %564 = vmatpush.msra.mxu0 0.0
    %565 = vmatpush.msra.mxu0 0.0
    %566 = vmatpush.msra.mxu0 0.0
    %567 = vmatpush.msra.mxu0 0.0
    %568 = vmatpush.msra.mxu0 0.0
    %569 = vmatpush.msra.mxu0 0.0
    %570 = vmatpush.msra.mxu0 0.0
    %571 = vmatpush.msra.mxu0 0.0
    %572 = vmatpush.msra.mxu0 0.0
    %573 = vmatpush.msra.mxu0 0.0
    %574 = vmatpush.msra.mxu0 0.0
    %575 = vmatpush.msra.mxu0 0.0
    %576 = vmatpush.msra.mxu0 0.0
    %577 = vmatpush.msra.mxu0 0.0
    %578 = vmatpush.msra.mxu0 %v558
    %579 = vmatmul.f32.gmra.mxu0 %v561
    %v580 = vpop.f32.mrf.mxu0
    %v581 = vadd.f32 0.0, %v580
    %582 = vdwg.mxu0
    %584 = vrot.lane.b32.xlu0 %v581, 24
    %v585 = vpop.permute.xlu0 %584
    %vm587 = vcmask 261312
    %588 = vst.msk [vmem:[#allocation2] sm:$0xff] %vm587, %v585
    %590 = vrot.lane.b32.xlu0 %v299, 96
    %v591 = vpop.permute.xlu0 %590
    %v592 = vsel %vm304, %v299, 0
    %v594 = vsel %vm304, %v591, 0
    %596 = vmatpush.xpose.msra.mxu0 0.0
    %597 = vmatpush.xpose.msra.mxu0 0.0
    %598 = vmatpush.xpose.msra.mxu0 0.0
    %599 = vmatpush.xpose.msra.mxu0 0.0
    %600 = vmatpush.xpose.msra.mxu0 0.0
    %601 = vmatpush.xpose.msra.mxu0 0.0
    %602 = vmatpush.xpose.msra.mxu0 0.0
    %603 = vmatpush.xpose.msra.mxu0 0.0
    %604 = vmatpush.xpose.msra.mxu0 0.0
    %605 = vmatpush.xpose.msra.mxu0 0.0
    %606 = vmatpush.xpose.msra.mxu0 0.0
    %607 = vmatpush.xpose.msra.mxu0 0.0
    %608 = vmatpush.xpose.msra.mxu0 0.0
    %609 = vmatpush.xpose.msra.mxu0 0.0
    %610 = vmatpush.xpose.msra.mxu0 0.0
    %611 = vmatpush.xpose.msra.mxu0 %v594
    %612 = vmatmul.f32.gmra.mxu0 %v592
    %v613 = vpop.f32.mrf.mxu0
    %v614 = vadd.f32 0.0, %v613
    %615 = vdwg.mxu0
    %v616 = vmul.f32 %v614, 0.35355338
    %v617 = vperm.slane %v262, 1
    %v618 = vadd.f32 %v616, %v617
    %v619 = vsel %vm304, %v618, -inf
    %620 = vmax.xlane.f32.xlu0 %v619
    %v621 = vpop.xlane.xlu0 %620
    %v622 = vsub.f32 %v618, %v621
    %v623 = vmul.f32 %v622, 1.442695
    %v624 = vpow.pop %v623
    %v625 = vsel %vm304, %v624, 0.0
    %626 = vadd.xlane.f32.xlu0 %v625
    %v627 = vpop.xlane.xlu0 %626
    %v628 = vrcp.pop %v627
    %v629 = vmul.f32 %v624, %v628
    %630 = vrot.lane.b32.xlu0 %v299, 64
    %v631 = vpop.permute.xlu0 %630
    %v634 = vsel %vm304, %v629, 0
    %636 = vmatpush.msra.mxu0 0.0
    %637 = vmatpush.msra.mxu0 0.0
    %638 = vmatpush.msra.mxu0 0.0
    %639 = vmatpush.msra.mxu0 0.0
    %640 = vmatpush.msra.mxu0 0.0
    %641 = vmatpush.msra.mxu0 0.0
    %642 = vmatpush.msra.mxu0 0.0
    %643 = vmatpush.msra.mxu0 0.0
    %644 = vmatpush.msra.mxu0 0.0
    %645 = vmatpush.msra.mxu0 0.0
    %646 = vmatpush.msra.mxu0 0.0
    %647 = vmatpush.msra.mxu0 0.0
    %648 = vmatpush.msra.mxu0 0.0
    %649 = vmatpush.msra.mxu0 0.0
    %650 = vmatpush.msra.mxu0 0.0
    %651 = vmatpush.msra.mxu0 %v631
    %652 = vmatmul.f32.gmra.mxu0 %v634
    %v653 = vpop.f32.mrf.mxu0
    %v654 = vadd.f32 0.0, %v653
    %655 = vdwg.mxu0
    %656 = vst.msk [vmem:[#allocation2 + $0x8] sm:$0xff] %vm304, %v654
    %657 = vrot.lane.b32.xlu0 %v299, 120
    %v658 = vpop.permute.xlu0 %657
    %659 = vrot.lane.b32.xlu0 %v299, 88
    %v660 = vpop.permute.xlu0 %659
    %v661 = vsel %vm304, %v658, 0
    %v663 = vsel %vm304, %v660, 0
    %665 = vmatpush.xpose.msra.mxu0 0.0
    %666 = vmatpush.xpose.msra.mxu0 0.0
    %667 = vmatpush.xpose.msra.mxu0 0.0
    %668 = vmatpush.xpose.msra.mxu0 0.0
    %669 = vmatpush.xpose.msra.mxu0 0.0
    %670 = vmatpush.xpose.msra.mxu0 0.0
    %671 = vmatpush.xpose.msra.mxu0 0.0
    %672 = vmatpush.xpose.msra.mxu0 0.0
    %673 = vmatpush.xpose.msra.mxu0 0.0
    %674 = vmatpush.xpose.msra.mxu0 0.0
    %675 = vmatpush.xpose.msra.mxu0 0.0
    %676 = vmatpush.xpose.msra.mxu0 0.0
    %677 = vmatpush.xpose.msra.mxu0 0.0
    %678 = vmatpush.xpose.msra.mxu0 0.0
    %679 = vmatpush.xpose.msra.mxu0 0.0
    %680 = vmatpush.xpose.msra.mxu0 %v663
    %681 = vmatmul.f32.gmra.mxu0 %v661
    %v682 = vpop.f32.mrf.mxu0
    %v683 = vadd.f32 0.0, %v682
    %684 = vdwg.mxu0
    %v685 = vmul.f32 %v683, 0.35355338
    %v686 = vadd.f32 %v685, %v617
    %v687 = vsel %vm304, %v686, -inf
    %688 = vmax.xlane.f32.xlu0 %v687
    %v689 = vpop.xlane.xlu0 %688
    %v690 = vsub.f32 %v686, %v689
    %v691 = vmul.f32 %v690, 1.442695
    %v692 = vpow.pop %v691
    %v693 = vsel %vm304, %v692, 0.0
    %694 = vadd.xlane.f32.xlu0 %v693
    %v695 = vpop.xlane.xlu0 %694
    %v696 = vrcp.pop %v695
    %v697 = vmul.f32 %v692, %v696
    %698 = vrot.lane.b32.xlu0 %v299, 56
    %v699 = vpop.permute.xlu0 %698
    %v702 = vsel %vm304, %v697, 0
    %704 = vmatpush.msra.mxu0 0.0
    %705 = vmatpush.msra.mxu0 0.0
    %706 = vmatpush.msra.mxu0 0.0
    %707 = vmatpush.msra.mxu0 0.0
    %708 = vmatpush.msra.mxu0 0.0
    %709 = vmatpush.msra.mxu0 0.0
    %710 = vmatpush.msra.mxu0 0.0
    %711 = vmatpush.msra.mxu0 0.0
    %712 = vmatpush.msra.mxu0 0.0
    %713 = vmatpush.msra.mxu0 0.0
    %714 = vmatpush.msra.mxu0 0.0
    %715 = vmatpush.msra.mxu0 0.0
    %716 = vmatpush.msra.mxu0 0.0
    %717 = vmatpush.msra.mxu0 0.0
    %718 = vmatpush.msra.mxu0 0.0
    %719 = vmatpush.msra.mxu0 %v699
    %720 = vmatmul.f32.gmra.mxu0 %v702
    %v721 = vpop.f32.mrf.mxu0
    %v722 = vadd.f32 0.0, %v721
    %723 = vdwg.mxu0
    %725 = vrot.lane.b32.xlu0 %v722, 8
    %v726 = vpop.permute.xlu0 %725
    %728 = vst.msk [vmem:[#allocation2 + $0x8] sm:$0xff] %vm441, %v726
    %729 = vrot.lane.b32.xlu0 %v299, 112
    %v730 = vpop.permute.xlu0 %729
    %731 = vrot.lane.b32.xlu0 %v299, 80
    %v732 = vpop.permute.xlu0 %731
    %v733 = vsel %vm304, %v730, 0
    %v735 = vsel %vm304, %v732, 0
    %737 = vmatpush.xpose.msra.mxu0 0.0
    %738 = vmatpush.xpose.msra.mxu0 0.0
    %739 = vmatpush.xpose.msra.mxu0 0.0
    %740 = vmatpush.xpose.msra.mxu0 0.0
    %741 = vmatpush.xpose.msra.mxu0 0.0
    %742 = vmatpush.xpose.msra.mxu0 0.0
    %743 = vmatpush.xpose.msra.mxu0 0.0
    %744 = vmatpush.xpose.msra.mxu0 0.0
    %745 = vmatpush.xpose.msra.mxu0 0.0
    %746 = vmatpush.xpose.msra.mxu0 0.0
    %747 = vmatpush.xpose.msra.mxu0 0.0
    %748 = vmatpush.xpose.msra.mxu0 0.0
    %749 = vmatpush.xpose.msra.mxu0 0.0
    %750 = vmatpush.xpose.msra.mxu0 0.0
    %751 = vmatpush.xpose.msra.mxu0 0.0
    %752 = vmatpush.xpose.msra.mxu0 %v735
    %753 = vmatmul.f32.gmra.mxu0 %v733
    %v754 = vpop.f32.mrf.mxu0
    %v755 = vadd.f32 0.0, %v754
    %756 = vdwg.mxu0
    %v757 = vmul.f32 %v755, 0.35355338
    %v758 = vadd.f32 %v757, %v617
    %v759 = vsel %vm304, %v758, -inf
    %760 = vmax.xlane.f32.xlu0 %v759
    %v761 = vpop.xlane.xlu0 %760
    %v762 = vsub.f32 %v758, %v761
    %v763 = vmul.f32 %v762, 1.442695
    %v764 = vpow.pop %v763
    %v765 = vsel %vm304, %v764, 0.0
    %766 = vadd.xlane.f32.xlu0 %v765
    %v767 = vpop.xlane.xlu0 %766
    %v768 = vrcp.pop %v767
    %v769 = vmul.f32 %v764, %v768
    %770 = vrot.lane.b32.xlu0 %v299, 48
    %v771 = vpop.permute.xlu0 %770
    %v774 = vsel %vm304, %v769, 0
    %776 = vmatpush.msra.mxu0 0.0
    %777 = vmatpush.msra.mxu0 0.0
    %778 = vmatpush.msra.mxu0 0.0
    %779 = vmatpush.msra.mxu0 0.0
    %780 = vmatpush.msra.mxu0 0.0
    %781 = vmatpush.msra.mxu0 0.0
    %782 = vmatpush.msra.mxu0 0.0
    %783 = vmatpush.msra.mxu0 0.0
    %784 = vmatpush.msra.mxu0 0.0
    %785 = vmatpush.msra.mxu0 0.0
    %786 = vmatpush.msra.mxu0 0.0
    %787 = vmatpush.msra.mxu0 0.0
    %788 = vmatpush.msra.mxu0 0.0
    %789 = vmatpush.msra.mxu0 0.0
    %790 = vmatpush.msra.mxu0 0.0
    %791 = vmatpush.msra.mxu0 %v771
    %792 = vmatmul.f32.gmra.mxu0 %v774
    %v793 = vpop.f32.mrf.mxu0
    %v794 = vadd.f32 0.0, %v793
    %795 = vdwg.mxu0
    %797 = vrot.lane.b32.xlu0 %v794, 16
    %v798 = vpop.permute.xlu0 %797
    %800 = vst.msk [vmem:[#allocation2 + $0x8] sm:$0xff] %vm514, %v798
    %801 = vrot.lane.b32.xlu0 %v299, 104
    %v802 = vpop.permute.xlu0 %801
    %803 = vrot.lane.b32.xlu0 %v299, 72
    %v804 = vpop.permute.xlu0 %803
    %v805 = vsel %vm304, %v802, 0
    %v807 = vsel %vm304, %v804, 0
    %809 = vmatpush.xpose.msra.mxu0 0.0
    %810 = vmatpush.xpose.msra.mxu0 0.0
    %811 = vmatpush.xpose.msra.mxu0 0.0
    %812 = vmatpush.xpose.msra.mxu0 0.0
    %813 = vmatpush.xpose.msra.mxu0 0.0
    %814 = vmatpush.xpose.msra.mxu0 0.0
    %815 = vmatpush.xpose.msra.mxu0 0.0
    %816 = vmatpush.xpose.msra.mxu0 0.0
    %817 = vmatpush.xpose.msra.mxu0 0.0
    %818 = vmatpush.xpose.msra.mxu0 0.0
    %819 = vmatpush.xpose.msra.mxu0 0.0
    %820 = vmatpush.xpose.msra.mxu0 0.0
    %821 = vmatpush.xpose.msra.mxu0 0.0
    %822 = vmatpush.xpose.msra.mxu0 0.0
    %823 = vmatpush.xpose.msra.mxu0 0.0
    %824 = vmatpush.xpose.msra.mxu0 %v807
    %825 = vmatmul.f32.gmra.mxu0 %v805
    %v826 = vpop.f32.mrf.mxu0
    %v827 = vadd.f32 0.0, %v826
    %828 = vdwg.mxu0
    %v829 = vmul.f32 %v827, 0.35355338
    %v830 = vadd.f32 %v829, %v617
    %v831 = vsel %vm304, %v830, -inf
    %832 = vmax.xlane.f32.xlu0 %v831
    %v833 = vpop.xlane.xlu0 %832
    %v834 = vsub.f32 %v830, %v833
    %v835 = vmul.f32 %v834, 1.442695
    %v836 = vpow.pop %v835
    %v837 = vsel %vm304, %v836, 0.0
    %838 = vadd.xlane.f32.xlu0 %v837
    %v839 = vpop.xlane.xlu0 %838
    %v840 = vrcp.pop %v839
    %v841 = vmul.f32 %v836, %v840
    %842 = vrot.lane.b32.xlu0 %v299, 40
    %v843 = vpop.permute.xlu0 %842
    %v846 = vsel %vm304, %v841, 0
    %848 = vmatpush.msra.mxu0 0.0
    %849 = vmatpush.msra.mxu0 0.0
    %850 = vmatpush.msra.mxu0 0.0
    %851 = vmatpush.msra.mxu0 0.0
    %852 = vmatpush.msra.mxu0 0.0
    %853 = vmatpush.msra.mxu0 0.0
    %854 = vmatpush.msra.mxu0 0.0
    %855 = vmatpush.msra.mxu0 0.0
    %856 = vmatpush.msra.mxu0 0.0
    %857 = vmatpush.msra.mxu0 0.0
    %858 = vmatpush.msra.mxu0 0.0
    %859 = vmatpush.msra.mxu0 0.0
    %860 = vmatpush.msra.mxu0 0.0
    %861 = vmatpush.msra.mxu0 0.0
    %862 = vmatpush.msra.mxu0 0.0
    %863 = vmatpush.msra.mxu0 %v843
    %864 = vmatmul.f32.gmra.mxu0 %v846
    %v865 = vpop.f32.mrf.mxu0
    %v866 = vadd.f32 0.0, %v865
    %867 = vdwg.mxu0
    %869 = vrot.lane.b32.xlu0 %v866, 24
    %v870 = vpop.permute.xlu0 %869
    %872 = vst.msk [vmem:[#allocation2 + $0x8] sm:$0xff] %vm587, %v870
    %v873 = vld [vmem:[#allocation2] sm:$0xff]
    %v874 = vld [vmem:[#allocation2 + $0x8] sm:$0xff]
    %v875 = vld [vmem:[#allocation6] sm:$0xff]
    %v876 = vld [vmem:[#allocation6 + $0x8] sm:$0xff]
    %v877 = vld [vmem:[#allocation6 + $0x10] sm:$0xff]
    %v878 = vld [vmem:[#allocation6 + $0x18] sm:$0xff]
    %v879 = vld [vmem:[%s11] sm:$0x1]
    %v881 = vperm.slane %v879, 0
    %v884 = vsel %vm271, %v873, 0
    %v887 = vsel %vm271, %v874, 0
    %889 = vmatpush.msra.mxu0 0.0
    %890 = vmatpush.msra.mxu0 0.0
    %891 = vmatpush.msra.mxu0 0.0
    %892 = vmatpush.msra.mxu0 0.0
    %893 = vmatpush.msra.mxu0 0.0
    %894 = vmatpush.msra.mxu0 0.0
    %895 = vmatpush.msra.mxu0 0.0
    %896 = vmatpush.msra.mxu0 0.0
    %897 = vmatpush.msra.mxu0 0.0
    %898 = vmatpush.msra.mxu0 0.0
    %899 = vmatpush.msra.mxu0 0.0
    %900 = vmatpush.msra.mxu0 0.0
    %901 = vmatpush.msra.mxu0 %v878
    %902 = vmatpush.msra.mxu0 %v877
    %903 = vmatpush.msra.mxu0 %v876
    %904 = vmatpush.msra.mxu0 %v875
    %905 = vmatmul.f32.gmra.mxu0 %v884
    %v906 = vpop.f32.mrf.mxu0
    %v907 = vadd.f32 %v881, %v906
    %908 = vmatmul.f32.gmra.mxu0 %v887
    %v909 = vpop.f32.mrf.mxu0
    %v910 = vadd.f32 %v881, %v909
    %911 = vdwg.mxu0
    %v912 = vadd.f32 %v260, %v907
    %v913 = vadd.f32 %v261, %v910
    %v914 = vld [vmem:[%s13] sm:$0x1]
    %v915 = vld [vmem:[%s15] sm:$0x1]
    %v916 = vsel %vm271, %v912, 0.0
    %917 = vadd.xlane.f32.xlu0 %v916
    %v918 = vpop.xlane.xlu0 %917
    %v919 = vsel %vm271, %v913, 0.0
    %920 = vadd.xlane.f32.xlu0 %v919
    %v921 = vpop.xlane.xlu0 %920
    %v922 = vrcp.pop 32.0
    %v923 = vmul.f32 32.0, %v922
    %v924 = vsub.f32 1.0, %v923
    %v925 = vmul.f32 %v922, %v924
    %v926 = vadd.f32 %v922, %v925
    %vm927 = vweird.f32 %v922
    %v928 = vsel %vm927, %v922, %v926
    %v929 = vmul.f32 %v918, %v928
    %v930 = vmul.f32 %v921, %v928
    %v931 = vsub.f32 %v912, %v929
    %v932 = vsub.f32 %v913, %v930
    %v933 = vmul.f32 %v931, %v931
    %v934 = vmul.f32 %v932, %v932
    %v935 = vsel %vm271, %v933, 0.0
    %936 = vadd.xlane.f32.xlu0 %v935
    %v937 = vpop.xlane.xlu0 %936
    %v938 = vsel %vm271, %v934, 0.0
    %939 = vadd.xlane.f32.xlu0 %v938
    %v940 = vpop.xlane.xlu0 %939
    %v941 = vmul.f32 %v937, %v928
    %v942 = vmul.f32 %v940, %v928
    %v943 = vadd.f32 %v941, 1e-05
    %v944 = vadd.f32 %v942, 1e-05
    %v945 = vrsqrt.pop %v943
    %v946 = vmul.f32 %v945, %v943
    %v947 = vmul.f32 %v946, %v945
    %v948 = vmul.f32 0.5, %v947
    %v949 = vsub.f32 1.5, %v948
    %v950 = vmul.f32 %v945, %v949
    %vm951 = vweird.f32 %v943
    %vm952 = vweird.f32 %v945
    %vm953 = vmor %vm951, %vm952
    %v954 = vsel %vm953, %v945, %v950
    %v955 = vrsqrt.pop %v944
    %v956 = vmul.f32 %v955, %v944
    %v957 = vmul.f32 %v956, %v955
    %v958 = vmul.f32 0.5, %v957
    %v959 = vsub.f32 1.5, %v958
    %v960 = vmul.f32 %v955, %v959
    %vm961 = vweird.f32 %v944
    %vm962 = vweird.f32 %v955
    %vm963 = vmor %vm961, %vm962
    %v964 = vsel %vm963, %v955, %v960
    %v965 = vmul.f32 %v931, %v954
    %v966 = vmul.f32 %v932, %v964
    %v968 = vperm.slane %v914, 0
    %v970 = vmul.f32 %v965, %v968
    %v971 = vmul.f32 %v966, %v968
    %v973 = vperm.slane %v915, 0
    %v975 = vadd.f32 %v970, %v973
    %v976 = vadd.f32 %v971, %v973
    %v977 = vld [vmem:[#allocation8] sm:$0xff]
    %v978 = vld [vmem:[#allocation8 + $0x8] sm:$0xff]
    %v979 = vld [vmem:[#allocation8 + $0x10] sm:$0xff]
    %v980 = vld [vmem:[#allocation8 + $0x18] sm:$0xff]
    %v981 = vld [vmem:[%s19] sm:$0x1]
    %v983 = vperm.slane %v981, 0
    %v986 = vsel %vm271, %v975, 0
    %v989 = vsel %vm271, %v976, 0
    %991 = vmatpush.msra.mxu0 0.0
    %992 = vmatpush.msra.mxu0 0.0
    %993 = vmatpush.msra.mxu0 0.0
    %994 = vmatpush.msra.mxu0 0.0
    %995 = vmatpush.msra.mxu0 0.0
    %996 = vmatpush.msra.mxu0 0.0
    %997 = vmatpush.msra.mxu0 0.0
    %998 = vmatpush.msra.mxu0 0.0
    %999 = vmatpush.msra.mxu0 0.0
    %1000 = vmatpush.msra.mxu0 0.0
    %1001 = vmatpush.msra.mxu0 0.0
    %1002 = vmatpush.msra.mxu0 0.0
    %1003 = vmatpush.msra.mxu0 %v980
    %1004 = vmatpush.msra.mxu0 %v979
    %1005 = vmatpush.msra.mxu0 %v978
    %1006 = vmatpush.msra.mxu0 %v977
    %1007 = vmatmul.f32.gmra.mxu0 %v986
    %v1008 = vpop.f32.mrf.mxu0
    %v1009 = vadd.f32 %v983, %v1008
    %1010 = vmatmul.f32.gmra.mxu0 %v989
    %v1011 = vpop.f32.mrf.mxu0
    %v1012 = vadd.f32 %v983, %v1011
    %1013 = vdwg.mxu0
    %v1014 = vmax.f32 %v1009, 0.0
    %v1015 = vmax.f32 %v1012, 0.0
    %v1016 = vld [vmem:[%s21] sm:$0xff]
    %v1017 = vld [vmem:[%s21 + $0x8] sm:$0xff]
    %v1018 = vld [vmem:[%s21 + $0x10] sm:$0xff]
    %v1019 = vld [vmem:[%s21 + $0x18] sm:$0xff]
    %v1020 = vld [vmem:[%s21 + $0x20] sm:$0xff]
    %v1021 = vld [vmem:[%s21 + $0x28] sm:$0xff]
    %v1022 = vld [vmem:[%s21 + $0x30] sm:$0xff]
    %v1023 = vld [vmem:[%s21 + $0x38] sm:$0xff]
    %v1024 = vld [vmem:[%s23] sm:$0x1]
    %v1026 = vperm.slane %v1024, 0
    %vm1028 = vcmask 523264
    %v1030 = vsel %vm1028, %v1014, 0
    %v1033 = vsel %vm1028, %v1015, 0
    %1035 = vmatpush.msra.mxu0 0.0
    %1036 = vmatpush.msra.mxu0 0.0
    %1037 = vmatpush.msra.mxu0 0.0
    %1038 = vmatpush.msra.mxu0 0.0
    %1039 = vmatpush.msra.mxu0 0.0
    %1040 = vmatpush.msra.mxu0 0.0
    %1041 = vmatpush.msra.mxu0 0.0
    %1042 = vmatpush.msra.mxu0 0.0
    %1043 = vmatpush.msra.mxu0 %v1023
    %1044 = vmatpush.msra.mxu0 %v1022
    %1045 = vmatpush.msra.mxu0 %v1021
    %1046 = vmatpush.msra.mxu0 %v1020
    %1047 = vmatpush.msra.mxu0 %v1019
    %1048 = vmatpush.msra.mxu0 %v1018
    %1049 = vmatpush.msra.mxu0 %v1017
    %1050 = vmatpush.msra.mxu0 %v1016
    %1051 = vmatmul.f32.gmra.mxu0 %v1030
    %v1052 = vpop.f32.mrf.mxu0
    %v1053 = vadd.f32 %v1026, %v1052
    %1054 = vmatmul.f32.gmra.mxu0 %v1033
    %v1055 = vpop.f32.mrf.mxu0
    %v1056 = vadd.f32 %v1026, %v1055
    %1057 = vdwg.mxu0
    %v1058 = vadd.f32 %v975, %v1053
    %v1059 = vadd.f32 %v976, %v1056
    %v1060 = vld [vmem:[%s25] sm:$0x1]
    %v1061 = vld [vmem:[%s27] sm:$0x1]
    %v1062 = vsel %vm271, %v1058, 0.0
    %1063 = vadd.xlane.f32.xlu0 %v1062
    %v1064 = vpop.xlane.xlu0 %1063
    %v1065 = vsel %vm271, %v1059, 0.0
    %1066 = vadd.xlane.f32.xlu0 %v1065
    %v1067 = vpop.xlane.xlu0 %1066
    %v1068 = vmul.f32 %v1064, %v928
    %v1069 = vmul.f32 %v1067, %v928
    %v1070 = vsub.f32 %v1058, %v1068
    %v1071 = vsub.f32 %v1059, %v1069
    %v1072 = vmul.f32 %v1070, %v1070
    %v1073 = vmul.f32 %v1071, %v1071
    %v1074 = vsel %vm271, %v1072, 0.0
    %1075 = vadd.xlane.f32.xlu0 %v1074
    %v1076 = vpop.xlane.xlu0 %1075
    %v1077 = vsel %vm271, %v1073, 0.0
    %1078 = vadd.xlane.f32.xlu0 %v1077
    %v1079 = vpop.xlane.xlu0 %1078
    %v1080 = vmul.f32 %v1076, %v928
    %v1081 = vmul.f32 %v1079, %v928
    %v1082 = vadd.f32 %v1080, 1e-05
    %v1083 = vadd.f32 %v1081, 1e-05
    %v1084 = vrsqrt.pop %v1082
    %v1085 = vmul.f32 %v1084, %v1082
    %v1086 = vmul.f32 %v1085, %v1084
    %v1087 = vmul.f32 0.5, %v1086
    %v1088 = vsub.f32 1.5, %v1087
    %v1089 = vmul.f32 %v1084, %v1088
    %vm1090 = vweird.f32 %v1082
    %vm1091 = vweird.f32 %v1084
    %vm1092 = vmor %vm1090, %vm1091
    %v1093 = vsel %vm1092, %v1084, %v1089
    %v1094 = vrsqrt.pop %v1083
    %v1095 = vmul.f32 %v1094, %v1083
    %v1096 = vmul.f32 %v1095, %v1094
    %v1097 = vmul.f32 0.5, %v1096
    %v1098 = vsub.f32 1.5, %v1097
    %v1099 = vmul.f32 %v1094, %v1098
    %vm1100 = vweird.f32 %v1083
    %vm1101 = vweird.f32 %v1094
    %vm1102 = vmor %vm1100, %vm1101
    %v1103 = vsel %vm1102, %v1094, %v1099
    %v1104 = vmul.f32 %v1070, %v1093
    %v1105 = vmul.f32 %v1071, %v1103
    %v1107 = vperm.slane %v1060, 0
    %v1109 = vmul.f32 %v1104, %v1107
    %v1110 = vmul.f32 %v1105, %v1107
    %v1112 = vperm.slane %v1061, 0
    %v1114 = vadd.f32 %v1109, %v1112
    %v1115 = vadd.f32 %v1110, %v1112
    %v1116 = vld [vmem:[#allocation9] sm:$0xff]
    %v1117 = vld [vmem:[#allocation9 + $0x8] sm:$0xff]
    %v1118 = vld [vmem:[#allocation9 + $0x10] sm:$0xff]
    %v1119 = vld [vmem:[#allocation9 + $0x18] sm:$0xff]
    %v1120 = vld [vmem:[%s31] sm:$0x1]
    %v1122 = vperm.slane %v1120, 0
    %v1125 = vsel %vm271, %v1114, 0
    %v1128 = vsel %vm271, %v1115, 0
    %1130 = vmatpush.msra.mxu0 0.0
    %1131 = vmatpush.msra.mxu0 0.0
    %1132 = vmatpush.msra.mxu0 0.0
    %1133 = vmatpush.msra.mxu0 0.0
    %1134 = vmatpush.msra.mxu0 0.0
    %1135 = vmatpush.msra.mxu0 0.0
    %1136 = vmatpush.msra.mxu0 0.0
    %1137 = vmatpush.msra.mxu0 0.0
    %1138 = vmatpush.msra.mxu0 0.0
    %1139 = vmatpush.msra.mxu0 0.0
    %1140 = vmatpush.msra.mxu0 0.0
    %1141 = vmatpush.msra.mxu0 0.0
    %1142 = vmatpush.msra.mxu0 %v1119
    %1143 = vmatpush.msra.mxu0 %v1118
    %1144 = vmatpush.msra.mxu0 %v1117
    %1145 = vmatpush.msra.mxu0 %v1116
    %1146 = vmatmul.f32.gmra.mxu0 %v1125
    %v1147 = vpop.f32.mrf.mxu0
    %v1148 = vadd.f32 %v1122, %v1147
    %1149 = vmatmul.f32.gmra.mxu0 %v1128
    %v1150 = vpop.f32.mrf.mxu0
    %v1151 = vadd.f32 %v1122, %v1150
    %1152 = vdwg.mxu0
    %1154 = vrot.lane.b32.xlu0 %v1148, 96
    %v1155 = vpop.permute.xlu0 %1154
    %v1156 = vsel %vm304, %v1148, 0
    %v1158 = vsel %vm304, %v1155, 0
    %1160 = vmatpush.xpose.msra.mxu0 0.0
    %1161 = vmatpush.xpose.msra.mxu0 0.0
    %1162 = vmatpush.xpose.msra.mxu0 0.0
    %1163 = vmatpush.xpose.msra.mxu0 0.0
    %1164 = vmatpush.xpose.msra.mxu0 0.0
    %1165 = vmatpush.xpose.msra.mxu0 0.0
    %1166 = vmatpush.xpose.msra.mxu0 0.0
    %1167 = vmatpush.xpose.msra.mxu0 0.0
    %1168 = vmatpush.xpose.msra.mxu0 0.0
    %1169 = vmatpush.xpose.msra.mxu0 0.0
    %1170 = vmatpush.xpose.msra.mxu0 0.0
    %1171 = vmatpush.xpose.msra.mxu0 0.0
    %1172 = vmatpush.xpose.msra.mxu0 0.0
    %1173 = vmatpush.xpose.msra.mxu0 0.0
    %1174 = vmatpush.xpose.msra.mxu0 0.0
    %1175 = vmatpush.xpose.msra.mxu0 %v1158
    %1176 = vmatmul.f32.gmra.mxu0 %v1156
    %v1177 = vpop.f32.mrf.mxu0
    %v1178 = vadd.f32 0.0, %v1177
    %1179 = vdwg.mxu0
    %v1180 = vmul.f32 %v1178, 0.35355338
    %v1181 = vadd.f32 %v1180, %v330
    %v1182 = vsel %vm304, %v1181, -inf
    %1183 = vmax.xlane.f32.xlu0 %v1182
    %v1184 = vpop.xlane.xlu0 %1183
    %v1185 = vsub.f32 %v1181, %v1184
    %v1186 = vmul.f32 %v1185, 1.442695
    %v1187 = vpow.pop %v1186
    %v1188 = vsel %vm304, %v1187, 0.0
    %1189 = vadd.xlane.f32.xlu0 %v1188
    %v1190 = vpop.xlane.xlu0 %1189
    %v1191 = vrcp.pop %v1190
    %v1192 = vmul.f32 %v1187, %v1191
    %1193 = vrot.lane.b32.xlu0 %v1148, 64
    %v1194 = vpop.permute.xlu0 %1193
    %v1197 = vsel %vm304, %v1192, 0
    %1199 = vmatpush.msra.mxu0 0.0
    %1200 = vmatpush.msra.mxu0 0.0
    %1201 = vmatpush.msra.mxu0 0.0
    %1202 = vmatpush.msra.mxu0 0.0
    %1203 = vmatpush.msra.mxu0 0.0
    %1204 = vmatpush.msra.mxu0 0.0
    %1205 = vmatpush.msra.mxu0 0.0
    %1206 = vmatpush.msra.mxu0 0.0
    %1207 = vmatpush.msra.mxu0 0.0
    %1208 = vmatpush.msra.mxu0 0.0
    %1209 = vmatpush.msra.mxu0 0.0
    %1210 = vmatpush.msra.mxu0 0.0
    %1211 = vmatpush.msra.mxu0 0.0
    %1212 = vmatpush.msra.mxu0 0.0
    %1213 = vmatpush.msra.mxu0 0.0
    %1214 = vmatpush.msra.mxu0 %v1194
    %1215 = vmatmul.f32.gmra.mxu0 %v1197
    %v1216 = vpop.f32.mrf.mxu0
    %v1217 = vadd.f32 0.0, %v1216
    %1218 = vdwg.mxu0
    %1219 = vst.msk [vmem:[#allocation2] sm:$0xff] %vm304, %v1217
    %1220 = vrot.lane.b32.xlu0 %v1148, 120
    %v1221 = vpop.permute.xlu0 %1220
    %1222 = vrot.lane.b32.xlu0 %v1148, 88
    %v1223 = vpop.permute.xlu0 %1222
    %v1224 = vsel %vm304, %v1221, 0
    %v1226 = vsel %vm304, %v1223, 0
    %1228 = vmatpush.xpose.msra.mxu0 0.0
    %1229 = vmatpush.xpose.msra.mxu0 0.0
    %1230 = vmatpush.xpose.msra.mxu0 0.0
    %1231 = vmatpush.xpose.msra.mxu0 0.0
    %1232 = vmatpush.xpose.msra.mxu0 0.0
    %1233 = vmatpush.xpose.msra.mxu0 0.0
    %1234 = vmatpush.xpose.msra.mxu0 0.0
    %1235 = vmatpush.xpose.msra.mxu0 0.0
    %1236 = vmatpush.xpose.msra.mxu0 0.0
    %1237 = vmatpush.xpose.msra.mxu0 0.0
    %1238 = vmatpush.xpose.msra.mxu0 0.0
    %1239 = vmatpush.xpose.msra.mxu0 0.0
    %1240 = vmatpush.xpose.msra.mxu0 0.0
    %1241 = vmatpush.xpose.msra.mxu0 0.0
    %1242 = vmatpush.xpose.msra.mxu0 0.0
    %1243 = vmatpush.xpose.msra.mxu0 %v1226
    %1244 = vmatmul.f32.gmra.mxu0 %v1224
    %v1245 = vpop.f32.mrf.mxu0
    %v1246 = vadd.f32 0.0, %v1245
    %1247 = vdwg.mxu0
    %v1248 = vmul.f32 %v1246, 0.35355338
    %v1249 = vadd.f32 %v1248, %v330
    %v1250 = vsel %vm304, %v1249, -inf
    %1251 = vmax.xlane.f32.xlu0 %v1250
    %v1252 = vpop.xlane.xlu0 %1251
    %v1253 = vsub.f32 %v1249, %v1252
    %v1254 = vmul.f32 %v1253, 1.442695
    %v1255 = vpow.pop %v1254
    %v1256 = vsel %vm304, %v1255, 0.0
    %1257 = vadd.xlane.f32.xlu0 %v1256
    %v1258 = vpop.xlane.xlu0 %1257
    %v1259 = vrcp.pop %v1258
    %v1260 = vmul.f32 %v1255, %v1259
    %1261 = vrot.lane.b32.xlu0 %v1148, 56
    %v1262 = vpop.permute.xlu0 %1261
    %v1265 = vsel %vm304, %v1260, 0
    %1267 = vmatpush.msra.mxu0 0.0
    %1268 = vmatpush.msra.mxu0 0.0
    %1269 = vmatpush.msra.mxu0 0.0
    %1270 = vmatpush.msra.mxu0 0.0
    %1271 = vmatpush.msra.mxu0 0.0
    %1272 = vmatpush.msra.mxu0 0.0
    %1273 = vmatpush.msra.mxu0 0.0
    %1274 = vmatpush.msra.mxu0 0.0
    %1275 = vmatpush.msra.mxu0 0.0
    %1276 = vmatpush.msra.mxu0 0.0
    %1277 = vmatpush.msra.mxu0 0.0
    %1278 = vmatpush.msra.mxu0 0.0
    %1279 = vmatpush.msra.mxu0 0.0
    %1280 = vmatpush.msra.mxu0 0.0
    %1281 = vmatpush.msra.mxu0 0.0
    %1282 = vmatpush.msra.mxu0 %v1262
    %1283 = vmatmul.f32.gmra.mxu0 %v1265
    %v1284 = vpop.f32.mrf.mxu0
    %v1285 = vadd.f32 0.0, %v1284
    %1286 = vdwg.mxu0
    %1288 = vrot.lane.b32.xlu0 %v1285, 8
    %v1289 = vpop.permute.xlu0 %1288
    %1291 = vst.msk [vmem:[#allocation2] sm:$0xff] %vm441, %v1289
    %1292 = vrot.lane.b32.xlu0 %v1148, 112
    %v1293 = vpop.permute.xlu0 %1292
    %1294 = vrot.lane.b32.xlu0 %v1148, 80
    %v1295 = vpop.permute.xlu0 %1294
    %v1296 = vsel %vm304, %v1293, 0
    %v1298 = vsel %vm304, %v1295, 0
    %1300 = vmatpush.xpose.msra.mxu0 0.0
    %1301 = vmatpush.xpose.msra.mxu0 0.0
    %1302 = vmatpush.xpose.msra.mxu0 0.0
    %1303 = vmatpush.xpose.msra.mxu0 0.0
    %1304 = vmatpush.xpose.msra.mxu0 0.0
    %1305 = vmatpush.xpose.msra.mxu0 0.0
    %1306 = vmatpush.xpose.msra.mxu0 0.0
    %1307 = vmatpush.xpose.msra.mxu0 0.0
    %1308 = vmatpush.xpose.msra.mxu0 0.0
    %1309 = vmatpush.xpose.msra.mxu0 0.0
    %1310 = vmatpush.xpose.msra.mxu0 0.0
    %1311 = vmatpush.xpose.msra.mxu0 0.0
    %1312 = vmatpush.xpose.msra.mxu0 0.0
    %1313 = vmatpush.xpose.msra.mxu0 0.0
    %1314 = vmatpush.xpose.msra.mxu0 0.0
    %1315 = vmatpush.xpose.msra.mxu0 %v1298
    %1316 = vmatmul.f32.gmra.mxu0 %v1296
    %v1317 = vpop.f32.mrf.mxu0
    %v1318 = vadd.f32 0.0, %v1317
    %1319 = vdwg.mxu0
    %v1320 = vmul.f32 %v1318, 0.35355338
    %v1321 = vadd.f32 %v1320, %v330
    %v1322 = vsel %vm304, %v1321, -inf
    %1323 = vmax.xlane.f32.xlu0 %v1322
    %v1324 = vpop.xlane.xlu0 %1323
    %v1325 = vsub.f32 %v1321, %v1324
    %v1326 = vmul.f32 %v1325, 1.442695
    %v1327 = vpow.pop %v1326
    %v1328 = vsel %vm304, %v1327, 0.0
    %1329 = vadd.xlane.f32.xlu0 %v1328
    %v1330 = vpop.xlane.xlu0 %1329
    %v1331 = vrcp.pop %v1330
    %v1332 = vmul.f32 %v1327, %v1331
    %1333 = vrot.lane.b32.xlu0 %v1148, 48
    %v1334 = vpop.permute.xlu0 %1333
    %v1337 = vsel %vm304, %v1332, 0
    %1339 = vmatpush.msra.mxu0 0.0
    %1340 = vmatpush.msra.mxu0 0.0
    %1341 = vmatpush.msra.mxu0 0.0
    %1342 = vmatpush.msra.mxu0 0.0
    %1343 = vmatpush.msra.mxu0 0.0
    %1344 = vmatpush.msra.mxu0 0.0
    %1345 = vmatpush.msra.mxu0 0.0
    %1346 = vmatpush.msra.mxu0 0.0
    %1347 = vmatpush.msra.mxu0 0.0
    %1348 = vmatpush.msra.mxu0 0.0
    %1349 = vmatpush.msra.mxu0 0.0
    %1350 = vmatpush.msra.mxu0 0.0
    %1351 = vmatpush.msra.mxu0 0.0
    %1352 = vmatpush.msra.mxu0 0.0
    %1353 = vmatpush.msra.mxu0 0.0
    %1354 = vmatpush.msra.mxu0 %v1334
    %1355 = vmatmul.f32.gmra.mxu0 %v1337
    %v1356 = vpop.f32.mrf.mxu0
    %v1357 = vadd.f32 0.0, %v1356
    %1358 = vdwg.mxu0
    %1360 = vrot.lane.b32.xlu0 %v1357, 16
    %v1361 = vpop.permute.xlu0 %1360
    %1363 = vst.msk [vmem:[#allocation2] sm:$0xff] %vm514, %v1361
    %1364 = vrot.lane.b32.xlu0 %v1148, 104
    %v1365 = vpop.permute.xlu0 %1364
    %1366 = vrot.lane.b32.xlu0 %v1148, 72
    %v1367 = vpop.permute.xlu0 %1366
    %v1368 = vsel %vm304, %v1365, 0
    %v1370 = vsel %vm304, %v1367, 0
    %1372 = vmatpush.xpose.msra.mxu0 0.0
    %1373 = vmatpush.xpose.msra.mxu0 0.0
    %1374 = vmatpush.xpose.msra.mxu0 0.0
    %1375 = vmatpush.xpose.msra.mxu0 0.0
    %1376 = vmatpush.xpose.msra.mxu0 0.0
    %1377 = vmatpush.xpose.msra.mxu0 0.0
    %1378 = vmatpush.xpose.msra.mxu0 0.0
    %1379 = vmatpush.xpose.msra.mxu0 0.0
    %1380 = vmatpush.xpose.msra.mxu0 0.0
    %1381 = vmatpush.xpose.msra.mxu0 0.0
    %1382 = vmatpush.xpose.msra.mxu0 0.0
    %1383 = vmatpush.xpose.msra.mxu0 0.0
    %1384 = vmatpush.xpose.msra.mxu0 0.0
    %1385 = vmatpush.xpose.msra.mxu0 0.0
    %1386 = vmatpush.xpose.msra.mxu0 0.0
    %1387 = vmatpush.xpose.msra.mxu0 %v1370
    %1388 = vmatmul.f32.gmra.mxu0 %v1368
    %v1389 = vpop.f32.mrf.mxu0
    %v1390 = vadd.f32 0.0, %v1389
    %1391 = vdwg.mxu0
    %v1392 = vmul.f32 %v1390, 0.35355338
    %v1393 = vadd.f32 %v1392, %v330
    %v1394 = vsel %vm304, %v1393, -inf
    %1395 = vmax.xlane.f32.xlu0 %v1394
    %v1396 = vpop.xlane.xlu0 %1395
    %v1397 = vsub.f32 %v1393, %v1396
    %v1398 = vmul.f32 %v1397, 1.442695
    %v1399 = vpow.pop %v1398
    %v1400 = vsel %vm304, %v1399, 0.0
    %1401 = vadd.xlane.f32.xlu0 %v1400
    %v1402 = vpop.xlane.xlu0 %1401
    %v1403 = vrcp.pop %v1402
    %v1404 = vmul.f32 %v1399, %v1403
    %1405 = vrot.lane.b32.xlu0 %v1148, 40
    %v1406 = vpop.permute.xlu0 %1405
    %v1409 = vsel %vm304, %v1404, 0
    %1411 = vmatpush.msra.mxu0 0.0
    %1412 = vmatpush.msra.mxu0 0.0
    %1413 = vmatpush.msra.mxu0 0.0
    %1414 = vmatpush.msra.mxu0 0.0
    %1415 = vmatpush.msra.mxu0 0.0
    %1416 = vmatpush.msra.mxu0 0.0
    %1417 = vmatpush.msra.mxu0 0.0
    %1418 = vmatpush.msra.mxu0 0.0
    %1419 = vmatpush.msra.mxu0 0.0
    %1420 = vmatpush.msra.mxu0 0.0
    %1421 = vmatpush.msra.mxu0 0.0
    %1422 = vmatpush.msra.mxu0 0.0
    %1423 = vmatpush.msra.mxu0 0.0
    %1424 = vmatpush.msra.mxu0 0.0
    %1425 = vmatpush.msra.mxu0 0.0
    %1426 = vmatpush.msra.mxu0 %v1406
    %1427 = vmatmul.f32.gmra.mxu0 %v1409
    %v1428 = vpop.f32.mrf.mxu0
    %v1429 = vadd.f32 0.0, %v1428
    %1430 = vdwg.mxu0
    %1432 = vrot.lane.b32.xlu0 %v1429, 24
    %v1433 = vpop.permute.xlu0 %1432
    %1435 = vst.msk [vmem:[#allocation2] sm:$0xff] %vm587, %v1433
    %1437 = vrot.lane.b32.xlu0 %v1151, 96
    %v1438 = vpop.permute.xlu0 %1437
    %v1439 = vsel %vm304, %v1151, 0
    %v1441 = vsel %vm304, %v1438, 0
    %1443 = vmatpush.xpose.msra.mxu0 0.0
    %1444 = vmatpush.xpose.msra.mxu0 0.0
    %1445 = vmatpush.xpose.msra.mxu0 0.0
    %1446 = vmatpush.xpose.msra.mxu0 0.0
    %1447 = vmatpush.xpose.msra.mxu0 0.0
    %1448 = vmatpush.xpose.msra.mxu0 0.0
    %1449 = vmatpush.xpose.msra.mxu0 0.0
    %1450 = vmatpush.xpose.msra.mxu0 0.0
    %1451 = vmatpush.xpose.msra.mxu0 0.0
    %1452 = vmatpush.xpose.msra.mxu0 0.0
    %1453 = vmatpush.xpose.msra.mxu0 0.0
    %1454 = vmatpush.xpose.msra.mxu0 0.0
    %1455 = vmatpush.xpose.msra.mxu0 0.0
    %1456 = vmatpush.xpose.msra.mxu0 0.0
    %1457 = vmatpush.xpose.msra.mxu0 0.0
    %1458 = vmatpush.xpose.msra.mxu0 %v1441
    %1459 = vmatmul.f32.gmra.mxu0 %v1439
    %v1460 = vpop.f32.mrf.mxu0
    %v1461 = vadd.f32 0.0, %v1460
    %1462 = vdwg.mxu0
    %v1463 = vmul.f32 %v1461, 0.35355338
    %v1464 = vadd.f32 %v1463, %v617
    %v1465 = vsel %vm304, %v1464, -inf
    %1466 = vmax.xlane.f32.xlu0 %v1465
    %v1467 = vpop.xlane.xlu0 %1466
    %v1468 = vsub.f32 %v1464, %v1467
    %v1469 = vmul.f32 %v1468, 1.442695
    %v1470 = vpow.pop %v1469
    %v1471 = vsel %vm304, %v1470, 0.0
    %1472 = vadd.xlane.f32.xlu0 %v1471
    %v1473 = vpop.xlane.xlu0 %1472
    %v1474 = vrcp.pop %v1473
    %v1475 = vmul.f32 %v1470, %v1474
    %1476 = vrot.lane.b32.xlu0 %v1151, 64
    %v1477 = vpop.permute.xlu0 %1476
    %v1480 = vsel %vm304, %v1475, 0
    %1482 = vmatpush.msra.mxu0 0.0
    %1483 = vmatpush.msra.mxu0 0.0
    %1484 = vmatpush.msra.mxu0 0.0
    %1485 = vmatpush.msra.mxu0 0.0
    %1486 = vmatpush.msra.mxu0 0.0
    %1487 = vmatpush.msra.mxu0 0.0
    %1488 = vmatpush.msra.mxu0 0.0
    %1489 = vmatpush.msra.mxu0 0.0
    %1490 = vmatpush.msra.mxu0 0.0
    %1491 = vmatpush.msra.mxu0 0.0
    %1492 = vmatpush.msra.mxu0 0.0
    %1493 = vmatpush.msra.mxu0 0.0
    %1494 = vmatpush.msra.mxu0 0.0
    %1495 = vmatpush.msra.mxu0 0.0
    %1496 = vmatpush.msra.mxu0 0.0
    %1497 = vmatpush.msra.mxu0 %v1477
    %1498 = vmatmul.f32.gmra.mxu0 %v1480
    %v1499 = vpop.f32.mrf.mxu0
    %v1500 = vadd.f32 0.0, %v1499
    %1501 = vdwg.mxu0
    %1502 = vst.msk [vmem:[#allocation2 + $0x8] sm:$0xff] %vm304, %v1500
    %1503 = vrot.lane.b32.xlu0 %v1151, 120
    %v1504 = vpop.permute.xlu0 %1503
    %1505 = vrot.lane.b32.xlu0 %v1151, 88
    %v1506 = vpop.permute.xlu0 %1505
    %v1507 = vsel %vm304, %v1504, 0
    %v1509 = vsel %vm304, %v1506, 0
    %1511 = vmatpush.xpose.msra.mxu0 0.0
    %1512 = vmatpush.xpose.msra.mxu0 0.0
    %1513 = vmatpush.xpose.msra.mxu0 0.0
    %1514 = vmatpush.xpose.msra.mxu0 0.0
    %1515 = vmatpush.xpose.msra.mxu0 0.0
    %1516 = vmatpush.xpose.msra.mxu0 0.0
    %1517 = vmatpush.xpose.msra.mxu0 0.0
    %1518 = vmatpush.xpose.msra.mxu0 0.0
    %1519 = vmatpush.xpose.msra.mxu0 0.0
    %1520 = vmatpush.xpose.msra.mxu0 0.0
    %1521 = vmatpush.xpose.msra.mxu0 0.0
    %1522 = vmatpush.xpose.msra.mxu0 0.0
    %1523 = vmatpush.xpose.msra.mxu0 0.0
    %1524 = vmatpush.xpose.msra.mxu0 0.0
    %1525 = vmatpush.xpose.msra.mxu0 0.0
    %1526 = vmatpush.xpose.msra.mxu0 %v1509
    %1527 = vmatmul.f32.gmra.mxu0 %v1507
    %v1528 = vpop.f32.mrf.mxu0
    %v1529 = vadd.f32 0.0, %v1528
    %1530 = vdwg.mxu0
    %v1531 = vmul.f32 %v1529, 0.35355338
    %v1532 = vadd.f32 %v1531, %v617
    %v1533 = vsel %vm304, %v1532, -inf
    %1534 = vmax.xlane.f32.xlu0 %v1533
    %v1535 = vpop.xlane.xlu0 %1534
    %v1536 = vsub.f32 %v1532, %v1535
    %v1537 = vmul.f32 %v1536, 1.442695
    %v1538 = vpow.pop %v1537
    %v1539 = vsel %vm304, %v1538, 0.0
    %1540 = vadd.xlane.f32.xlu0 %v1539
    %v1541 = vpop.xlane.xlu0 %1540
    %v1542 = vrcp.pop %v1541
    %v1543 = vmul.f32 %v1538, %v1542
    %1544 = vrot.lane.b32.xlu0 %v1151, 56
    %v1545 = vpop.permute.xlu0 %1544
    %v1548 = vsel %vm304, %v1543, 0
    %1550 = vmatpush.msra.mxu0 0.0
    %1551 = vmatpush.msra.mxu0 0.0
    %1552 = vmatpush.msra.mxu0 0.0
    %1553 = vmatpush.msra.mxu0 0.0
    %1554 = vmatpush.msra.mxu0 0.0
    %1555 = vmatpush.msra.mxu0 0.0
    %1556 = vmatpush.msra.mxu0 0.0
    %1557 = vmatpush.msra.mxu0 0.0
    %1558 = vmatpush.msra.mxu0 0.0
    %1559 = vmatpush.msra.mxu0 0.0
    %1560 = vmatpush.msra.mxu0 0.0
    %1561 = vmatpush.msra.mxu0 0.0
    %1562 = vmatpush.msra.mxu0 0.0
    %1563 = vmatpush.msra.mxu0 0.0
    %1564 = vmatpush.msra.mxu0 0.0
    %1565 = vmatpush.msra.mxu0 %v1545
    %1566 = vmatmul.f32.gmra.mxu0 %v1548
    %v1567 = vpop.f32.mrf.mxu0
    %v1568 = vadd.f32 0.0, %v1567
    %1569 = vdwg.mxu0
    %1571 = vrot.lane.b32.xlu0 %v1568, 8
    %v1572 = vpop.permute.xlu0 %1571
    %1574 = vst.msk [vmem:[#allocation2 + $0x8] sm:$0xff] %vm441, %v1572
    %1575 = vrot.lane.b32.xlu0 %v1151, 112
    %v1576 = vpop.permute.xlu0 %1575
    %1577 = vrot.lane.b32.xlu0 %v1151, 80
    %v1578 = vpop.permute.xlu0 %1577
    %v1579 = vsel %vm304, %v1576, 0
    %v1581 = vsel %vm304, %v1578, 0
    %1583 = vmatpush.xpose.msra.mxu0 0.0
    %1584 = vmatpush.xpose.msra.mxu0 0.0
    %1585 = vmatpush.xpose.msra.mxu0 0.0
    %1586 = vmatpush.xpose.msra.mxu0 0.0
    %1587 = vmatpush.xpose.msra.mxu0 0.0
    %1588 = vmatpush.xpose.msra.mxu0 0.0
    %1589 = vmatpush.xpose.msra.mxu0 0.0
    %1590 = vmatpush.xpose.msra.mxu0 0.0
    %1591 = vmatpush.xpose.msra.mxu0 0.0
    %1592 = vmatpush.xpose.msra.mxu0 0.0
    %1593 = vmatpush.xpose.msra.mxu0 0.0
    %1594 = vmatpush.xpose.msra.mxu0 0.0
    %1595 = vmatpush.xpose.msra.mxu0 0.0
    %1596 = vmatpush.xpose.msra.mxu0 0.0
    %1597 = vmatpush.xpose.msra.mxu0 0.0
    %1598 = vmatpush.xpose.msra.mxu0 %v1581
    %1599 = vmatmul.f32.gmra.mxu0 %v1579
    %v1600 = vpop.f32.mrf.mxu0
    %v1601 = vadd.f32 0.0, %v1600
    %1602 = vdwg.mxu0
    %v1603 = vmul.f32 %v1601, 0.35355338
    %v1604 = vadd.f32 %v1603, %v617
    %v1605 = vsel %vm304, %v1604, -inf
    %1606 = vmax.xlane.f32.xlu0 %v1605
    %v1607 = vpop.xlane.xlu0 %1606
    %v1608 = vsub.f32 %v1604, %v1607
    %v1609 = vmul.f32 %v1608, 1.442695
    %v1610 = vpow.pop %v1609
    %v1611 = vsel %vm304, %v1610, 0.0
    %1612 = vadd.xlane.f32.xlu0 %v1611
    %v1613 = vpop.xlane.xlu0 %1612
    %v1614 = vrcp.pop %v1613
    %v1615 = vmul.f32 %v1610, %v1614
    %1616 = vrot.lane.b32.xlu0 %v1151, 48
    %v1617 = vpop.permute.xlu0 %1616
    %v1620 = vsel %vm304, %v1615, 0
    %1622 = vmatpush.msra.mxu0 0.0
    %1623 = vmatpush.msra.mxu0 0.0
    %1624 = vmatpush.msra.mxu0 0.0
    %1625 = vmatpush.msra.mxu0 0.0
    %1626 = vmatpush.msra.mxu0 0.0
    %1627 = vmatpush.msra.mxu0 0.0
    %1628 = vmatpush.msra.mxu0 0.0
    %1629 = vmatpush.msra.mxu0 0.0
    %1630 = vmatpush.msra.mxu0 0.0
    %1631 = vmatpush.msra.mxu0 0.0
    %1632 = vmatpush.msra.mxu0 0.0
    %1633 = vmatpush.msra.mxu0 0.0
    %1634 = vmatpush.msra.mxu0 0.0
    %1635 = vmatpush.msra.mxu0 0.0
    %1636 = vmatpush.msra.mxu0 0.0
    %1637 = vmatpush.msra.mxu0 %v1617
    %1638 = vmatmul.f32.gmra.mxu0 %v1620
    %v1639 = vpop.f32.mrf.mxu0
    %v1640 = vadd.f32 0.0, %v1639
    %1641 = vdwg.mxu0
    %1643 = vrot.lane.b32.xlu0 %v1640, 16
    %v1644 = vpop.permute.xlu0 %1643
    %1646 = vst.msk [vmem:[#allocation2 + $0x8] sm:$0xff] %vm514, %v1644
    %1647 = vrot.lane.b32.xlu0 %v1151, 104
    %v1648 = vpop.permute.xlu0 %1647
    %1649 = vrot.lane.b32.xlu0 %v1151, 72
    %v1650 = vpop.permute.xlu0 %1649
    %v1651 = vsel %vm304, %v1648, 0
    %v1653 = vsel %vm304, %v1650, 0
    %1655 = vmatpush.xpose.msra.mxu0 0.0
    %1656 = vmatpush.xpose.msra.mxu0 0.0
    %1657 = vmatpush.xpose.msra.mxu0 0.0
    %1658 = vmatpush.xpose.msra.mxu0 0.0
    %1659 = vmatpush.xpose.msra.mxu0 0.0
    %1660 = vmatpush.xpose.msra.mxu0 0.0
    %1661 = vmatpush.xpose.msra.mxu0 0.0
    %1662 = vmatpush.xpose.msra.mxu0 0.0
    %1663 = vmatpush.xpose.msra.mxu0 0.0
    %1664 = vmatpush.xpose.msra.mxu0 0.0
    %1665 = vmatpush.xpose.msra.mxu0 0.0
    %1666 = vmatpush.xpose.msra.mxu0 0.0
    %1667 = vmatpush.xpose.msra.mxu0 0.0
    %1668 = vmatpush.xpose.msra.mxu0 0.0
    %1669 = vmatpush.xpose.msra.mxu0 0.0
    %1670 = vmatpush.xpose.msra.mxu0 %v1653
    %1671 = vmatmul.f32.gmra.mxu0 %v1651
    %v1672 = vpop.f32.mrf.mxu0
    %v1673 = vadd.f32 0.0, %v1672
    %1674 = vdwg.mxu0
    %v1675 = vmul.f32 %v1673, 0.35355338
    %v1676 = vadd.f32 %v1675, %v617
    %v1677 = vsel %vm304, %v1676, -inf
    %1678 = vmax.xlane.f32.xlu0 %v1677
    %v1679 = vpop.xlane.xlu0 %1678
    %v1680 = vsub.f32 %v1676, %v1679
    %v1681 = vmul.f32 %v1680, 1.442695
    %v1682 = vpow.pop %v1681
    %v1683 = vsel %vm304, %v1682, 0.0
    %1684 = vadd.xlane.f32.xlu0 %v1683
    %v1685 = vpop.xlane.xlu0 %1684
    %v1686 = vrcp.pop %v1685
    %v1687 = vmul.f32 %v1682, %v1686
    %1688 = vrot.lane.b32.xlu0 %v1151, 40
    %v1689 = vpop.permute.xlu0 %1688
    %v1692 = vsel %vm304, %v1687, 0
    %1694 = vmatpush.msra.mxu0 0.0
    %1695 = vmatpush.msra.mxu0 0.0
    %1696 = vmatpush.msra.mxu0 0.0
    %1697 = vmatpush.msra.mxu0 0.0
    %1698 = vmatpush.msra.mxu0 0.0
    %1699 = vmatpush.msra.mxu0 0.0
    %1700 = vmatpush.msra.mxu0 0.0
    %1701 = vmatpush.msra.mxu0 0.0
    %1702 = vmatpush.msra.mxu0 0.0
    %1703 = vmatpush.msra.mxu0 0.0
    %1704 = vmatpush.msra.mxu0 0.0
    %1705 = vmatpush.msra.mxu0 0.0
    %1706 = vmatpush.msra.mxu0 0.0
    %1707 = vmatpush.msra.mxu0 0.0
    %1708 = vmatpush.msra.mxu0 0.0
    %1709 = vmatpush.msra.mxu0 %v1689
    %1710 = vmatmul.f32.gmra.mxu0 %v1692
    %v1711 = vpop.f32.mrf.mxu0
    %v1712 = vadd.f32 0.0, %v1711
    %1713 = vdwg.mxu0
    %1715 = vrot.lane.b32.xlu0 %v1712, 24
    %v1716 = vpop.permute.xlu0 %1715
    %1718 = vst.msk [vmem:[#allocation2 + $0x8] sm:$0xff] %vm587, %v1716
    %v1719 = vld [vmem:[#allocation2] sm:$0xff]
    %v1720 = vld [vmem:[#allocation2 + $0x8] sm:$0xff]
    %v1721 = vld [vmem:[#allocation11] sm:$0xff]
    %v1722 = vld [vmem:[#allocation11 + $0x8] sm:$0xff]
    %v1723 = vld [vmem:[#allocation11 + $0x10] sm:$0xff]
    %v1724 = vld [vmem:[#allocation11 + $0x18] sm:$0xff]
    %v1725 = vld [vmem:[%s35] sm:$0x1]
    %v1727 = vperm.slane %v1725, 0
    %v1730 = vsel %vm271, %v1719, 0
    %v1733 = vsel %vm271, %v1720, 0
    %1735 = vmatpush.msra.mxu0 0.0
    %1736 = vmatpush.msra.mxu0 0.0
    %1737 = vmatpush.msra.mxu0 0.0
    %1738 = vmatpush.msra.mxu0 0.0
    %1739 = vmatpush.msra.mxu0 0.0
    %1740 = vmatpush.msra.mxu0 0.0
    %1741 = vmatpush.msra.mxu0 0.0
    %1742 = vmatpush.msra.mxu0 0.0
    %1743 = vmatpush.msra.mxu0 0.0
    %1744 = vmatpush.msra.mxu0 0.0
    %1745 = vmatpush.msra.mxu0 0.0
    %1746 = vmatpush.msra.mxu0 0.0
    %1747 = vmatpush.msra.mxu0 %v1724
    %1748 = vmatpush.msra.mxu0 %v1723
    %1749 = vmatpush.msra.mxu0 %v1722
    %1750 = vmatpush.msra.mxu0 %v1721
    %1751 = vmatmul.f32.gmra.mxu0 %v1730
    %v1752 = vpop.f32.mrf.mxu0
    %v1753 = vadd.f32 %v1727, %v1752
    %1754 = vmatmul.f32.gmra.mxu0 %v1733
    %v1755 = vpop.f32.mrf.mxu0
    %v1756 = vadd.f32 %v1727, %v1755
    %1757 = vdwg.mxu0
    %v1758 = vadd.f32 %v1114, %v1753
    %v1759 = vadd.f32 %v1115, %v1756
    %v1760 = vld [vmem:[%s37] sm:$0x1]
    %v1761 = vld [vmem:[%s39] sm:$0x1]
    %v1762 = vsel %vm271, %v1758, 0.0
    %1763 = vadd.xlane.f32.xlu0 %v1762
    %v1764 = vpop.xlane.xlu0 %1763
    %v1765 = vsel %vm271, %v1759, 0.0
    %1766 = vadd.xlane.f32.xlu0 %v1765
    %v1767 = vpop.xlane.xlu0 %1766
    %v1768 = vmul.f32 %v1764, %v928
    %v1769 = vmul.f32 %v1767, %v928
    %v1770 = vsub.f32 %v1758, %v1768
    %v1771 = vsub.f32 %v1759, %v1769
    %v1772 = vmul.f32 %v1770, %v1770
    %v1773 = vmul.f32 %v1771, %v1771
    %v1774 = vsel %vm271, %v1772, 0.0
    %1775 = vadd.xlane.f32.xlu0 %v1774
    %v1776 = vpop.xlane.xlu0 %1775
    %v1777 = vsel %vm271, %v1773, 0.0
    %1778 = vadd.xlane.f32.xlu0 %v1777
    %v1779 = vpop.xlane.xlu0 %1778
    %v1780 = vmul.f32 %v1776, %v928
    %v1781 = vmul.f32 %v1779, %v928
    %v1782 = vadd.f32 %v1780, 1e-05
    %v1783 = vadd.f32 %v1781, 1e-05
    %v1784 = vrsqrt.pop %v1782
    %v1785 = vmul.f32 %v1784, %v1782
    %v1786 = vmul.f32 %v1785, %v1784
    %v1787 = vmul.f32 0.5, %v1786
    %v1788 = vsub.f32 1.5, %v1787
    %v1789 = vmul.f32 %v1784, %v1788
    %vm1790 = vweird.f32 %v1782
    %vm1791 = vweird.f32 %v1784
    %vm1792 = vmor %vm1790, %vm1791
    %v1793 = vsel %vm1792, %v1784, %v1789
    %v1794 = vrsqrt.pop %v1783
    %v1795 = vmul.f32 %v1794, %v1783
    %v1796 = vmul.f32 %v1795, %v1794
    %v1797 = vmul.f32 0.5, %v1796
    %v1798 = vsub.f32 1.5, %v1797
    %v1799 = vmul.f32 %v1794, %v1798
    %vm1800 = vweird.f32 %v1783
    %vm1801 = vweird.f32 %v1794
    %vm1802 = vmor %vm1800, %vm1801
    %v1803 = vsel %vm1802, %v1794, %v1799
    %v1804 = vmul.f32 %v1770, %v1793
    %v1805 = vmul.f32 %v1771, %v1803
    %v1807 = vperm.slane %v1760, 0
    %v1809 = vmul.f32 %v1804, %v1807
    %v1810 = vmul.f32 %v1805, %v1807
    %v1812 = vperm.slane %v1761, 0
    %v1814 = vadd.f32 %v1809, %v1812
    %v1815 = vadd.f32 %v1810, %v1812
    %v1816 = vld [vmem:[#allocation12] sm:$0xff]
    %v1817 = vld [vmem:[#allocation12 + $0x8] sm:$0xff]
    %v1818 = vld [vmem:[#allocation12 + $0x10] sm:$0xff]
    %v1819 = vld [vmem:[#allocation12 + $0x18] sm:$0xff]
    %v1820 = vld [vmem:[%s43] sm:$0x1]
    %v1822 = vperm.slane %v1820, 0
    %v1825 = vsel %vm271, %v1814, 0
    %v1828 = vsel %vm271, %v1815, 0
    %1830 = vmatpush.msra.mxu0 0.0
    %1831 = vmatpush.msra.mxu0 0.0
    %1832 = vmatpush.msra.mxu0 0.0
    %1833 = vmatpush.msra.mxu0 0.0
    %1834 = vmatpush.msra.mxu0 0.0
    %1835 = vmatpush.msra.mxu0 0.0
    %1836 = vmatpush.msra.mxu0 0.0
    %1837 = vmatpush.msra.mxu0 0.0
    %1838 = vmatpush.msra.mxu0 0.0
    %1839 = vmatpush.msra.mxu0 0.0
    %1840 = vmatpush.msra.mxu0 0.0
    %1841 = vmatpush.msra.mxu0 0.0
    %1842 = vmatpush.msra.mxu0 %v1819
    %1843 = vmatpush.msra.mxu0 %v1818
    %1844 = vmatpush.msra.mxu0 %v1817
    %1845 = vmatpush.msra.mxu0 %v1816
    %1846 = vmatmul.f32.gmra.mxu0 %v1825
    %v1847 = vpop.f32.mrf.mxu0
    %v1848 = vadd.f32 %v1822, %v1847
    %1849 = vmatmul.f32.gmra.mxu0 %v1828
    %v1850 = vpop.f32.mrf.mxu0
    %v1851 = vadd.f32 %v1822, %v1850
    %1852 = vdwg.mxu0
    %v1853 = vmax.f32 %v1848, 0.0
    %v1854 = vmax.f32 %v1851, 0.0
    %v1855 = vld [vmem:[%s45] sm:$0xff]
    %v1856 = vld [vmem:[%s45 + $0x8] sm:$0xff]
    %v1857 = vld [vmem:[%s45 + $0x10] sm:$0xff]
    %v1858 = vld [vmem:[%s45 + $0x18] sm:$0xff]
    %v1859 = vld [vmem:[%s45 + $0x20] sm:$0xff]
    %v1860 = vld [vmem:[%s45 + $0x28] sm:$0xff]
    %v1861 = vld [vmem:[%s45 + $0x30] sm:$0xff]
    %v1862 = vld [vmem:[%s45 + $0x38] sm:$0xff]
    %v1863 = vld [vmem:[%s47] sm:$0x1]
    %v1865 = vperm.slane %v1863, 0
    %v1868 = vsel %vm1028, %v1853, 0
    %v1871 = vsel %vm1028, %v1854, 0
    %1873 = vmatpush.msra.mxu0 0.0
    %1874 = vmatpush.msra.mxu0 0.0
    %1875 = vmatpush.msra.mxu0 0.0
    %1876 = vmatpush.msra.mxu0 0.0
    %1877 = vmatpush.msra.mxu0 0.0
    %1878 = vmatpush.msra.mxu0 0.0
    %1879 = vmatpush.msra.mxu0 0.0
    %1880 = vmatpush.msra.mxu0 0.0
    %1881 = vmatpush.msra.mxu0 %v1862
    %1882 = vmatpush.msra.mxu0 %v1861
    %1883 = vmatpush.msra.mxu0 %v1860
    %1884 = vmatpush.msra.mxu0 %v1859
    %1885 = vmatpush.msra.mxu0 %v1858
    %1886 = vmatpush.msra.mxu0 %v1857
    %1887 = vmatpush.msra.mxu0 %v1856
    %1888 = vmatpush.msra.mxu0 %v1855
    %1889 = vmatmul.f32.gmra.mxu0 %v1868
    %v1890 = vpop.f32.mrf.mxu0
    %v1891 = vadd.f32 %v1865, %v1890
    %1892 = vmatmul.f32.gmra.mxu0 %v1871
    %v1893 = vpop.f32.mrf.mxu0
    %v1894 = vadd.f32 %v1865, %v1893
    %1895 = vdwg.mxu0
    %v1896 = vadd.f32 %v1814, %v1891
    %v1897 = vadd.f32 %v1815, %v1894
    %v1898 = vld [vmem:[%s49] sm:$0x1]
    %v1899 = vld [vmem:[%s51] sm:$0x1]
    %v1900 = vsel %vm271, %v1896, 0.0
    %1901 = vadd.xlane.f32.xlu0 %v1900
    %v1902 = vpop.xlane.xlu0 %1901
    %v1903 = vsel %vm271, %v1897, 0.0
    %1904 = vadd.xlane.f32.xlu0 %v1903
    %v1905 = vpop.xlane.xlu0 %1904
    %v1906 = vmul.f32 %v1902, %v928
    %v1907 = vmul.f32 %v1905, %v928
    %v1908 = vsub.f32 %v1896, %v1906
    %v1909 = vsub.f32 %v1897, %v1907
    %v1910 = vmul.f32 %v1908, %v1908
    %v1911 = vmul.f32 %v1909, %v1909
    %v1912 = vsel %vm271, %v1910, 0.0
    %1913 = vadd.xlane.f32.xlu0 %v1912
    %v1914 = vpop.xlane.xlu0 %1913
    %v1915 = vsel %vm271, %v1911, 0.0
    %1916 = vadd.xlane.f32.xlu0 %v1915
    %v1917 = vpop.xlane.xlu0 %1916
    %v1918 = vmul.f32 %v1914, %v928
    %v1919 = vmul.f32 %v1917, %v928
    %v1920 = vadd.f32 %v1918, 1e-05
    %v1921 = vadd.f32 %v1919, 1e-05
    %v1922 = vrsqrt.pop %v1920
    %v1923 = vmul.f32 %v1922, %v1920
    %v1924 = vmul.f32 %v1923, %v1922
    %v1925 = vmul.f32 0.5, %v1924
    %v1926 = vsub.f32 1.5, %v1925
    %v1927 = vmul.f32 %v1922, %v1926
    %vm1928 = vweird.f32 %v1920
    %vm1929 = vweird.f32 %v1922
    %vm1930 = vmor %vm1928, %vm1929
    %v1931 = vsel %vm1930, %v1922, %v1927
    %v1932 = vrsqrt.pop %v1921
    %v1933 = vmul.f32 %v1932, %v1921
    %v1934 = vmul.f32 %v1933, %v1932
    %v1935 = vmul.f32 0.5, %v1934
    %v1936 = vsub.f32 1.5, %v1935
    %v1937 = vmul.f32 %v1932, %v1936
    %vm1938 = vweird.f32 %v1921
    %vm1939 = vweird.f32 %v1932
    %vm1940 = vmor %vm1938, %vm1939
    %v1941 = vsel %vm1940, %v1932, %v1937
    %v1942 = vmul.f32 %v1908, %v1931
    %v1943 = vmul.f32 %v1909, %v1941
    %v1945 = vperm.slane %v1898, 0
    %v1947 = vmul.f32 %v1942, %v1945
    %v1948 = vmul.f32 %v1943, %v1945
    %v1950 = vperm.slane %v1899, 0
    %v1952 = vadd.f32 %v1947, %v1950
    %v1953 = vadd.f32 %v1948, %v1950
    %v1954 = vld [vmem:[#allocation14] sm:$0xff]
    %v1955 = vld [vmem:[#allocation14 + $0x8] sm:$0xff]
    %v1956 = vld [vmem:[#allocation14 + $0x10] sm:$0xff]
    %v1957 = vld [vmem:[#allocation14 + $0x18] sm:$0xff]
    %v1958 = vld [vmem:[%s55] sm:$0x1]
    %v1960 = vperm.slane %v1958, 0
    %v1963 = vsel %vm271, %v1952, 0
    %v1966 = vsel %vm271, %v1953, 0
    %1968 = vmatpush.msra.mxu0 0.0
    %1969 = vmatpush.msra.mxu0 0.0
    %1970 = vmatpush.msra.mxu0 0.0
    %1971 = vmatpush.msra.mxu0 0.0
    %1972 = vmatpush.msra.mxu0 0.0
    %1973 = vmatpush.msra.mxu0 0.0
    %1974 = vmatpush.msra.mxu0 0.0
    %1975 = vmatpush.msra.mxu0 0.0
    %1976 = vmatpush.msra.mxu0 0.0
    %1977 = vmatpush.msra.mxu0 0.0
    %1978 = vmatpush.msra.mxu0 0.0
    %1979 = vmatpush.msra.mxu0 0.0
    %1980 = vmatpush.msra.mxu0 %v1957
    %1981 = vmatpush.msra.mxu0 %v1956
    %1982 = vmatpush.msra.mxu0 %v1955
    %1983 = vmatpush.msra.mxu0 %v1954
    %1984 = vmatmul.f32.gmra.mxu0 %v1963
    %v1985 = vpop.f32.mrf.mxu0
    %v1986 = vadd.f32 %v1960, %v1985
    %1987 = vmatmul.f32.gmra.mxu0 %v1966
    %v1988 = vpop.f32.mrf.mxu0
    %v1989 = vadd.f32 %v1960, %v1988
    %1990 = vdwg.mxu0
    %v1991 = vmax.f32 %v1986, 0.0
    %v1992 = vmax.f32 %v1989, 0.0
    %v1993 = vld [vmem:[#allocation15] sm:$0xff]
    %v1994 = vld [vmem:[#allocation15 + $0x8] sm:$0xff]
    %v1995 = vld [vmem:[#allocation15 + $0x10] sm:$0xff]
    %v1996 = vld [vmem:[#allocation15 + $0x18] sm:$0xff]
    %v1997 = vld [vmem:[%s59] sm:$0x1]
    %v1999 = vperm.slane %v1997, 0
    %v2002 = vsel %vm271, %v1991, 0
    %v2005 = vsel %vm271, %v1992, 0
    %2007 = vmatpush.msra.mxu0 0.0
    %2008 = vmatpush.msra.mxu0 0.0
    %2009 = vmatpush.msra.mxu0 0.0
    %2010 = vmatpush.msra.mxu0 0.0
    %2011 = vmatpush.msra.mxu0 0.0
    %2012 = vmatpush.msra.mxu0 0.0
    %2013 = vmatpush.msra.mxu0 0.0
    %2014 = vmatpush.msra.mxu0 0.0
    %2015 = vmatpush.msra.mxu0 0.0
    %2016 = vmatpush.msra.mxu0 0.0
    %2017 = vmatpush.msra.mxu0 0.0
    %2018 = vmatpush.msra.mxu0 0.0
    %2019 = vmatpush.msra.mxu0 %v1996
    %2020 = vmatpush.msra.mxu0 %v1995
    %2021 = vmatpush.msra.mxu0 %v1994
    %2022 = vmatpush.msra.mxu0 %v1993
    %2023 = vmatmul.f32.gmra.mxu0 %v2002
    %v2024 = vpop.f32.mrf.mxu0
    %v2025 = vadd.f32 %v1999, %v2024
    %2026 = vmatmul.f32.gmra.mxu0 %v2005
    %v2027 = vpop.f32.mrf.mxu0
    %v2028 = vadd.f32 %v1999, %v2027
    %2029 = vdwg.mxu0
    %v2030 = vld [vmem:[%s61] sm:$0xff]
    %v2031 = vld [vmem:[%s61 + $0x8] sm:$0xff]
    %v2032 = vld [vmem:[%s61 + $0x10] sm:$0xff]
    %v2033 = vld [vmem:[%s61 + $0x18] sm:$0xff]
    %v2034 = vld [vmem:[%s61 + $0x20] sm:$0xff]
    %v2035 = vld [vmem:[%s61 + $0x28] sm:$0xff]
    %v2036 = vld [vmem:[%s61 + $0x30] sm:$0xff]
    %v2037 = vld [vmem:[%s61 + $0x38] sm:$0xff]
    %v2038 = vld [vmem:[%s63] sm:$0x1]
    %v2040 = vperm.slane %v2038, 0
    %v2043 = vsel %vm1028, %v2025, 0
    %v2046 = vsel %vm1028, %v2028, 0
    %2048 = vmatpush.msra.mxu0 0.0
    %2049 = vmatpush.msra.mxu0 0.0
    %2050 = vmatpush.msra.mxu0 0.0
    %2051 = vmatpush.msra.mxu0 0.0
    %2052 = vmatpush.msra.mxu0 0.0
    %2053 = vmatpush.msra.mxu0 0.0
    %2054 = vmatpush.msra.mxu0 0.0
    %2055 = vmatpush.msra.mxu0 0.0
    %2056 = vmatpush.msra.mxu0 %v2037
    %2057 = vmatpush.msra.mxu0 %v2036
    %2058 = vmatpush.msra.mxu0 %v2035
    %2059 = vmatpush.msra.mxu0 %v2034
    %2060 = vmatpush.msra.mxu0 %v2033
    %2061 = vmatpush.msra.mxu0 %v2032
    %2062 = vmatpush.msra.mxu0 %v2031
    %2063 = vmatpush.msra.mxu0 %v2030
    %2064 = vmatmul.f32.gmra.mxu0 %v2043
    %v2065 = vpop.f32.mrf.mxu0
    %v2066 = vadd.f32 %v2040, %v2065
    %2067 = vmatmul.f32.gmra.mxu0 %v2046
    %v2068 = vpop.f32.mrf.mxu0
    %v2069 = vadd.f32 %v2040, %v2068
    %2070 = vdwg.mxu0
    %vm2071 = vcmask 24576
    %2072 = vst.msk [vmem:[#allocation17] sm:$0x1] %vm2071, %v2066
    %2073 = vst.msk [vmem:[#allocation17 + $0x1] sm:$0x1] %vm2071, %v2069
    // Predicated region
    $region162: #{model_forward.1} parent=1 // pred_check
      _
    $region163: #{model_forward.1} parent=1 // pred_check_branch
      %2075 = sbr.rel (0) target = $region165
    $region164: #{model_forward.1} parent=1 // pred_region
      %2077 = vsyncadd [#allocation5], 0
      %s2079 = sshll.u32 [#allocation17], 4
      %s2080 = int_to_ptr.vmem [resolvable:$true] %s2079
      %s2081 = sshll.u32 %s65, 4
      %s2082 = int_to_ptr.hbm [resolvable:$true] %s2081
      %2084 = dma.vmem_to_hbm [thread:$0]  %s2080, 32, %s2082, [#allocation5]
    $region165: #{model_forward.1} parent=1 // pred_fallthru
      _
    // Predicated region
    $region166: #{model_forward.1} parent=1 // pred_check
      _
    $region167: #{model_forward.1} parent=1 // pred_check_branch
      %2086 = sbr.rel (0) target = $region169
    $region168: #{model_forward.1} parent=1 // pred_region
      %2088 = dma.done [#allocation5], 32
    $region169: #{model_forward.1} parent=1 // pred_fallthru
      _
    %2089 = vsyncpa [#allocation4], 1
    %2090 = vsyncpa [#allocation7], 1
    %2091 = vsyncpa [#allocation10], 1
    %2092 = vsyncpa [#allocation13], 1
    %2093 = vsyncpa [#allocation16], 1
    %2094 = vsyncpa [#allocation5], 1

</llo_original>
